<compile_context>
chip_gen: v6e
topology: v6e:2x2x1
jax: 0.10.0
libtpu: 0.0.40
codegen_flags: <defaults>
</compile_context>

<pallas_src>
import jax
import jax.numpy as jnp
import numpy as np
from jax import lax
from jax.experimental import pallas as pl
from jax.experimental.pallas import tpu as pltpu

LEAKY = 0.2
BN_EPS = 1e-5


def _leaky(x):
    # slope < 1  =>  leaky_relu(x) == max(x, slope * x)   (VALU)
    return jnp.maximum(x, LEAKY * x)


def _sigmoid(x):
    # exp on the EUP, approx reciprocal also on the EUP -> no VALU divide.
    return pl.reciprocal(1.0 + jnp.exp(-x), approx=True)


# ----------------------------------------------------------------------------
# Single fused kernel: forward_construct_short + forward_construct_long.
# ----------------------------------------------------------------------------
def _memory_graph_kernel(x_ref,
                         wg_ref, bg_ref, gamma_ref, beta_ref,
                         w1g_ref, w1x_ref, b1_ref,
                         wadj_ref, wlw_ref, blw_ref,
                         w3w_ref, w3u_ref, b3_ref,
                         w4w_ref, w4u_ref, b4_ref,
                         o_ref):
    f32 = jnp.float32
    x = x_ref[...]                                    # (B, C, N)
    B, C, N = x.shape
    O = wlw_ref.shape[0]

    def bcast(w):                                     # (P, Q) -> (B, P, Q); hoisted where reused
        return jnp.broadcast_to(w[None], (B,) + w.shape)

    def bmm(wb, a, cdim):
        # out[b, p, free] = sum_q wb[b, p, q] * a[b, ... q at cdim ...]
        return lax.dot_general(wb, a, (((2,), (cdim,)), ((0,), (0,))),
                               preferred_element_type=f32)

    def rowmm(a, w):                                  # a @ w^T  (torch Linear, B folded into rows)
        return lax.dot_general(a, w, (((1,), (1,)), ((), ())),
                               preferred_element_type=f32)

    wadj_b = bcast(wadj_ref[...])                     # (B, N, N)  reused twice
    wlw_b = bcast(wlw_ref[...])                       # (B, O, C)  reused twice
    blw = blw_ref[...]                                # (1, O, 1)

    # ---- forward_construct_short ------------------------------------------
    glb = jnp.mean(x, axis=2, keepdims=True)          # gap: (B, C, 1)
    glb = jnp.broadcast_to(glb, (B, C, N))            # expand early (per-channel ops commute)
    glb = bmm(bcast(wg_ref[...]), glb, 1) + bg_ref[...]        # conv_global: (B, C, N)
    # BatchNorm1d (training mode, biased batch stats per channel)
    mu = jnp.mean(jnp.mean(glb, axis=2, keepdims=True), axis=0, keepdims=True)
    d = glb - mu
    var = jnp.mean(jnp.mean(d * d, axis=2, keepdims=True), axis=0, keepdims=True)
    glb = gamma_ref[...] * d * lax.rsqrt(var + BN_EPS) + beta_ref[...]
    glb = _leaky(glb)
    # conv1 over cat([glb, x], dim=1); weight pre-split into [w1g | w1x]
    short = _sigmoid(bmm(bcast(w1x_ref[...]), x, 1)
                     + bmm(bcast(w1g_ref[...]), glb, 1)
                     + b1_ref[...])                    # (B, C, N)

    # ---- first long_adj / long_weight pass (torch no_grad block) -----------
    # la[b, m, c] = leaky( sum_n w_adj[m, n] * x[b, c, n] )  -- x.transpose(1,2)
    # expressed via dot_general dims, no value transpose.
    la = _leaky(bmm(wadj_b, x, 2))                     # (B, N, C)
    lw = _leaky(bmm(wlw_b, short, 1) + blw)            # (B, O, N)

    # torch .view() reinterpretations (row-major; leading-dim collapses when C == N)
    x_a = x.reshape(B * C, N)
    la_f = la.reshape(B * C, N)
    x_w = short.reshape(B * N, C)
    lw_f = lw.reshape(B * N, O)

    # ---- gated updates (eq3 over num_nodes, eq4 over in_features) ----------
    # biases are pre-folded (b3 = b3w + b3u, b4 = b4w + b4u) at param-fold time.
    av = jnp.tanh(rowmm(x_a, w3w_ref[...]) + rowmm(la_f, w3u_ref[...]) + b3_ref[...])
    xa2 = x_a + av * la_f                              # (B*C, N)
    wv = jnp.tanh(rowmm(x_w, w4w_ref[...]) + rowmm(lw_f, w4u_ref[...]) + b4_ref[...])
    xw2 = x_w + wv * lw_f                              # (B*N, C)

    # ---- second long_adj / long_weight pass + final fused elementwise ------
    xa2 = xa2.reshape(B, N, C)                         # torch .view(B, N, -1)
    xw2 = xw2.reshape(B, C, N)                         # torch .view(B, C, N)
    # la2T[b, c, m] = leaky( sum_n xa2[b, n, c] * w_adj[m, n] )
    #   == long_adj(xa2).transpose(1, 2) with no value transpose.
    la2T = _leaky(lax.dot_general(xa2, wadj_b, (((1,), (2,)), ((0,), (0,))),
                                  preferred_element_type=f32))   # (B, C, N)
    lw2 = _leaky(bmm(wlw_b, xw2, 1) + blw)                        # (B, O, N)
    o_ref[...] = _sigmoid(la2T * (x + short) * lw2)


# ----------------------------------------------------------------------------
# Wrapper: exactly one op (the fused pallas_call); no per-call glue.
# ----------------------------------------------------------------------------
def memory_graph_forward(x, fp):
    B, C, N = x.shape
    O = fp["w_lw"].shape[0]
    assert O == C, "torch module requires out_features == in_features"
    return pl.pallas_call(
        _memory_graph_kernel,
        out_shape=jax.ShapeDtypeStruct((B, O, N), jnp.float32),
        compiler_params=pltpu.CompilerParams(vmem_limit_bytes=32 * 1024 * 1024),
    )(x,
      fp["wg"], fp["bg"], fp["gamma"], fp["beta"],
      fp["w1g"], fp["w1x"], fp["b1"],
      fp["w_adj"], fp["w_lw"], fp["b_lw"],
      fp["w3w"], fp["w3u"], fp["b3"],
      fp["w4w"], fp["w4u"], fp["b4"])


# ----------------------------------------------------------------------------
# One-time parameter folding (outside jit): bias layouts for in-kernel
# broadcasting + pre-added gate biases.  No per-call transposes / adds remain.
# ----------------------------------------------------------------------------
def fold_params(p):
    return {
        "wg": p["wg"], "bg": p["bg"].reshape(1, -1, 1),
        "gamma": p["gamma"].reshape(1, -1, 1), "beta": p["beta"].reshape(1, -1, 1),
        "w1g": p["w1g"], "w1x": p["w1x"], "b1": p["b1"].reshape(1, -1, 1),
        "w_adj": p["w_adj"],
        "w_lw": p["w_lw"], "b_lw": p["b_lw"].reshape(1, -1, 1),
        "w3w": p["fc3w_w"], "w3u": p["fc3u_w"],
        "b3": (p["fc3w_b"] + p["fc3u_b"]).reshape(1, -1),
        "w4w": p["fc4w_w"], "w4u": p["fc4u_w"],
        "b4": (p["fc4w_b"] + p["fc4u_b"]).reshape(1, -1),
    }


# ----------------------------------------------------------------------------
# Pure-JAX reference (mirrors the torch forward literally) for validation
# ----------------------------------------------------------------------------
def reference_forward(x, p):
    B, C, N = x.shape
    glb = jnp.mean(x, axis=2, keepdims=True)
    glb = jnp.einsum("oc,bcl->bol", p["wg"], glb) + p["bg"][None, :, None]
    mu = jnp.mean(glb, axis=(0, 2), keepdims=True)
    var = jnp.mean((glb - mu) ** 2, axis=(0, 2), keepdims=True)
    glb = p["gamma"][None, :, None] * (glb - mu) / jnp.sqrt(var + BN_EPS) + p["beta"][None, :, None]
    glb = jnp.where(glb >= 0, glb, LEAKY * glb)
    glb = jnp.broadcast_to(glb, (B, C, N))
    cat = jnp.concatenate([glb, x], axis=1)
    w1 = jnp.concatenate([p["w1g"], p["w1x"]], axis=1)
    short = jax.nn.sigmoid(jnp.einsum("oc,bcn->bon", w1, cat) + p["b1"][None, :, None])

    la = jnp.einsum("mn,bnc->bmc", p["w_adj"], jnp.transpose(x, (0, 2, 1)))
    la = jnp.where(la >= 0, la, LEAKY * la)
    la_flat = la.reshape(-1, N)
    lw = jnp.einsum("oc,bcn->bon", p["w_lw"], short) + p["b_lw"][None, :, None]
    lw = jnp.where(lw >= 0, lw, LEAKY * lw)
    lw_flat = lw.reshape(B * N, -1)
    x_w = short.reshape(B * N, -1)
    x_a = x.reshape(-1, N)
    av = jnp.tanh(x_a @ p["fc3w_w"].T + p["fc3w_b"] + la_flat @ p["fc3u_w"].T + p["fc3u_b"])
    wv = jnp.tanh(x_w @ p["fc4w_w"].T + p["fc4w_b"] + lw_flat @ p["fc4u_w"].T + p["fc4u_b"])
    x_a = (x_a + av * la_flat).reshape(B, N, -1)
    x_w = (x_w + wv * lw_flat).reshape(B, C, N)
    la2 = jnp.einsum("mn,bnc->bmc", p["w_adj"], x_a)
    la2 = jnp.where(la2 >= 0, la2, LEAKY * la2)
    lw2 = jnp.einsum("oc,bcn->bon", p["w_lw"], x_w) + p["b_lw"][None, :, None]
    lw2 = jnp.where(lw2 >= 0, lw2, LEAKY * lw2)
    xs = x + short
    f1 = jnp.transpose(la2, (0, 2, 1)) * xs
    return jax.nn.sigmoid(f1 * lw2)


def init_params(key, in_features, out_features, num_nodes):
    C, O, N = in_features, out_features, num_nodes
    ks = jax.random.split(key, 16)
    f32 = jnp.float32

    def w(k, shape, scale=0.1):
        return (scale * jax.random.normal(k, shape)).astype(f32)

    return {
        # conv_global: Conv1d(C, C, 1)
        "wg": w(ks[0], (C, C)), "bg": w(ks[1], (C,)),
        # bn_global (PyTorch defaults: gamma=1, beta=0)
        "gamma": jnp.ones((C,), f32), "beta": jnp.zeros((C,), f32),
        # conv1: Conv1d(2C, C, 1) split into [glb-part | x-part]
        "w1g": w(ks[2], (C, C)), "w1x": w(ks[3], (C, C)), "b1": w(ks[4], (C,)),
        # long_adj: Conv1d(N, N, 1, bias=False)
        "w_adj": w(ks[5], (N, N)),
        # long_weight: Conv1d(C, O, 1)
        "w_lw": w(ks[6], (O, C)), "b_lw": w(ks[7], (O,)),
        # fc_eq3_w / fc_eq3_u: Linear(N, N)
        "fc3w_w": w(ks[8], (N, N)), "fc3w_b": w(ks[9], (N,)),
        "fc3u_w": w(ks[10], (N, N)), "fc3u_b": w(ks[11], (N,)),
        # fc_eq4_w / fc_eq4_u: Linear(C, C)
        "fc4w_w": w(ks[12], (C, C)), "fc4w_b": w(ks[13], (C,)),
        "fc4u_w": w(ks[14], (C, C)), "fc4u_b": w(ks[15], (C,)),
    }


if __name__ == "__main__":
    # num_nodes == in_features == out_features keeps every torch .view()
    # reinterpretation a free leading-dim collapse inside the fused kernel.
    B, C, O, N = 4, 32, 32, 32
    key = jax.random.PRNGKey(0)
    k_x, k_p = jax.random.split(key)
    x = jax.random.normal(k_x, (B, C, N), dtype=jnp.float32)
    params = init_params(k_p, C, O, N)
    fparams = fold_params(params)          # one-time, outside jit

    fwd = jax.jit(memory_graph_forward)
    out = jax.block_until_ready(fwd(x, fparams))
    ref = jax.block_until_ready(reference_forward(x, params))

    assert out.shape == (B, O, N), out.shape
    np.testing.assert_allclose(np.asarray(out), np.asarray(ref), rtol=1e-2, atol=1e-2)
    print("KERNEL_OK")
</pallas_src>

<mosaic_0001>
module attributes {stable_mosaic.version = 11 : i64} {
  func.func @_memory_graph_kernel(%arg0: memref<4x32x32xf32, #tpu.memory_space<vmem>>, %arg1: memref<32x32xf32, #tpu.memory_space<vmem>>, %arg2: memref<1x32x1xf32, #tpu.memory_space<vmem>>, %arg3: memref<1x32x1xf32, #tpu.memory_space<vmem>>, %arg4: memref<1x32x1xf32, #tpu.memory_space<vmem>>, %arg5: memref<32x32xf32, #tpu.memory_space<vmem>>, %arg6: memref<32x32xf32, #tpu.memory_space<vmem>>, %arg7: memref<1x32x1xf32, #tpu.memory_space<vmem>>, %arg8: memref<32x32xf32, #tpu.memory_space<vmem>>, %arg9: memref<32x32xf32, #tpu.memory_space<vmem>>, %arg10: memref<1x32x1xf32, #tpu.memory_space<vmem>>, %arg11: memref<32x32xf32, #tpu.memory_space<vmem>>, %arg12: memref<32x32xf32, #tpu.memory_space<vmem>>, %arg13: memref<1x32xf32, #tpu.memory_space<vmem>>, %arg14: memref<32x32xf32, #tpu.memory_space<vmem>>, %arg15: memref<32x32xf32, #tpu.memory_space<vmem>>, %arg16: memref<1x32xf32, #tpu.memory_space<vmem>>, %arg17: memref<4x32x32xf32, #tpu.memory_space<vmem>>) attributes {dimension_semantics = [], scalar_prefetch = 0 : i64, scratch_operands = 0 : i64, tpu.core_type = #tpu.core_type<tc>} {
    %c0 = arith.constant 0 : index
    %c0_0 = arith.constant 0 : index
    %c0_1 = arith.constant 0 : index
    %0 = vector.load %arg0[%c0, %c0_0, %c0_1] : memref<4x32x32xf32, #tpu.memory_space<vmem>>, vector<4x32x32xf32>
    %c0_2 = arith.constant 0 : index
    %c0_3 = arith.constant 0 : index
    %1 = vector.load %arg8[%c0_2, %c0_3] : memref<32x32xf32, #tpu.memory_space<vmem>>, vector<32x32xf32>
    %2 = vector.shape_cast %1 : vector<32x32xf32> to vector<1x32x32xf32>
    %3 = vector.shape_cast %2 : vector<1x32x32xf32> to vector<1x32x32xf32>
    %4 = vector.broadcast %3 : vector<1x32x32xf32> to vector<4x32x32xf32>
    %c0_4 = arith.constant 0 : index
    %c0_5 = arith.constant 0 : index
    %5 = vector.load %arg9[%c0_4, %c0_5] : memref<32x32xf32, #tpu.memory_space<vmem>>, vector<32x32xf32>
    %6 = vector.shape_cast %5 : vector<32x32xf32> to vector<1x32x32xf32>
    %7 = vector.shape_cast %6 : vector<1x32x32xf32> to vector<1x32x32xf32>
    %8 = vector.broadcast %7 : vector<1x32x32xf32> to vector<4x32x32xf32>
    %c0_6 = arith.constant 0 : index
    %c0_7 = arith.constant 0 : index
    %c0_8 = arith.constant 0 : index
    %9 = vector.load %arg10[%c0_6, %c0_7, %c0_8] : memref<1x32x1xf32, #tpu.memory_space<vmem>>, vector<1x32x1xf32>
    %cst = arith.constant dense<0.000000e+00> : vector<4x32xf32>
    %10 = vector.multi_reduction <add>, %0, %cst [2] : vector<4x32x32xf32> to vector<4x32xf32>
    %11 = vector.shape_cast %10 : vector<4x32xf32> to vector<4x32x1xf32>
    %cst_9 = arith.constant 3.200000e+01 : f32
    %12 = vector.broadcast %cst_9 : f32 to vector<4x32x1xf32>
    %13 = arith.divf %11, %12 : vector<4x32x1xf32>
    %14 = vector.shape_cast %13 : vector<4x32x1xf32> to vector<4x32x1xf32>
    %15 = vector.broadcast %14 : vector<4x32x1xf32> to vector<4x32x32xf32>
    %c0_10 = arith.constant 0 : index
    %c0_11 = arith.constant 0 : index
    %16 = vector.load %arg1[%c0_10, %c0_11] : memref<32x32xf32, #tpu.memory_space<vmem>>, vector<32x32xf32>
    %17 = vector.shape_cast %16 : vector<32x32xf32> to vector<1x32x32xf32>
    %18 = vector.shape_cast %17 : vector<1x32x32xf32> to vector<1x32x32xf32>
    %19 = vector.broadcast %18 : vector<1x32x32xf32> to vector<4x32x32xf32>
    %cst_12 = arith.constant dense<0.000000e+00> : vector<4x32x32xf32>
    %20 = tpu.matmul %19, %15, %cst_12 {dimension_numbers = #tpu.dot_dimension_numbers<[2], [1], [1], [2], [0, 0, 0, 1, 1, 2], [0], [0]>} : vector<4x32x32xf32>, vector<4x32x32xf32>, vector<4x32x32xf32> -> vector<4x32x32xf32>
    %c0_13 = arith.constant 0 : index
    %c0_14 = arith.constant 0 : index
    %c0_15 = arith.constant 0 : index
    %21 = vector.load %arg2[%c0_13, %c0_14, %c0_15] : memref<1x32x1xf32, #tpu.memory_space<vmem>>, vector<1x32x1xf32>
    %22 = vector.broadcast %21 : vector<1x32x1xf32> to vector<4x32x32xf32>
    %23 = arith.addf %20, %22 : vector<4x32x32xf32>
    %cst_16 = arith.constant dense<0.000000e+00> : vector<4x32xf32>
    %24 = vector.multi_reduction <add>, %23, %cst_16 [2] : vector<4x32x32xf32> to vector<4x32xf32>
    %25 = vector.shape_cast %24 : vector<4x32xf32> to vector<4x32x1xf32>
    %cst_17 = arith.constant 3.200000e+01 : f32
    %26 = vector.broadcast %cst_17 : f32 to vector<4x32x1xf32>
    %27 = arith.divf %25, %26 : vector<4x32x1xf32>
    %cst_18 = arith.constant dense<0.000000e+00> : vector<32x1xf32>
    %28 = vector.multi_reduction <add>, %27, %cst_18 [0] : vector<4x32x1xf32> to vector<32x1xf32>
    %29 = vector.shape_cast %28 : vector<32x1xf32> to vector<1x32x1xf32>
    %cst_19 = arith.constant 4.000000e+00 : f32
    %30 = vector.broadcast %cst_19 : f32 to vector<1x32x1xf32>
    %31 = arith.divf %29, %30 : vector<1x32x1xf32>
    %32 = vector.broadcast %31 : vector<1x32x1xf32> to vector<4x32x32xf32>
    %33 = arith.subf %23, %32 : vector<4x32x32xf32>
    %34 = arith.mulf %33, %33 : vector<4x32x32xf32>
    %cst_20 = arith.constant dense<0.000000e+00> : vector<4x32xf32>
    %35 = vector.multi_reduction <add>, %34, %cst_20 [2] : vector<4x32x32xf32> to vector<4x32xf32>
    %36 = vector.shape_cast %35 : vector<4x32xf32> to vector<4x32x1xf32>
    %cst_21 = arith.constant 3.200000e+01 : f32
    %37 = vector.broadcast %cst_21 : f32 to vector<4x32x1xf32>
    %38 = arith.divf %36, %37 : vector<4x32x1xf32>
    %cst_22 = arith.constant dense<0.000000e+00> : vector<32x1xf32>
    %39 = vector.multi_reduction <add>, %38, %cst_22 [0] : vector<4x32x1xf32> to vector<32x1xf32>
    %40 = vector.shape_cast %39 : vector<32x1xf32> to vector<1x32x1xf32>
    %cst_23 = arith.constant 4.000000e+00 : f32
    %41 = vector.broadcast %cst_23 : f32 to vector<1x32x1xf32>
    %42 = arith.divf %40, %41 : vector<1x32x1xf32>
    %c0_24 = arith.constant 0 : index
    %c0_25 = arith.constant 0 : index
    %c0_26 = arith.constant 0 : index
    %43 = vector.load %arg3[%c0_24, %c0_25, %c0_26] : memref<1x32x1xf32, #tpu.memory_space<vmem>>, vector<1x32x1xf32>
    %44 = vector.broadcast %43 : vector<1x32x1xf32> to vector<4x32x32xf32>
    %45 = arith.mulf %44, %33 : vector<4x32x32xf32>
    %cst_27 = arith.constant 9.99999974E-6 : f32
    %46 = vector.broadcast %cst_27 : f32 to vector<1x32x1xf32>
    %47 = arith.addf %42, %46 : vector<1x32x1xf32>
    %48 = math.rsqrt %47 : vector<1x32x1xf32>
    %49 = vector.broadcast %48 : vector<1x32x1xf32> to vector<4x32x32xf32>
    %50 = arith.mulf %45, %49 : vector<4x32x32xf32>
    %c0_28 = arith.constant 0 : index
    %c0_29 = arith.constant 0 : index
    %c0_30 = arith.constant 0 : index
    %51 = vector.load %arg4[%c0_28, %c0_29, %c0_30] : memref<1x32x1xf32, #tpu.memory_space<vmem>>, vector<1x32x1xf32>
    %52 = vector.broadcast %51 : vector<1x32x1xf32> to vector<4x32x32xf32>
    %53 = arith.addf %50, %52 : vector<4x32x32xf32>
    %cst_31 = arith.constant 2.000000e-01 : f32
    %54 = vector.broadcast %cst_31 : f32 to vector<4x32x32xf32>
    %55 = arith.mulf %54, %53 : vector<4x32x32xf32>
    %56 = arith.maximumf %53, %55 : vector<4x32x32xf32>
    %c0_32 = arith.constant 0 : index
    %c0_33 = arith.constant 0 : index
    %57 = vector.load %arg6[%c0_32, %c0_33] : memref<32x32xf32, #tpu.memory_space<vmem>>, vector<32x32xf32>
    %58 = vector.shape_cast %57 : vector<32x32xf32> to vector<1x32x32xf32>
    %59 = vector.shape_cast %58 : vector<1x32x32xf32> to vector<1x32x32xf32>
    %60 = vector.broadcast %59 : vector<1x32x32xf32> to vector<4x32x32xf32>
    %cst_34 = arith.constant dense<0.000000e+00> : vector<4x32x32xf32>
    %61 = tpu.matmul %60, %0, %cst_34 {dimension_numbers = #tpu.dot_dimension_numbers<[2], [1], [1], [2], [0, 0, 0, 1, 1, 2], [0], [0]>} : vector<4x32x32xf32>, vector<4x32x32xf32>, vector<4x32x32xf32> -> vector<4x32x32xf32>
    %c0_35 = arith.constant 0 : index
    %c0_36 = arith.constant 0 : index
    %62 = vector.load %arg5[%c0_35, %c0_36] : memref<32x32xf32, #tpu.memory_space<vmem>>, vector<32x32xf32>
    %63 = vector.shape_cast %62 : vector<32x32xf32> to vector<1x32x32xf32>
    %64 = vector.shape_cast %63 : vector<1x32x32xf32> to vector<1x32x32xf32>
    %65 = vector.broadcast %64 : vector<1x32x32xf32> to vector<4x32x32xf32>
    %cst_37 = arith.constant dense<0.000000e+00> : vector<4x32x32xf32>
    %66 = tpu.matmul %65, %56, %cst_37 {dimension_numbers = #tpu.dot_dimension_numbers<[2], [1], [1], [2], [0, 0, 0, 1, 1, 2], [0], [0]>} : vector<4x32x32xf32>, vector<4x32x32xf32>, vector<4x32x32xf32> -> vector<4x32x32xf32>
    %67 = arith.addf %61, %66 : vector<4x32x32xf32>
    %c0_38 = arith.constant 0 : index
    %c0_39 = arith.constant 0 : index
    %c0_40 = arith.constant 0 : index
    %68 = vector.load %arg7[%c0_38, %c0_39, %c0_40] : memref<1x32x1xf32, #tpu.memory_space<vmem>>, vector<1x32x1xf32>
    %69 = vector.broadcast %68 : vector<1x32x1xf32> to vector<4x32x32xf32>
    %70 = arith.addf %67, %69 : vector<4x32x32xf32>
    %cst_41 = arith.constant 0.000000e+00 : f32
    %71 = vector.broadcast %cst_41 : f32 to vector<4x32x32xf32>
    %72 = arith.subf %71, %70 : vector<4x32x32xf32>
    %73 = math.exp %72 : vector<4x32x32xf32>
    %cst_42 = arith.constant 1.000000e+00 : f32
    %74 = vector.broadcast %cst_42 : f32 to vector<4x32x32xf32>
    %75 = arith.addf %74, %73 : vector<4x32x32xf32>
    %76 = tpu.reciprocal %75 {approx = true} : vector<4x32x32xf32> -> vector<4x32x32xf32>
    %cst_43 = arith.constant dense<0.000000e+00> : vector<4x32x32xf32>
    %77 = tpu.matmul %4, %0, %cst_43 {dimension_numbers = #tpu.dot_dimension_numbers<[2], [2], [1], [1], [0, 0, 0, 1, 1, 1], [0], [0]>} : vector<4x32x32xf32>, vector<4x32x32xf32>, vector<4x32x32xf32> -> vector<4x32x32xf32>
    %cst_44 = arith.constant 2.000000e-01 : f32
    %78 = vector.broadcast %cst_44 : f32 to vector<4x32x32xf32>
    %79 = arith.mulf %78, %77 : vector<4x32x32xf32>
    %80 = arith.maximumf %77, %79 : vector<4x32x32xf32>
    %cst_45 = arith.constant dense<0.000000e+00> : vector<4x32x32xf32>
    %81 = tpu.matmul %8, %76, %cst_45 {dimension_numbers = #tpu.dot_dimension_numbers<[2], [1], [1], [2], [0, 0, 0, 1, 1, 2], [0], [0]>} : vector<4x32x32xf32>, vector<4x32x32xf32>, vector<4x32x32xf32> -> vector<4x32x32xf32>
    %82 = vector.broadcast %9 : vector<1x32x1xf32> to vector<4x32x32xf32>
    %83 = arith.addf %81, %82 : vector<4x32x32xf32>
    %cst_46 = arith.constant 2.000000e-01 : f32
    %84 = vector.broadcast %cst_46 : f32 to vector<4x32x32xf32>
    %85 = arith.mulf %84, %83 : vector<4x32x32xf32>
    %86 = arith.maximumf %83, %85 : vector<4x32x32xf32>
    %87 = vector.shape_cast %0 : vector<4x32x32xf32> to vector<128x32xf32>
    %88 = vector.shape_cast %80 : vector<4x32x32xf32> to vector<128x32xf32>
    %89 = vector.shape_cast %76 : vector<4x32x32xf32> to vector<128x32xf32>
    %90 = vector.shape_cast %86 : vector<4x32x32xf32> to vector<128x32xf32>
    %c0_47 = arith.constant 0 : index
    %c0_48 = arith.constant 0 : index
    %91 = vector.load %arg11[%c0_47, %c0_48] : memref<32x32xf32, #tpu.memory_space<vmem>>, vector<32x32xf32>
    %cst_49 = arith.constant dense<0.000000e+00> : vector<128x32xf32>
    %92 = tpu.matmul %87, %91, %cst_49 {dimension_numbers = #tpu.dot_dimension_numbers<[1], [1], [0], [0], [0, 0, 1, 0], [], []>} : vector<128x32xf32>, vector<32x32xf32>, vector<128x32xf32> -> vector<128x32xf32>
    %c0_50 = arith.constant 0 : index
    %c0_51 = arith.constant 0 : index
    %93 = vector.load %arg12[%c0_50, %c0_51] : memref<32x32xf32, #tpu.memory_space<vmem>>, vector<32x32xf32>
    %cst_52 = arith.constant dense<0.000000e+00> : vector<128x32xf32>
    %94 = tpu.matmul %88, %93, %cst_52 {dimension_numbers = #tpu.dot_dimension_numbers<[1], [1], [0], [0], [0, 0, 1, 0], [], []>} : vector<128x32xf32>, vector<32x32xf32>, vector<128x32xf32> -> vector<128x32xf32>
    %95 = arith.addf %92, %94 : vector<128x32xf32>
    %c0_53 = arith.constant 0 : index
    %c0_54 = arith.constant 0 : index
    %96 = vector.load %arg13[%c0_53, %c0_54] : memref<1x32xf32, #tpu.memory_space<vmem>>, vector<1x32xf32>
    %97 = vector.broadcast %96 : vector<1x32xf32> to vector<128x32xf32>
    %98 = arith.addf %95, %97 : vector<128x32xf32>
    %99 = math.tanh %98 : vector<128x32xf32>
    %100 = arith.mulf %99, %88 : vector<128x32xf32>
    %101 = arith.addf %87, %100 : vector<128x32xf32>
    %c0_55 = arith.constant 0 : index
    %c0_56 = arith.constant 0 : index
    %102 = vector.load %arg14[%c0_55, %c0_56] : memref<32x32xf32, #tpu.memory_space<vmem>>, vector<32x32xf32>
    %cst_57 = arith.constant dense<0.000000e+00> : vector<128x32xf32>
    %103 = tpu.matmul %89, %102, %cst_57 {dimension_numbers = #tpu.dot_dimension_numbers<[1], [1], [0], [0], [0, 0, 1, 0], [], []>} : vector<128x32xf32>, vector<32x32xf32>, vector<128x32xf32> -> vector<128x32xf32>
    %c0_58 = arith.constant 0 : index
    %c0_59 = arith.constant 0 : index
    %104 = vector.load %arg15[%c0_58, %c0_59] : memref<32x32xf32, #tpu.memory_space<vmem>>, vector<32x32xf32>
    %cst_60 = arith.constant dense<0.000000e+00> : vector<128x32xf32>
    %105 = tpu.matmul %90, %104, %cst_60 {dimension_numbers = #tpu.dot_dimension_numbers<[1], [1], [0], [0], [0, 0, 1, 0], [], []>} : vector<128x32xf32>, vector<32x32xf32>, vector<128x32xf32> -> vector<128x32xf32>
    %106 = arith.addf %103, %105 : vector<128x32xf32>
    %c0_61 = arith.constant 0 : index
    %c0_62 = arith.constant 0 : index
    %107 = vector.load %arg16[%c0_61, %c0_62] : memref<1x32xf32, #tpu.memory_space<vmem>>, vector<1x32xf32>
    %108 = vector.broadcast %107 : vector<1x32xf32> to vector<128x32xf32>
    %109 = arith.addf %106, %108 : vector<128x32xf32>
    %110 = math.tanh %109 : vector<128x32xf32>
    %111 = arith.mulf %110, %90 : vector<128x32xf32>
    %112 = arith.addf %89, %111 : vector<128x32xf32>
    %113 = vector.shape_cast %101 : vector<128x32xf32> to vector<4x32x32xf32>
    %114 = vector.shape_cast %112 : vector<128x32xf32> to vector<4x32x32xf32>
    %cst_63 = arith.constant dense<0.000000e+00> : vector<4x32x32xf32>
    %115 = tpu.matmul %113, %4, %cst_63 {dimension_numbers = #tpu.dot_dimension_numbers<[1], [2], [2], [1], [0, 0, 0, 2, 1, 1], [0], [0]>} : vector<4x32x32xf32>, vector<4x32x32xf32>, vector<4x32x32xf32> -> vector<4x32x32xf32>
    %cst_64 = arith.constant 2.000000e-01 : f32
    %116 = vector.broadcast %cst_64 : f32 to vector<4x32x32xf32>
    %117 = arith.mulf %116, %115 : vector<4x32x32xf32>
    %118 = arith.maximumf %115, %117 : vector<4x32x32xf32>
    %cst_65 = arith.constant dense<0.000000e+00> : vector<4x32x32xf32>
    %119 = tpu.matmul %8, %114, %cst_65 {dimension_numbers = #tpu.dot_dimension_numbers<[2], [1], [1], [2], [0, 0, 0, 1, 1, 2], [0], [0]>} : vector<4x32x32xf32>, vector<4x32x32xf32>, vector<4x32x32xf32> -> vector<4x32x32xf32>
    %120 = vector.broadcast %9 : vector<1x32x1xf32> to vector<4x32x32xf32>
    %121 = arith.addf %119, %120 : vector<4x32x32xf32>
    %cst_66 = arith.constant 2.000000e-01 : f32
    %122 = vector.broadcast %cst_66 : f32 to vector<4x32x32xf32>
    %123 = arith.mulf %122, %121 : vector<4x32x32xf32>
    %124 = arith.maximumf %121, %123 : vector<4x32x32xf32>
    %125 = arith.addf %0, %76 : vector<4x32x32xf32>
    %126 = arith.mulf %118, %125 : vector<4x32x32xf32>
    %127 = arith.mulf %126, %124 : vector<4x32x32xf32>
    %cst_67 = arith.constant 0.000000e+00 : f32
    %128 = vector.broadcast %cst_67 : f32 to vector<4x32x32xf32>
    %129 = arith.subf %128, %127 : vector<4x32x32xf32>
    %130 = math.exp %129 : vector<4x32x32xf32>
    %cst_68 = arith.constant 1.000000e+00 : f32
    %131 = vector.broadcast %cst_68 : f32 to vector<4x32x32xf32>
    %132 = arith.addf %131, %130 : vector<4x32x32xf32>
    %133 = tpu.reciprocal %132 {approx = true} : vector<4x32x32xf32> -> vector<4x32x32xf32>
    %c0_69 = arith.constant 0 : index
    %c0_70 = arith.constant 0 : index
    %c0_71 = arith.constant 0 : index
    %134 = vector.load %arg17[%c0_69, %c0_70, %c0_71] : memref<4x32x32xf32, #tpu.memory_space<vmem>>, vector<4x32x32xf32>
    tpu.vector_store %arg17[%c0_69, %c0_70, %c0_71], %133 {strides = array<i32>} : memref<4x32x32xf32, #tpu.memory_space<vmem>>, vector<4x32x32xf32>,
    return
  }
}

</mosaic_0001>

<llo_original>
// kernel: memory_graph_forward.1
$region0: #{memory_graph_forward.1}
  #allocation0 [shape = 'u32[]', space=smem, size = 0x4, offset = 0x4, fixed_abs, tag = 'smem constant byte address 0x4 - core index']
  #allocation1 [shape = 'u32[144,128]{1,0:T(1,128)}', space=vmem, size = 0x12000, scoped, tag = 'internal scratch']
  %s0 = inlined_call_operand.vmem [shape: f32[4,32,32], index: 0, kind: input, shape index: {}]
  %s1 = inlined_call_operand.vmem [shape: f32[32,32], index: 1, kind: input, shape index: {}]
  %s2 = inlined_call_operand.vmem [shape: f32[1,32,1], index: 2, kind: input, shape index: {}]
  %s3 = inlined_call_operand.vmem [shape: f32[1,32,1], index: 3, kind: input, shape index: {}]
  %s4 = inlined_call_operand.vmem [shape: f32[1,32,1], index: 4, kind: input, shape index: {}]
  %s5 = inlined_call_operand.hbm [shape: f32[32,32], index: 5, kind: input, shape index: {}]
  %s6 = inlined_call_operand.hbm [shape: f32[32,32], index: 6, kind: input, shape index: {}]
  %s7 = inlined_call_operand.vmem [shape: f32[1,32,1], index: 7, kind: input, shape index: {}]
  %s8 = inlined_call_operand.hbm [shape: f32[32,32], index: 8, kind: input, shape index: {}]
  %s9 = inlined_call_operand.hbm [shape: f32[32,32], index: 9, kind: input, shape index: {}]
  %s10 = inlined_call_operand.vmem [shape: f32[1,32,1], index: 10, kind: input, shape index: {}]
  %s11 = inlined_call_operand.hbm [shape: f32[32,32], index: 11, kind: input, shape index: {}]
  %s12 = inlined_call_operand.hbm [shape: f32[32,32], index: 12, kind: input, shape index: {}]
  %s13 = inlined_call_operand.vmem [shape: f32[1,32], index: 13, kind: input, shape index: {}]
  %s14 = inlined_call_operand.hbm [shape: f32[32,32], index: 14, kind: input, shape index: {}]
  %s15 = inlined_call_operand.hbm [shape: f32[32,32], index: 15, kind: input, shape index: {}]
  %s16 = inlined_call_operand.vmem [shape: f32[1,32], index: 16, kind: input, shape index: {}]
  %s17 = inlined_call_operand.hbm [shape: f32[4,32,32], index: 17, kind: output, shape index: {}]
  %s18 = sld [smem:[#allocation0]]
  $region110: #{memory_graph_forward.1} parent=0
    _
  %s20 = ssub.s32 1, %s18
  %s21 = scalar_select 0, %s20, %s18
  $region1: #{memory_graph_forward.1} parent=0
    #allocation2 [shape = 'u8[16384]{0}', space=vmem, size = 0x4000, scoped, tag = 'input window, operand 5, single buffered']
    #allocation3 [shape = 's32[1]{0}', space=sflag, size = 0x4, scoped, tag = 'scoped memory for memory_graph_forward.1']
    #allocation4 [shape = 's32[1]{0}', space=sflag, size = 0x4, scoped, tag = 'scoped memory for memory_graph_forward.1']
    #allocation5 [shape = 'u8[16384]{0}', space=vmem, size = 0x4000, scoped, tag = 'input window, operand 6, single buffered']
    #allocation6 [shape = 's32[1]{0}', space=sflag, size = 0x4, scoped, tag = 'scoped memory for memory_graph_forward.1']
    #allocation7 [shape = 'u8[16384]{0}', space=vmem, size = 0x4000, scoped, tag = 'input window, operand 8, single buffered']
    #allocation8 [shape = 'u8[16384]{0}', space=vmem, size = 0x4000, scoped, tag = 'input window, operand 9, single buffered']
    #allocation9 [shape = 's32[1]{0}', space=sflag, size = 0x4, scoped, tag = 'scoped memory for memory_graph_forward.1']
    #allocation10 [shape = 'u8[16384]{0}', space=vmem, size = 0x4000, scoped, tag = 'input window, operand 11, single buffered']
    #allocation11 [shape = 'u8[16384]{0}', space=vmem, size = 0x4000, scoped, tag = 'input window, operand 12, single buffered']
    #allocation12 [shape = 's32[1]{0}', space=sflag, size = 0x4, scoped, tag = 'scoped memory for memory_graph_forward.1']
    #allocation13 [shape = 'u8[16384]{0}', space=vmem, size = 0x4000, scoped, tag = 'input window, operand 14, single buffered']
    #allocation14 [shape = 'u8[16384]{0}', space=vmem, size = 0x4000, scoped, tag = 'input window, operand 15, single buffered']
    #allocation15 [shape = 's32[1]{0}', space=sflag, size = 0x4, scoped, tag = 'scoped memory for memory_graph_forward.1']
    #allocation16 [shape = 'u8[65536]{0}', space=vmem, size = 0x10000, scoped, tag = 'output window, operand 0, single buffered']
    %22 = vsyncpa [#allocation3], 0
    %23 = vsyncpa [#allocation6], 0
    %24 = vsyncpa [#allocation9], 0
    %25 = vsyncpa [#allocation12], 0
    %26 = vsyncpa [#allocation15], 0
    %27 = vsyncpa [#allocation4], 0
    // Predicated region
    $region2: #{memory_graph_forward.1} parent=1 // pred_check
      _
    $region3: #{memory_graph_forward.1} parent=1 // pred_check_branch
      %29 = sbr.rel (0) target = $region5
    $region4: #{memory_graph_forward.1} parent=1 // pred_region
      _
    $region5: #{memory_graph_forward.1} parent=1 // pred_fallthru
      _
    // Predicated region
    $region6: #{memory_graph_forward.1} parent=1 // pred_check
      _
    $region7: #{memory_graph_forward.1} parent=1 // pred_check_branch
      %31 = sbr.rel (0) target = $region9
    $region8: #{memory_graph_forward.1} parent=1 // pred_region
      _
    $region9: #{memory_graph_forward.1} parent=1 // pred_fallthru
      _
    // Predicated region
    $region10: #{memory_graph_forward.1} parent=1 // pred_check
      _
    $region11: #{memory_graph_forward.1} parent=1 // pred_check_branch
      %33 = sbr.rel (0) target = $region13
    $region12: #{memory_graph_forward.1} parent=1 // pred_region
      _
    $region13: #{memory_graph_forward.1} parent=1 // pred_fallthru
      _
    // Predicated region
    $region14: #{memory_graph_forward.1} parent=1 // pred_check
      _
    $region15: #{memory_graph_forward.1} parent=1 // pred_check_branch
      %35 = sbr.rel (0) target = $region17
    $region16: #{memory_graph_forward.1} parent=1 // pred_region
      _
    $region17: #{memory_graph_forward.1} parent=1 // pred_fallthru
      _
    // Predicated region
    $region18: #{memory_graph_forward.1} parent=1 // pred_check
      _
    $region19: #{memory_graph_forward.1} parent=1 // pred_check_branch
      %37 = sbr.rel (0) target = $region21
    $region20: #{memory_graph_forward.1} parent=1 // pred_region
      _
    $region21: #{memory_graph_forward.1} parent=1 // pred_fallthru
      _
    // Predicated region
    $region22: #{memory_graph_forward.1} parent=1 // pred_check
      _
    $region23: #{memory_graph_forward.1} parent=1 // pred_check_branch
      %39 = sbr.rel (0) target = $region25
    $region24: #{memory_graph_forward.1} parent=1 // pred_region
      %s41 = ssub.s32 512, 512
      %42 = vsyncadd [#allocation3], %s41
      %s43 = sshll.u32 [#allocation2], 4
      %s44 = int_to_ptr.vmem [resolvable:$true] %s43
      %49 = dma.hbm_to_vmem [thread:$0]  %s5, 512, %s44, [#allocation3], 128, 128, 8
    $region25: #{memory_graph_forward.1} parent=1 // pred_fallthru
      _
    // Predicated region
    $region26: #{memory_graph_forward.1} parent=1 // pred_check
      _
    $region27: #{memory_graph_forward.1} parent=1 // pred_check_branch
      %51 = sbr.rel (0) target = $region29
    $region28: #{memory_graph_forward.1} parent=1 // pred_region
      %s53 = ssub.s32 512, 512
      %54 = vsyncadd [#allocation6], %s53
      %s55 = sshll.u32 [#allocation5], 4
      %s56 = int_to_ptr.vmem [resolvable:$true] %s55
      %61 = dma.hbm_to_vmem [thread:$0]  %s6, 512, %s56, [#allocation6], 128, 128, 8
    $region29: #{memory_graph_forward.1} parent=1 // pred_fallthru
      _
    // Predicated region
    $region30: #{memory_graph_forward.1} parent=1 // pred_check
      _
    $region31: #{memory_graph_forward.1} parent=1 // pred_check_branch
      %63 = sbr.rel (0) target = $region33
    $region32: #{memory_graph_forward.1} parent=1 // pred_region
      _
    $region33: #{memory_graph_forward.1} parent=1 // pred_fallthru
      _
    // Predicated region
    $region34: #{memory_graph_forward.1} parent=1 // pred_check
      _
    $region35: #{memory_graph_forward.1} parent=1 // pred_check_branch
      %65 = sbr.rel (0) target = $region37
    $region36: #{memory_graph_forward.1} parent=1 // pred_region
      %s67 = ssub.s32 512, 512
      %68 = vsyncadd [#allocation6], %s67
      %s69 = sshll.u32 [#allocation7], 4
      %s70 = int_to_ptr.vmem [resolvable:$true] %s69
      %75 = dma.hbm_to_vmem [thread:$0]  %s8, 512, %s70, [#allocation6], 128, 128, 8
    $region37: #{memory_graph_forward.1} parent=1 // pred_fallthru
      _
    // Predicated region
    $region38: #{memory_graph_forward.1} parent=1 // pred_check
      _
    $region39: #{memory_graph_forward.1} parent=1 // pred_check_branch
      %77 = sbr.rel (0) target = $region41
    $region40: #{memory_graph_forward.1} parent=1 // pred_region
      %s79 = ssub.s32 512, 512
      %80 = vsyncadd [#allocation9], %s79
      %s81 = sshll.u32 [#allocation8], 4
      %s82 = int_to_ptr.vmem [resolvable:$true] %s81
      %87 = dma.hbm_to_vmem [thread:$0]  %s9, 512, %s82, [#allocation9], 128, 128, 8
    $region41: #{memory_graph_forward.1} parent=1 // pred_fallthru
      _
    // Predicated region
    $region42: #{memory_graph_forward.1} parent=1 // pred_check
      _
    $region43: #{memory_graph_forward.1} parent=1 // pred_check_branch
      %89 = sbr.rel (0) target = $region45
    $region44: #{memory_graph_forward.1} parent=1 // pred_region
      _
    $region45: #{memory_graph_forward.1} parent=1 // pred_fallthru
      _
    // Predicated region
    $region46: #{memory_graph_forward.1} parent=1 // pred_check
      _
    $region47: #{memory_graph_forward.1} parent=1 // pred_check_branch
      %91 = sbr.rel (0) target = $region49
    $region48: #{memory_graph_forward.1} parent=1 // pred_region
      %s93 = ssub.s32 512, 512
      %94 = vsyncadd [#allocation9], %s93
      %s95 = sshll.u32 [#allocation10], 4
      %s96 = int_to_ptr.vmem [resolvable:$true] %s95
      %101 = dma.hbm_to_vmem [thread:$0]  %s11, 512, %s96, [#allocation9], 128, 128, 8
    $region49: #{memory_graph_forward.1} parent=1 // pred_fallthru
      _
    // Predicated region
    $region50: #{memory_graph_forward.1} parent=1 // pred_check
      _
    $region51: #{memory_graph_forward.1} parent=1 // pred_check_branch
      %103 = sbr.rel (0) target = $region53
    $region52: #{memory_graph_forward.1} parent=1 // pred_region
      %s105 = ssub.s32 512, 512
      %106 = vsyncadd [#allocation12], %s105
      %s107 = sshll.u32 [#allocation11], 4
      %s108 = int_to_ptr.vmem [resolvable:$true] %s107
      %113 = dma.hbm_to_vmem [thread:$0]  %s12, 512, %s108, [#allocation12], 128, 128, 8
    $region53: #{memory_graph_forward.1} parent=1 // pred_fallthru
      _
    // Predicated region
    $region54: #{memory_graph_forward.1} parent=1 // pred_check
      _
    $region55: #{memory_graph_forward.1} parent=1 // pred_check_branch
      %115 = sbr.rel (0) target = $region57
    $region56: #{memory_graph_forward.1} parent=1 // pred_region
      _
    $region57: #{memory_graph_forward.1} parent=1 // pred_fallthru
      _
    // Predicated region
    $region58: #{memory_graph_forward.1} parent=1 // pred_check
      _
    $region59: #{memory_graph_forward.1} parent=1 // pred_check_branch
      %117 = sbr.rel (0) target = $region61
    $region60: #{memory_graph_forward.1} parent=1 // pred_region
      %s119 = ssub.s32 512, 512
      %120 = vsyncadd [#allocation12], %s119
      %s121 = sshll.u32 [#allocation13], 4
      %s122 = int_to_ptr.vmem [resolvable:$true] %s121
      %127 = dma.hbm_to_vmem [thread:$0]  %s14, 512, %s122, [#allocation12], 128, 128, 8
    $region61: #{memory_graph_forward.1} parent=1 // pred_fallthru
      _
    // Predicated region
    $region62: #{memory_graph_forward.1} parent=1 // pred_check
      _
    $region63: #{memory_graph_forward.1} parent=1 // pred_check_branch
      %129 = sbr.rel (0) target = $region65
    $region64: #{memory_graph_forward.1} parent=1 // pred_region
      %s131 = ssub.s32 512, 512
      %132 = vsyncadd [#allocation15], %s131
      %s133 = sshll.u32 [#allocation14], 4
      %s134 = int_to_ptr.vmem [resolvable:$true] %s133
      %139 = dma.hbm_to_vmem [thread:$0]  %s15, 512, %s134, [#allocation15], 128, 128, 8
    $region65: #{memory_graph_forward.1} parent=1 // pred_fallthru
      _
    // Predicated region
    $region66: #{memory_graph_forward.1} parent=1 // pred_check
      _
    $region67: #{memory_graph_forward.1} parent=1 // pred_check_branch
      %141 = sbr.rel (0) target = $region69
    $region68: #{memory_graph_forward.1} parent=1 // pred_region
      _
    $region69: #{memory_graph_forward.1} parent=1 // pred_fallthru
      _
    // Predicated region
    $region70: #{memory_graph_forward.1} parent=1 // pred_check
      _
    $region71: #{memory_graph_forward.1} parent=1 // pred_check_branch
      %143 = sbr.rel (0) target = $region73
    $region72: #{memory_graph_forward.1} parent=1 // pred_region
      %144 = dma.done [#allocation3], 512
    $region73: #{memory_graph_forward.1} parent=1 // pred_fallthru
      _
    // Predicated region
    $region74: #{memory_graph_forward.1} parent=1 // pred_check
      _
    $region75: #{memory_graph_forward.1} parent=1 // pred_check_branch
      %146 = sbr.rel (0) target = $region77
    $region76: #{memory_graph_forward.1} parent=1 // pred_region
      %147 = dma.done [#allocation6], 512
    $region77: #{memory_graph_forward.1} parent=1 // pred_fallthru
      _
    // Predicated region
    $region78: #{memory_graph_forward.1} parent=1 // pred_check
      _
    $region79: #{memory_graph_forward.1} parent=1 // pred_check_branch
      %149 = sbr.rel (0) target = $region81
    $region80: #{memory_graph_forward.1} parent=1 // pred_region
      %150 = dma.done [#allocation6], 512
    $region81: #{memory_graph_forward.1} parent=1 // pred_fallthru
      _
    // Predicated region
    $region82: #{memory_graph_forward.1} parent=1 // pred_check
      _
    $region83: #{memory_graph_forward.1} parent=1 // pred_check_branch
      %152 = sbr.rel (0) target = $region85
    $region84: #{memory_graph_forward.1} parent=1 // pred_region
      %153 = dma.done [#allocation9], 512
    $region85: #{memory_graph_forward.1} parent=1 // pred_fallthru
      _
    // Predicated region
    $region86: #{memory_graph_forward.1} parent=1 // pred_check
      _
    $region87: #{memory_graph_forward.1} parent=1 // pred_check_branch
      %155 = sbr.rel (0) target = $region89
    $region88: #{memory_graph_forward.1} parent=1 // pred_region
      %156 = dma.done [#allocation9], 512
    $region89: #{memory_graph_forward.1} parent=1 // pred_fallthru
      _
    // Predicated region
    $region90: #{memory_graph_forward.1} parent=1 // pred_check
      _
    $region91: #{memory_graph_forward.1} parent=1 // pred_check_branch
      %158 = sbr.rel (0) target = $region93
    $region92: #{memory_graph_forward.1} parent=1 // pred_region
      %159 = dma.done [#allocation12], 512
    $region93: #{memory_graph_forward.1} parent=1 // pred_fallthru
      _
    // Predicated region
    $region94: #{memory_graph_forward.1} parent=1 // pred_check
      _
    $region95: #{memory_graph_forward.1} parent=1 // pred_check_branch
      %161 = sbr.rel (0) target = $region97
    $region96: #{memory_graph_forward.1} parent=1 // pred_region
      %162 = dma.done [#allocation12], 512
    $region97: #{memory_graph_forward.1} parent=1 // pred_fallthru
      _
    // Predicated region
    $region98: #{memory_graph_forward.1} parent=1 // pred_check
      _
    $region99: #{memory_graph_forward.1} parent=1 // pred_check_branch
      %164 = sbr.rel (0) target = $region101
    $region100: #{memory_graph_forward.1} parent=1 // pred_region
      %165 = dma.done [#allocation15], 512
    $region101: #{memory_graph_forward.1} parent=1 // pred_fallthru
      _
    %v166 = vld [vmem:[%s0] sm:$0xff]
    %v167 = vld [vmem:[%s0 + $0x8] sm:$0xff]
    %v168 = vld [vmem:[%s0 + $0x10] sm:$0xff]
    %v169 = vld [vmem:[%s0 + $0x18] sm:$0xff]
    %v170 = vld [vmem:[%s0 + $0x20] sm:$0xff]
    %v171 = vld [vmem:[%s0 + $0x28] sm:$0xff]
    %v172 = vld [vmem:[%s0 + $0x30] sm:$0xff]
    %v173 = vld [vmem:[%s0 + $0x38] sm:$0xff]
    %v174 = vld [vmem:[%s0 + $0x40] sm:$0xff]
    %v175 = vld [vmem:[%s0 + $0x48] sm:$0xff]
    %v176 = vld [vmem:[%s0 + $0x50] sm:$0xff]
    %v177 = vld [vmem:[%s0 + $0x58] sm:$0xff]
    %v178 = vld [vmem:[%s0 + $0x60] sm:$0xff]
    %v179 = vld [vmem:[%s0 + $0x68] sm:$0xff]
    %v180 = vld [vmem:[%s0 + $0x70] sm:$0xff]
    %v181 = vld [vmem:[%s0 + $0x78] sm:$0xff]
    %v182 = vld [vmem:[#allocation7] sm:$0xff]
    %v183 = vld [vmem:[#allocation7 + $0x8] sm:$0xff]
    %v184 = vld [vmem:[#allocation7 + $0x10] sm:$0xff]
    %v185 = vld [vmem:[#allocation7 + $0x18] sm:$0xff]
    %v186 = vld [vmem:[#allocation8] sm:$0xff]
    %v187 = vld [vmem:[#allocation8 + $0x8] sm:$0xff]
    %v188 = vld [vmem:[#allocation8 + $0x10] sm:$0xff]
    %v189 = vld [vmem:[#allocation8 + $0x18] sm:$0xff]
    %v190 = vld [vmem:[%s10] sm:$0xff]
    %v191 = vld [vmem:[%s10 + $0x8] sm:$0xff]
    %v192 = vld [vmem:[%s10 + $0x10] sm:$0xff]
    %v193 = vld [vmem:[%s10 + $0x18] sm:$0xff]
    %vm194 = vcmask 261120
    %v195 = vsel %vm194, %v166, 0.0
    %196 = vadd.xlane.f32.xlu0 %v195
    %v197 = vpop.xlane.xlu0 %196
    %v198 = vsel %vm194, %v167, 0.0
    %199 = vadd.xlane.f32.xlu0 %v198
    %v200 = vpop.xlane.xlu0 %199
    %v201 = vsel %vm194, %v168, 0.0
    %202 = vadd.xlane.f32.xlu0 %v201
    %v203 = vpop.xlane.xlu0 %202
    %v204 = vsel %vm194, %v169, 0.0
    %205 = vadd.xlane.f32.xlu0 %v204
    %v206 = vpop.xlane.xlu0 %205
    %v207 = vsel %vm194, %v170, 0.0
    %208 = vadd.xlane.f32.xlu0 %v207
    %v209 = vpop.xlane.xlu0 %208
    %v210 = vsel %vm194, %v171, 0.0
    %211 = vadd.xlane.f32.xlu0 %v210
    %v212 = vpop.xlane.xlu0 %211
    %v213 = vsel %vm194, %v172, 0.0
    %214 = vadd.xlane.f32.xlu0 %v213
    %v215 = vpop.xlane.xlu0 %214
    %v216 = vsel %vm194, %v173, 0.0
    %217 = vadd.xlane.f32.xlu0 %v216
    %v218 = vpop.xlane.xlu0 %217
    %v219 = vsel %vm194, %v174, 0.0
    %220 = vadd.xlane.f32.xlu0 %v219
    %v221 = vpop.xlane.xlu0 %220
    %v222 = vsel %vm194, %v175, 0.0
    %223 = vadd.xlane.f32.xlu0 %v222
    %v224 = vpop.xlane.xlu0 %223
    %v225 = vsel %vm194, %v176, 0.0
    %226 = vadd.xlane.f32.xlu0 %v225
    %v227 = vpop.xlane.xlu0 %226
    %v228 = vsel %vm194, %v177, 0.0
    %229 = vadd.xlane.f32.xlu0 %v228
    %v230 = vpop.xlane.xlu0 %229
    %v231 = vsel %vm194, %v178, 0.0
    %232 = vadd.xlane.f32.xlu0 %v231
    %v233 = vpop.xlane.xlu0 %232
    %v234 = vsel %vm194, %v179, 0.0
    %235 = vadd.xlane.f32.xlu0 %v234
    %v236 = vpop.xlane.xlu0 %235
    %v237 = vsel %vm194, %v180, 0.0
    %238 = vadd.xlane.f32.xlu0 %v237
    %v239 = vpop.xlane.xlu0 %238
    %v240 = vsel %vm194, %v181, 0.0
    %241 = vadd.xlane.f32.xlu0 %v240
    %v242 = vpop.xlane.xlu0 %241
    %v243 = vrcp.pop 32.0
    %v244 = vmul.f32 %v197, %v243
    %v245 = vmul.f32 %v200, %v243
    %v246 = vmul.f32 %v203, %v243
    %v247 = vmul.f32 %v206, %v243
    %v248 = vmul.f32 %v209, %v243
    %v249 = vmul.f32 %v212, %v243
    %v250 = vmul.f32 %v215, %v243
    %v251 = vmul.f32 %v218, %v243
    %v252 = vmul.f32 %v221, %v243
    %v253 = vmul.f32 %v224, %v243
    %v254 = vmul.f32 %v227, %v243
    %v255 = vmul.f32 %v230, %v243
    %v256 = vmul.f32 %v233, %v243
    %v257 = vmul.f32 %v236, %v243
    %v258 = vmul.f32 %v239, %v243
    %v259 = vmul.f32 %v242, %v243
    %v260 = vld [vmem:[%s1] sm:$0xff]
    %v261 = vld [vmem:[%s1 + $0x8] sm:$0xff]
    %v262 = vld [vmem:[%s1 + $0x10] sm:$0xff]
    %v263 = vld [vmem:[%s1 + $0x18] sm:$0xff]
    %v264 = vld [vmem:[%s2] sm:$0xff]
    %v265 = vld [vmem:[%s2 + $0x8] sm:$0xff]
    %v266 = vld [vmem:[%s2 + $0x10] sm:$0xff]
    %v267 = vld [vmem:[%s2 + $0x18] sm:$0xff]
    %269 = vset.pattern.permute.xlu0 0
    %270 = vperm.xlu0 %269, %v264
    %v271 = vpop.permute.xlu0 %270
    %274 = vset.pattern.permute.xlu0 0
    %275 = vperm.xlu0 %274, %v265
    %v276 = vpop.permute.xlu0 %275
    %279 = vset.pattern.permute.xlu0 0
    %280 = vperm.xlu0 %279, %v266
    %v281 = vpop.permute.xlu0 %280
    %284 = vset.pattern.permute.xlu0 0
    %285 = vperm.xlu0 %284, %v267
    %v286 = vpop.permute.xlu0 %285
    %v289 = vsel %vm194, %v260, 0
    %v292 = vsel %vm194, %v261, 0
    %v295 = vsel %vm194, %v262, 0
    %v298 = vsel %vm194, %v263, 0
    %300 = vmatprep.subr.mxu0 0.0
    %301 = vmatpush1.msra.mxu0 0.0
    %302 = vmatprep.subr.mxu0 0.0
    %303 = vmatpush1.msra.mxu0 0.0
    %304 = vmatprep.subr.mxu0 0.0
    %305 = vmatpush1.msra.mxu0 0.0
    %306 = vmatprep.subr.mxu0 0.0
    %307 = vmatpush1.msra.mxu0 0.0
    %308 = vmatprep.subr.mxu0 0.0
    %309 = vmatpush1.msra.mxu0 0.0
    %310 = vmatprep.subr.mxu0 0.0
    %311 = vmatpush1.msra.mxu0 0.0
    %312 = vmatprep.subr.mxu0 0.0
    %313 = vmatpush1.msra.mxu0 0.0
    %314 = vmatprep.subr.mxu0 0.0
    %315 = vmatpush1.msra.mxu0 0.0
    %316 = vmatprep.subr.mxu0 0.0
    %317 = vmatpush1.msra.mxu0 0.0
    %318 = vmatprep.subr.mxu0 0.0
    %319 = vmatpush1.msra.mxu0 0.0
    %320 = vmatprep.subr.mxu0 0.0
    %321 = vmatpush1.msra.mxu0 0.0
    %322 = vmatprep.subr.mxu0 0.0
    %323 = vmatpush1.msra.mxu0 0.0
    %324 = vmatprep.subr.mxu0 0.0
    %325 = vmatpush1.msra.mxu0 %v247
    %326 = vmatprep.subr.mxu0 0.0
    %327 = vmatpush1.msra.mxu0 %v246
    %328 = vmatprep.subr.mxu0 0.0
    %329 = vmatpush1.msra.mxu0 %v245
    %330 = vmatprep.subr.mxu0 0.0
    %331 = vmatpush1.msra.mxu0 %v244
    %332 = vmatprep.subr.mxu0 0.0
    %333 = vmatpush2.msra.mxu0 0.0
    %334 = vmatprep.subr.mxu0 0.0
    %335 = vmatpush2.msra.mxu0 0.0
    %336 = vmatprep.subr.mxu0 0.0
    %337 = vmatpush2.msra.mxu0 0.0
    %338 = vmatprep.subr.mxu0 0.0
    %339 = vmatpush2.msra.mxu0 0.0
    %340 = vmatprep.subr.mxu0 0.0
    %341 = vmatpush2.msra.mxu0 0.0
    %342 = vmatprep.subr.mxu0 0.0
    %343 = vmatpush2.msra.mxu0 0.0
    %344 = vmatprep.subr.mxu0 0.0
    %345 = vmatpush2.msra.mxu0 0.0
    %346 = vmatprep.subr.mxu0 0.0
    %347 = vmatpush2.msra.mxu0 0.0
    %348 = vmatprep.subr.mxu0 0.0
    %349 = vmatpush2.msra.mxu0 0.0
    %350 = vmatprep.subr.mxu0 0.0
    %351 = vmatpush2.msra.mxu0 0.0
    %352 = vmatprep.subr.mxu0 0.0
    %353 = vmatpush2.msra.mxu0 0.0
    %354 = vmatprep.subr.mxu0 0.0
    %355 = vmatpush2.msra.mxu0 0.0
    %356 = vmatprep.subr.mxu0 0.0
    %357 = vmatpush2.msra.mxu0 0.0
    %358 = vmatprep.subr.mxu0 0.0
    %359 = vmatpush2.msra.mxu0 0.0
    %360 = vmatprep.subr.mxu0 0.0
    %361 = vmatpush2.msra.mxu0 0.0
    %362 = vmatprep.subr.mxu0 0.0
    %363 = vmatpush2.msra.mxu0 0.0
    %364 = vmatprep.mubr.f32.mxu0 0.0
    %365 = vmatmul.mubr.f32.gmra.mxu0 %v289
    %v366 = vpop.f32.mrf.mxu0
    %v367 = vadd.f32 %v271, %v366
    %v368 = vpop.f32.mrf.mxu0
    %369 = vmatprep.mubr.f32.mxu0 0.0
    %370 = vmatmul.mubr.f32.gmra.mxu0 %v292
    %v371 = vpop.f32.mrf.mxu0
    %v372 = vadd.f32 %v276, %v371
    %v373 = vpop.f32.mrf.mxu0
    %374 = vmatprep.mubr.f32.mxu0 0.0
    %375 = vmatmul.mubr.f32.gmra.mxu0 %v295
    %v376 = vpop.f32.mrf.mxu0
    %v377 = vadd.f32 %v281, %v376
    %v378 = vpop.f32.mrf.mxu0
    %379 = vmatprep.mubr.f32.mxu0 0.0
    %380 = vmatmul.mubr.f32.gmra.mxu0 %v298
    %v381 = vpop.f32.mrf.mxu0
    %v382 = vadd.f32 %v286, %v381
    %v383 = vpop.f32.mrf.mxu0
    %384 = vdwg.mxu0
    %385 = vmatprep.subr.mxu0 0.0
    %386 = vmatpush1.msra.mxu0 0.0
    %387 = vmatprep.subr.mxu0 0.0
    %388 = vmatpush1.msra.mxu0 0.0
    %389 = vmatprep.subr.mxu0 0.0
    %390 = vmatpush1.msra.mxu0 0.0
    %391 = vmatprep.subr.mxu0 0.0
    %392 = vmatpush1.msra.mxu0 0.0
    %393 = vmatprep.subr.mxu0 0.0
    %394 = vmatpush1.msra.mxu0 0.0
    %395 = vmatprep.subr.mxu0 0.0
    %396 = vmatpush1.msra.mxu0 0.0
    %397 = vmatprep.subr.mxu0 0.0
    %398 = vmatpush1.msra.mxu0 0.0
    %399 = vmatprep.subr.mxu0 0.0
    %400 = vmatpush1.msra.mxu0 0.0
    %401 = vmatprep.subr.mxu0 0.0
    %402 = vmatpush1.msra.mxu0 0.0
    %403 = vmatprep.subr.mxu0 0.0
    %404 = vmatpush1.msra.mxu0 0.0
    %405 = vmatprep.subr.mxu0 0.0
    %406 = vmatpush1.msra.mxu0 0.0
    %407 = vmatprep.subr.mxu0 0.0
    %408 = vmatpush1.msra.mxu0 0.0
    %409 = vmatprep.subr.mxu0 0.0
    %410 = vmatpush1.msra.mxu0 %v251
    %411 = vmatprep.subr.mxu0 0.0
    %412 = vmatpush1.msra.mxu0 %v250
    %413 = vmatprep.subr.mxu0 0.0
    %414 = vmatpush1.msra.mxu0 %v249
    %415 = vmatprep.subr.mxu0 0.0
    %416 = vmatpush1.msra.mxu0 %v248
    %417 = vmatprep.subr.mxu0 0.0
    %418 = vmatpush2.msra.mxu0 0.0
    %419 = vmatprep.subr.mxu0 0.0
    %420 = vmatpush2.msra.mxu0 0.0
    %421 = vmatprep.subr.mxu0 0.0
    %422 = vmatpush2.msra.mxu0 0.0
    %423 = vmatprep.subr.mxu0 0.0
    %424 = vmatpush2.msra.mxu0 0.0
    %425 = vmatprep.subr.mxu0 0.0
    %426 = vmatpush2.msra.mxu0 0.0
    %427 = vmatprep.subr.mxu0 0.0
    %428 = vmatpush2.msra.mxu0 0.0
    %429 = vmatprep.subr.mxu0 0.0
    %430 = vmatpush2.msra.mxu0 0.0
    %431 = vmatprep.subr.mxu0 0.0
    %432 = vmatpush2.msra.mxu0 0.0
    %433 = vmatprep.subr.mxu0 0.0
    %434 = vmatpush2.msra.mxu0 0.0
    %435 = vmatprep.subr.mxu0 0.0
    %436 = vmatpush2.msra.mxu0 0.0
    %437 = vmatprep.subr.mxu0 0.0
    %438 = vmatpush2.msra.mxu0 0.0
    %439 = vmatprep.subr.mxu0 0.0
    %440 = vmatpush2.msra.mxu0 0.0
    %441 = vmatprep.subr.mxu0 0.0
    %442 = vmatpush2.msra.mxu0 0.0
    %443 = vmatprep.subr.mxu0 0.0
    %444 = vmatpush2.msra.mxu0 0.0
    %445 = vmatprep.subr.mxu0 0.0
    %446 = vmatpush2.msra.mxu0 0.0
    %447 = vmatprep.subr.mxu0 0.0
    %448 = vmatpush2.msra.mxu0 0.0
    %449 = vmatprep.mubr.f32.mxu0 0.0
    %450 = vmatmul.mubr.f32.gmra.mxu0 %v289
    %v451 = vpop.f32.mrf.mxu0
    %v452 = vadd.f32 %v271, %v451
    %v453 = vpop.f32.mrf.mxu0
    %454 = vmatprep.mubr.f32.mxu0 0.0
    %455 = vmatmul.mubr.f32.gmra.mxu0 %v292
    %v456 = vpop.f32.mrf.mxu0
    %v457 = vadd.f32 %v276, %v456
    %v458 = vpop.f32.mrf.mxu0
    %459 = vmatprep.mubr.f32.mxu0 0.0
    %460 = vmatmul.mubr.f32.gmra.mxu0 %v295
    %v461 = vpop.f32.mrf.mxu0
    %v462 = vadd.f32 %v281, %v461
    %v463 = vpop.f32.mrf.mxu0
    %464 = vmatprep.mubr.f32.mxu0 0.0
    %465 = vmatmul.mubr.f32.gmra.mxu0 %v298
    %v466 = vpop.f32.mrf.mxu0
    %v467 = vadd.f32 %v286, %v466
    %v468 = vpop.f32.mrf.mxu0
    %469 = vdwg.mxu0
    %470 = vmatprep.subr.mxu0 0.0
    %471 = vmatpush1.msra.mxu0 0.0
    %472 = vmatprep.subr.mxu0 0.0
    %473 = vmatpush1.msra.mxu0 0.0
    %474 = vmatprep.subr.mxu0 0.0
    %475 = vmatpush1.msra.mxu0 0.0
    %476 = vmatprep.subr.mxu0 0.0
    %477 = vmatpush1.msra.mxu0 0.0
    %478 = vmatprep.subr.mxu0 0.0
    %479 = vmatpush1.msra.mxu0 0.0
    %480 = vmatprep.subr.mxu0 0.0
    %481 = vmatpush1.msra.mxu0 0.0
    %482 = vmatprep.subr.mxu0 0.0
    %483 = vmatpush1.msra.mxu0 0.0
    %484 = vmatprep.subr.mxu0 0.0
    %485 = vmatpush1.msra.mxu0 0.0
    %486 = vmatprep.subr.mxu0 0.0
    %487 = vmatpush1.msra.mxu0 0.0
    %488 = vmatprep.subr.mxu0 0.0
    %489 = vmatpush1.msra.mxu0 0.0
    %490 = vmatprep.subr.mxu0 0.0
    %491 = vmatpush1.msra.mxu0 0.0
    %492 = vmatprep.subr.mxu0 0.0
    %493 = vmatpush1.msra.mxu0 0.0
    %494 = vmatprep.subr.mxu0 0.0
    %495 = vmatpush1.msra.mxu0 %v255
    %496 = vmatprep.subr.mxu0 0.0
    %497 = vmatpush1.msra.mxu0 %v254
    %498 = vmatprep.subr.mxu0 0.0
    %499 = vmatpush1.msra.mxu0 %v253
    %500 = vmatprep.subr.mxu0 0.0
    %501 = vmatpush1.msra.mxu0 %v252
    %502 = vmatprep.subr.mxu0 0.0
    %503 = vmatpush2.msra.mxu0 0.0
    %504 = vmatprep.subr.mxu0 0.0
    %505 = vmatpush2.msra.mxu0 0.0
    %506 = vmatprep.subr.mxu0 0.0
    %507 = vmatpush2.msra.mxu0 0.0
    %508 = vmatprep.subr.mxu0 0.0
    %509 = vmatpush2.msra.mxu0 0.0
    %510 = vmatprep.subr.mxu0 0.0
    %511 = vmatpush2.msra.mxu0 0.0
    %512 = vmatprep.subr.mxu0 0.0
    %513 = vmatpush2.msra.mxu0 0.0
    %514 = vmatprep.subr.mxu0 0.0
    %515 = vmatpush2.msra.mxu0 0.0
    %516 = vmatprep.subr.mxu0 0.0
    %517 = vmatpush2.msra.mxu0 0.0
    %518 = vmatprep.subr.mxu0 0.0
    %519 = vmatpush2.msra.mxu0 0.0
    %520 = vmatprep.subr.mxu0 0.0
    %521 = vmatpush2.msra.mxu0 0.0
    %522 = vmatprep.subr.mxu0 0.0
    %523 = vmatpush2.msra.mxu0 0.0
    %524 = vmatprep.subr.mxu0 0.0
    %525 = vmatpush2.msra.mxu0 0.0
    %526 = vmatprep.subr.mxu0 0.0
    %527 = vmatpush2.msra.mxu0 0.0
    %528 = vmatprep.subr.mxu0 0.0
    %529 = vmatpush2.msra.mxu0 0.0
    %530 = vmatprep.subr.mxu0 0.0
    %531 = vmatpush2.msra.mxu0 0.0
    %532 = vmatprep.subr.mxu0 0.0
    %533 = vmatpush2.msra.mxu0 0.0
    %534 = vmatprep.mubr.f32.mxu0 0.0
    %535 = vmatmul.mubr.f32.gmra.mxu0 %v289
    %v536 = vpop.f32.mrf.mxu0
    %v537 = vadd.f32 %v271, %v536
    %v538 = vpop.f32.mrf.mxu0
    %539 = vmatprep.mubr.f32.mxu0 0.0
    %540 = vmatmul.mubr.f32.gmra.mxu0 %v292
    %v541 = vpop.f32.mrf.mxu0
    %v542 = vadd.f32 %v276, %v541
    %v543 = vpop.f32.mrf.mxu0
    %544 = vmatprep.mubr.f32.mxu0 0.0
    %545 = vmatmul.mubr.f32.gmra.mxu0 %v295
    %v546 = vpop.f32.mrf.mxu0
    %v547 = vadd.f32 %v281, %v546
    %v548 = vpop.f32.mrf.mxu0
    %549 = vmatprep.mubr.f32.mxu0 0.0
    %550 = vmatmul.mubr.f32.gmra.mxu0 %v298
    %v551 = vpop.f32.mrf.mxu0
    %v552 = vadd.f32 %v286, %v551
    %v553 = vpop.f32.mrf.mxu0
    %554 = vdwg.mxu0
    %555 = vmatprep.subr.mxu0 0.0
    %556 = vmatpush1.msra.mxu0 0.0
    %557 = vmatprep.subr.mxu0 0.0
    %558 = vmatpush1.msra.mxu0 0.0
    %559 = vmatprep.subr.mxu0 0.0
    %560 = vmatpush1.msra.mxu0 0.0
    %561 = vmatprep.subr.mxu0 0.0
    %562 = vmatpush1.msra.mxu0 0.0
    %563 = vmatprep.subr.mxu0 0.0
    %564 = vmatpush1.msra.mxu0 0.0
    %565 = vmatprep.subr.mxu0 0.0
    %566 = vmatpush1.msra.mxu0 0.0
    %567 = vmatprep.subr.mxu0 0.0
    %568 = vmatpush1.msra.mxu0 0.0
    %569 = vmatprep.subr.mxu0 0.0
    %570 = vmatpush1.msra.mxu0 0.0
    %571 = vmatprep.subr.mxu0 0.0
    %572 = vmatpush1.msra.mxu0 0.0
    %573 = vmatprep.subr.mxu0 0.0
    %574 = vmatpush1.msra.mxu0 0.0
    %575 = vmatprep.subr.mxu0 0.0
    %576 = vmatpush1.msra.mxu0 0.0
    %577 = vmatprep.subr.mxu0 0.0
    %578 = vmatpush1.msra.mxu0 0.0
    %579 = vmatprep.subr.mxu0 0.0
    %580 = vmatpush1.msra.mxu0 %v259
    %581 = vmatprep.subr.mxu0 0.0
    %582 = vmatpush1.msra.mxu0 %v258
    %583 = vmatprep.subr.mxu0 0.0
    %584 = vmatpush1.msra.mxu0 %v257
    %585 = vmatprep.subr.mxu0 0.0
    %586 = vmatpush1.msra.mxu0 %v256
    %587 = vmatprep.subr.mxu0 0.0
    %588 = vmatpush2.msra.mxu0 0.0
    %589 = vmatprep.subr.mxu0 0.0
    %590 = vmatpush2.msra.mxu0 0.0
    %591 = vmatprep.subr.mxu0 0.0
    %592 = vmatpush2.msra.mxu0 0.0
    %593 = vmatprep.subr.mxu0 0.0
    %594 = vmatpush2.msra.mxu0 0.0
    %595 = vmatprep.subr.mxu0 0.0
    %596 = vmatpush2.msra.mxu0 0.0
    %597 = vmatprep.subr.mxu0 0.0
    %598 = vmatpush2.msra.mxu0 0.0
    %599 = vmatprep.subr.mxu0 0.0
    %600 = vmatpush2.msra.mxu0 0.0
    %601 = vmatprep.subr.mxu0 0.0
    %602 = vmatpush2.msra.mxu0 0.0
    %603 = vmatprep.subr.mxu0 0.0
    %604 = vmatpush2.msra.mxu0 0.0
    %605 = vmatprep.subr.mxu0 0.0
    %606 = vmatpush2.msra.mxu0 0.0
    %607 = vmatprep.subr.mxu0 0.0
    %608 = vmatpush2.msra.mxu0 0.0
    %609 = vmatprep.subr.mxu0 0.0
    %610 = vmatpush2.msra.mxu0 0.0
    %611 = vmatprep.subr.mxu0 0.0
    %612 = vmatpush2.msra.mxu0 0.0
    %613 = vmatprep.subr.mxu0 0.0
    %614 = vmatpush2.msra.mxu0 0.0
    %615 = vmatprep.subr.mxu0 0.0
    %616 = vmatpush2.msra.mxu0 0.0
    %617 = vmatprep.subr.mxu0 0.0
    %618 = vmatpush2.msra.mxu0 0.0
    %619 = vmatprep.mubr.f32.mxu0 0.0
    %620 = vmatmul.mubr.f32.gmra.mxu0 %v289
    %v621 = vpop.f32.mrf.mxu0
    %v622 = vadd.f32 %v271, %v621
    %v623 = vpop.f32.mrf.mxu0
    %624 = vmatprep.mubr.f32.mxu0 0.0
    %625 = vmatmul.mubr.f32.gmra.mxu0 %v292
    %v626 = vpop.f32.mrf.mxu0
    %v627 = vadd.f32 %v276, %v626
    %v628 = vpop.f32.mrf.mxu0
    %629 = vmatprep.mubr.f32.mxu0 0.0
    %630 = vmatmul.mubr.f32.gmra.mxu0 %v295
    %v631 = vpop.f32.mrf.mxu0
    %v632 = vadd.f32 %v281, %v631
    %v633 = vpop.f32.mrf.mxu0
    %634 = vmatprep.mubr.f32.mxu0 0.0
    %635 = vmatmul.mubr.f32.gmra.mxu0 %v298
    %v636 = vpop.f32.mrf.mxu0
    %v637 = vadd.f32 %v286, %v636
    %v638 = vpop.f32.mrf.mxu0
    %639 = vdwg.mxu0
    %v640 = vsel %vm194, %v367, 0.0
    %641 = vadd.xlane.f32.xlu0 %v640
    %v642 = vpop.xlane.xlu0 %641
    %v643 = vsel %vm194, %v372, 0.0
    %644 = vadd.xlane.f32.xlu0 %v643
    %v645 = vpop.xlane.xlu0 %644
    %v646 = vsel %vm194, %v377, 0.0
    %647 = vadd.xlane.f32.xlu0 %v646
    %v648 = vpop.xlane.xlu0 %647
    %v649 = vsel %vm194, %v382, 0.0
    %650 = vadd.xlane.f32.xlu0 %v649
    %v651 = vpop.xlane.xlu0 %650
    %v652 = vsel %vm194, %v452, 0.0
    %653 = vadd.xlane.f32.xlu0 %v652
    %v654 = vpop.xlane.xlu0 %653
    %v655 = vsel %vm194, %v457, 0.0
    %656 = vadd.xlane.f32.xlu0 %v655
    %v657 = vpop.xlane.xlu0 %656
    %v658 = vsel %vm194, %v462, 0.0
    %659 = vadd.xlane.f32.xlu0 %v658
    %v660 = vpop.xlane.xlu0 %659
    %v661 = vsel %vm194, %v467, 0.0
    %662 = vadd.xlane.f32.xlu0 %v661
    %v663 = vpop.xlane.xlu0 %662
    %v664 = vsel %vm194, %v537, 0.0
    %665 = vadd.xlane.f32.xlu0 %v664
    %v666 = vpop.xlane.xlu0 %665
    %v667 = vsel %vm194, %v542, 0.0
    %668 = vadd.xlane.f32.xlu0 %v667
    %v669 = vpop.xlane.xlu0 %668
    %v670 = vsel %vm194, %v547, 0.0
    %671 = vadd.xlane.f32.xlu0 %v670
    %v672 = vpop.xlane.xlu0 %671
    %v673 = vsel %vm194, %v552, 0.0
    %674 = vadd.xlane.f32.xlu0 %v673
    %v675 = vpop.xlane.xlu0 %674
    %v676 = vsel %vm194, %v622, 0.0
    %677 = vadd.xlane.f32.xlu0 %v676
    %v678 = vpop.xlane.xlu0 %677
    %v679 = vsel %vm194, %v627, 0.0
    %680 = vadd.xlane.f32.xlu0 %v679
    %v681 = vpop.xlane.xlu0 %680
    %v682 = vsel %vm194, %v632, 0.0
    %683 = vadd.xlane.f32.xlu0 %v682
    %v684 = vpop.xlane.xlu0 %683
    %v685 = vsel %vm194, %v637, 0.0
    %686 = vadd.xlane.f32.xlu0 %v685
    %v687 = vpop.xlane.xlu0 %686
    %v688 = vmul.f32 %v642, %v243
    %v689 = vmul.f32 %v645, %v243
    %v690 = vmul.f32 %v648, %v243
    %v691 = vmul.f32 %v651, %v243
    %v692 = vmul.f32 %v654, %v243
    %v693 = vmul.f32 %v657, %v243
    %v694 = vmul.f32 %v660, %v243
    %v695 = vmul.f32 %v663, %v243
    %v696 = vmul.f32 %v666, %v243
    %v697 = vmul.f32 %v669, %v243
    %v698 = vmul.f32 %v672, %v243
    %v699 = vmul.f32 %v675, %v243
    %v700 = vmul.f32 %v678, %v243
    %v701 = vmul.f32 %v681, %v243
    %v702 = vmul.f32 %v684, %v243
    %v703 = vmul.f32 %v687, %v243
    %v704 = vadd.f32 %v688, %v692
    %v705 = vadd.f32 %v704, %v696
    %v706 = vadd.f32 %v705, %v700
    %v707 = vadd.f32 %v689, %v693
    %v708 = vadd.f32 %v707, %v697
    %v709 = vadd.f32 %v708, %v701
    %v710 = vadd.f32 %v690, %v694
    %v711 = vadd.f32 %v710, %v698
    %v712 = vadd.f32 %v711, %v702
    %v713 = vadd.f32 %v691, %v695
    %v714 = vadd.f32 %v713, %v699
    %v715 = vadd.f32 %v714, %v703
    %v716 = vrcp.pop 4.0
    %v717 = vmul.f32 %v706, %v716
    %v718 = vmul.f32 %v709, %v716
    %v719 = vmul.f32 %v712, %v716
    %v720 = vmul.f32 %v715, %v716
    %v721 = vsub.f32 %v367, %v717
    %v722 = vsub.f32 %v372, %v718
    %v723 = vsub.f32 %v377, %v719
    %v724 = vsub.f32 %v382, %v720
    %v725 = vsub.f32 %v452, %v717
    %v726 = vsub.f32 %v457, %v718
    %v727 = vsub.f32 %v462, %v719
    %v728 = vsub.f32 %v467, %v720
    %v729 = vsub.f32 %v537, %v717
    %v730 = vsub.f32 %v542, %v718
    %v731 = vsub.f32 %v547, %v719
    %v732 = vsub.f32 %v552, %v720
    %v733 = vsub.f32 %v622, %v717
    %v734 = vsub.f32 %v627, %v718
    %v735 = vsub.f32 %v632, %v719
    %v736 = vsub.f32 %v637, %v720
    %v737 = vmul.f32 %v721, %v721
    %v738 = vmul.f32 %v722, %v722
    %v739 = vmul.f32 %v723, %v723
    %v740 = vmul.f32 %v724, %v724
    %v741 = vmul.f32 %v725, %v725
    %v742 = vmul.f32 %v726, %v726
    %v743 = vmul.f32 %v727, %v727
    %v744 = vmul.f32 %v728, %v728
    %v745 = vmul.f32 %v729, %v729
    %v746 = vmul.f32 %v730, %v730
    %v747 = vmul.f32 %v731, %v731
    %v748 = vmul.f32 %v732, %v732
    %v749 = vmul.f32 %v733, %v733
    %v750 = vmul.f32 %v734, %v734
    %v751 = vmul.f32 %v735, %v735
    %v752 = vmul.f32 %v736, %v736
    %v753 = vsel %vm194, %v737, 0.0
    %754 = vadd.xlane.f32.xlu0 %v753
    %v755 = vpop.xlane.xlu0 %754
    %v756 = vsel %vm194, %v738, 0.0
    %757 = vadd.xlane.f32.xlu0 %v756
    %v758 = vpop.xlane.xlu0 %757
    %v759 = vsel %vm194, %v739, 0.0
    %760 = vadd.xlane.f32.xlu0 %v759
    %v761 = vpop.xlane.xlu0 %760
    %v762 = vsel %vm194, %v740, 0.0
    %763 = vadd.xlane.f32.xlu0 %v762
    %v764 = vpop.xlane.xlu0 %763
    %v765 = vsel %vm194, %v741, 0.0
    %766 = vadd.xlane.f32.xlu0 %v765
    %v767 = vpop.xlane.xlu0 %766
    %v768 = vsel %vm194, %v742, 0.0
    %769 = vadd.xlane.f32.xlu0 %v768
    %v770 = vpop.xlane.xlu0 %769
    %v771 = vsel %vm194, %v743, 0.0
    %772 = vadd.xlane.f32.xlu0 %v771
    %v773 = vpop.xlane.xlu0 %772
    %v774 = vsel %vm194, %v744, 0.0
    %775 = vadd.xlane.f32.xlu0 %v774
    %v776 = vpop.xlane.xlu0 %775
    %v777 = vsel %vm194, %v745, 0.0
    %778 = vadd.xlane.f32.xlu0 %v777
    %v779 = vpop.xlane.xlu0 %778
    %v780 = vsel %vm194, %v746, 0.0
    %781 = vadd.xlane.f32.xlu0 %v780
    %v782 = vpop.xlane.xlu0 %781
    %v783 = vsel %vm194, %v747, 0.0
    %784 = vadd.xlane.f32.xlu0 %v783
    %v785 = vpop.xlane.xlu0 %784
    %v786 = vsel %vm194, %v748, 0.0
    %787 = vadd.xlane.f32.xlu0 %v786
    %v788 = vpop.xlane.xlu0 %787
    %v789 = vsel %vm194, %v749, 0.0
    %790 = vadd.xlane.f32.xlu0 %v789
    %v791 = vpop.xlane.xlu0 %790
    %v792 = vsel %vm194, %v750, 0.0
    %793 = vadd.xlane.f32.xlu0 %v792
    %v794 = vpop.xlane.xlu0 %793
    %v795 = vsel %vm194, %v751, 0.0
    %796 = vadd.xlane.f32.xlu0 %v795
    %v797 = vpop.xlane.xlu0 %796
    %v798 = vsel %vm194, %v752, 0.0
    %799 = vadd.xlane.f32.xlu0 %v798
    %v800 = vpop.xlane.xlu0 %799
    %v801 = vmul.f32 %v755, %v243
    %v802 = vmul.f32 %v758, %v243
    %v803 = vmul.f32 %v761, %v243
    %v804 = vmul.f32 %v764, %v243
    %v805 = vmul.f32 %v767, %v243
    %v806 = vmul.f32 %v770, %v243
    %v807 = vmul.f32 %v773, %v243
    %v808 = vmul.f32 %v776, %v243
    %v809 = vmul.f32 %v779, %v243
    %v810 = vmul.f32 %v782, %v243
    %v811 = vmul.f32 %v785, %v243
    %v812 = vmul.f32 %v788, %v243
    %v813 = vmul.f32 %v791, %v243
    %v814 = vmul.f32 %v794, %v243
    %v815 = vmul.f32 %v797, %v243
    %v816 = vmul.f32 %v800, %v243
    %v817 = vadd.f32 %v801, %v805
    %v818 = vadd.f32 %v817, %v809
    %v819 = vadd.f32 %v818, %v813
    %v820 = vadd.f32 %v802, %v806
    %v821 = vadd.f32 %v820, %v810
    %v822 = vadd.f32 %v821, %v814
    %v823 = vadd.f32 %v803, %v807
    %v824 = vadd.f32 %v823, %v811
    %v825 = vadd.f32 %v824, %v815
    %v826 = vadd.f32 %v804, %v808
    %v827 = vadd.f32 %v826, %v812
    %v828 = vadd.f32 %v827, %v816
    %v829 = vmul.f32 %v819, %v716
    %v830 = vmul.f32 %v822, %v716
    %v831 = vmul.f32 %v825, %v716
    %v832 = vmul.f32 %v828, %v716
    %v833 = vld [vmem:[%s3] sm:$0xff]
    %v834 = vld [vmem:[%s3 + $0x8] sm:$0xff]
    %v835 = vld [vmem:[%s3 + $0x10] sm:$0xff]
    %v836 = vld [vmem:[%s3 + $0x18] sm:$0xff]
    %838 = vset.pattern.permute.xlu0 0
    %839 = vperm.xlu0 %838, %v833
    %v840 = vpop.permute.xlu0 %839
    %843 = vset.pattern.permute.xlu0 0
    %844 = vperm.xlu0 %843, %v834
    %v845 = vpop.permute.xlu0 %844
    %848 = vset.pattern.permute.xlu0 0
    %849 = vperm.xlu0 %848, %v835
    %v850 = vpop.permute.xlu0 %849
    %853 = vset.pattern.permute.xlu0 0
    %854 = vperm.xlu0 %853, %v836
    %v855 = vpop.permute.xlu0 %854
    %v857 = vmul.f32 %v840, %v721
    %v858 = vmul.f32 %v845, %v722
    %v859 = vmul.f32 %v850, %v723
    %v860 = vmul.f32 %v855, %v724
    %v861 = vmul.f32 %v840, %v725
    %v862 = vmul.f32 %v845, %v726
    %v863 = vmul.f32 %v850, %v727
    %v864 = vmul.f32 %v855, %v728
    %v865 = vmul.f32 %v840, %v729
    %v866 = vmul.f32 %v845, %v730
    %v867 = vmul.f32 %v850, %v731
    %v868 = vmul.f32 %v855, %v732
    %v869 = vmul.f32 %v840, %v733
    %v870 = vmul.f32 %v845, %v734
    %v871 = vmul.f32 %v850, %v735
    %v872 = vmul.f32 %v855, %v736
    %v873 = vadd.f32 %v829, 1e-05
    %v874 = vadd.f32 %v830, 1e-05
    %v875 = vadd.f32 %v831, 1e-05
    %v876 = vadd.f32 %v832, 1e-05
    %v877 = vrsqrt.pop %v873
    %v878 = vrsqrt.pop %v874
    %v879 = vrsqrt.pop %v875
    %v880 = vrsqrt.pop %v876
    %v881 = vmul.f32 %v857, %v877
    %v882 = vmul.f32 %v858, %v878
    %v883 = vmul.f32 %v859, %v879
    %v884 = vmul.f32 %v860, %v880
    %v885 = vmul.f32 %v861, %v877
    %v886 = vmul.f32 %v862, %v878
    %v887 = vmul.f32 %v863, %v879
    %v888 = vmul.f32 %v864, %v880
    %v889 = vmul.f32 %v865, %v877
    %v890 = vmul.f32 %v866, %v878
    %v891 = vmul.f32 %v867, %v879
    %v892 = vmul.f32 %v868, %v880
    %v893 = vmul.f32 %v869, %v877
    %v894 = vmul.f32 %v870, %v878
    %v895 = vmul.f32 %v871, %v879
    %v896 = vmul.f32 %v872, %v880
    %v897 = vld [vmem:[%s4] sm:$0xff]
    %v898 = vld [vmem:[%s4 + $0x8] sm:$0xff]
    %v899 = vld [vmem:[%s4 + $0x10] sm:$0xff]
    %v900 = vld [vmem:[%s4 + $0x18] sm:$0xff]
    %902 = vset.pattern.permute.xlu0 0
    %903 = vperm.xlu0 %902, %v897
    %v904 = vpop.permute.xlu0 %903
    %907 = vset.pattern.permute.xlu0 0
    %908 = vperm.xlu0 %907, %v898
    %v909 = vpop.permute.xlu0 %908
    %912 = vset.pattern.permute.xlu0 0
    %913 = vperm.xlu0 %912, %v899
    %v914 = vpop.permute.xlu0 %913
    %917 = vset.pattern.permute.xlu0 0
    %918 = vperm.xlu0 %917, %v900
    %v919 = vpop.permute.xlu0 %918
    %v921 = vadd.f32 %v881, %v904
    %v922 = vadd.f32 %v882, %v909
    %v923 = vadd.f32 %v883, %v914
    %v924 = vadd.f32 %v884, %v919
    %v925 = vadd.f32 %v885, %v904
    %v926 = vadd.f32 %v886, %v909
    %v927 = vadd.f32 %v887, %v914
    %v928 = vadd.f32 %v888, %v919
    %v929 = vadd.f32 %v889, %v904
    %v930 = vadd.f32 %v890, %v909
    %v931 = vadd.f32 %v891, %v914
    %v932 = vadd.f32 %v892, %v919
    %v933 = vadd.f32 %v893, %v904
    %v934 = vadd.f32 %v894, %v909
    %v935 = vadd.f32 %v895, %v914
    %v936 = vadd.f32 %v896, %v919
    %v937 = vmul.f32 %v921, 0.2
    %v938 = vmul.f32 %v922, 0.2
    %v939 = vmul.f32 %v923, 0.2
    %v940 = vmul.f32 %v924, 0.2
    %v941 = vmul.f32 %v925, 0.2
    %v942 = vmul.f32 %v926, 0.2
    %v943 = vmul.f32 %v927, 0.2
    %v944 = vmul.f32 %v928, 0.2
    %v945 = vmul.f32 %v929, 0.2
    %v946 = vmul.f32 %v930, 0.2
    %v947 = vmul.f32 %v931, 0.2
    %v948 = vmul.f32 %v932, 0.2
    %v949 = vmul.f32 %v933, 0.2
    %v950 = vmul.f32 %v934, 0.2
    %v951 = vmul.f32 %v935, 0.2
    %v952 = vmul.f32 %v936, 0.2
    %v953 = vmax.f32 %v921, %v937
    %v954 = vmax.f32 %v922, %v938
    %v955 = vmax.f32 %v923, %v939
    %v956 = vmax.f32 %v924, %v940
    %v957 = vmax.f32 %v925, %v941
    %v958 = vmax.f32 %v926, %v942
    %v959 = vmax.f32 %v927, %v943
    %v960 = vmax.f32 %v928, %v944
    %v961 = vmax.f32 %v929, %v945
    %v962 = vmax.f32 %v930, %v946
    %v963 = vmax.f32 %v931, %v947
    %v964 = vmax.f32 %v932, %v948
    %v965 = vmax.f32 %v933, %v949
    %v966 = vmax.f32 %v934, %v950
    %v967 = vmax.f32 %v935, %v951
    %v968 = vmax.f32 %v936, %v952
    %v969 = vld [vmem:[#allocation5] sm:$0xff]
    %v970 = vld [vmem:[#allocation5 + $0x8] sm:$0xff]
    %v971 = vld [vmem:[#allocation5 + $0x10] sm:$0xff]
    %v972 = vld [vmem:[#allocation5 + $0x18] sm:$0xff]
    %v973 = vld [vmem:[#allocation2] sm:$0xff]
    %v974 = vld [vmem:[#allocation2 + $0x8] sm:$0xff]
    %v975 = vld [vmem:[#allocation2 + $0x10] sm:$0xff]
    %v976 = vld [vmem:[#allocation2 + $0x18] sm:$0xff]
    %v978 = vsel %vm194, %v973, 0
    %v981 = vsel %vm194, %v974, 0
    %v984 = vsel %vm194, %v975, 0
    %v987 = vsel %vm194, %v976, 0
    %989 = vmatprep.subr.mxu0 0.0
    %990 = vmatpush1.msra.mxu0 0.0
    %991 = vmatprep.subr.mxu0 0.0
    %992 = vmatpush1.msra.mxu0 0.0
    %993 = vmatprep.subr.mxu0 0.0
    %994 = vmatpush1.msra.mxu0 0.0
    %995 = vmatprep.subr.mxu0 0.0
    %996 = vmatpush1.msra.mxu0 0.0
    %997 = vmatprep.subr.mxu0 0.0
    %998 = vmatpush1.msra.mxu0 0.0
    %999 = vmatprep.subr.mxu0 0.0
    %1000 = vmatpush1.msra.mxu0 0.0
    %1001 = vmatprep.subr.mxu0 0.0
    %1002 = vmatpush1.msra.mxu0 0.0
    %1003 = vmatprep.subr.mxu0 0.0
    %1004 = vmatpush1.msra.mxu0 0.0
    %1005 = vmatprep.subr.mxu0 0.0
    %1006 = vmatpush1.msra.mxu0 0.0
    %1007 = vmatprep.subr.mxu0 0.0
    %1008 = vmatpush1.msra.mxu0 0.0
    %1009 = vmatprep.subr.mxu0 0.0
    %1010 = vmatpush1.msra.mxu0 0.0
    %1011 = vmatprep.subr.mxu0 0.0
    %1012 = vmatpush1.msra.mxu0 0.0
    %1013 = vmatprep.subr.mxu0 0.0
    %1014 = vmatpush1.msra.mxu0 %v956
    %1015 = vmatprep.subr.mxu0 0.0
    %1016 = vmatpush1.msra.mxu0 %v955
    %1017 = vmatprep.subr.mxu0 0.0
    %1018 = vmatpush1.msra.mxu0 %v954
    %1019 = vmatprep.subr.mxu0 0.0
    %1020 = vmatpush1.msra.mxu0 %v953
    %1021 = vmatprep.subr.mxu0 0.0
    %1022 = vmatpush2.msra.mxu0 0.0
    %1023 = vmatprep.subr.mxu0 0.0
    %1024 = vmatpush2.msra.mxu0 0.0
    %1025 = vmatprep.subr.mxu0 0.0
    %1026 = vmatpush2.msra.mxu0 0.0
    %1027 = vmatprep.subr.mxu0 0.0
    %1028 = vmatpush2.msra.mxu0 0.0
    %1029 = vmatprep.subr.mxu0 0.0
    %1030 = vmatpush2.msra.mxu0 0.0
    %1031 = vmatprep.subr.mxu0 0.0
    %1032 = vmatpush2.msra.mxu0 0.0
    %1033 = vmatprep.subr.mxu0 0.0
    %1034 = vmatpush2.msra.mxu0 0.0
    %1035 = vmatprep.subr.mxu0 0.0
    %1036 = vmatpush2.msra.mxu0 0.0
    %1037 = vmatprep.subr.mxu0 0.0
    %1038 = vmatpush2.msra.mxu0 0.0
    %1039 = vmatprep.subr.mxu0 0.0
    %1040 = vmatpush2.msra.mxu0 0.0
    %1041 = vmatprep.subr.mxu0 0.0
    %1042 = vmatpush2.msra.mxu0 0.0
    %1043 = vmatprep.subr.mxu0 0.0
    %1044 = vmatpush2.msra.mxu0 0.0
    %1045 = vmatprep.subr.mxu0 0.0
    %1046 = vmatpush2.msra.mxu0 0.0
    %1047 = vmatprep.subr.mxu0 0.0
    %1048 = vmatpush2.msra.mxu0 0.0
    %1049 = vmatprep.subr.mxu0 0.0
    %1050 = vmatpush2.msra.mxu0 0.0
    %1051 = vmatprep.subr.mxu0 0.0
    %1052 = vmatpush2.msra.mxu0 0.0
    %1053 = vmatprep.mubr.f32.mxu0 0.0
    %1054 = vmatmul.mubr.f32.gmra.mxu0 %v978
    %v1055 = vpop.f32.mrf.mxu0
    %v1056 = vadd.f32 0.0, %v1055
    %v1057 = vpop.f32.mrf.mxu0
    %1058 = vmatprep.mubr.f32.mxu0 0.0
    %1059 = vmatmul.mubr.f32.gmra.mxu0 %v981
    %v1060 = vpop.f32.mrf.mxu0
    %v1061 = vadd.f32 0.0, %v1060
    %v1062 = vpop.f32.mrf.mxu0
    %1063 = vmatprep.mubr.f32.mxu0 0.0
    %1064 = vmatmul.mubr.f32.gmra.mxu0 %v984
    %v1065 = vpop.f32.mrf.mxu0
    %v1066 = vadd.f32 0.0, %v1065
    %v1067 = vpop.f32.mrf.mxu0
    %1068 = vmatprep.mubr.f32.mxu0 0.0
    %1069 = vmatmul.mubr.f32.gmra.mxu0 %v987
    %v1070 = vpop.f32.mrf.mxu0
    %v1071 = vadd.f32 0.0, %v1070
    %v1072 = vpop.f32.mrf.mxu0
    %1073 = vdwg.mxu0
    %1074 = vmatprep.subr.mxu0 0.0
    %1075 = vmatpush1.msra.mxu0 0.0
    %1076 = vmatprep.subr.mxu0 0.0
    %1077 = vmatpush1.msra.mxu0 0.0
    %1078 = vmatprep.subr.mxu0 0.0
    %1079 = vmatpush1.msra.mxu0 0.0
    %1080 = vmatprep.subr.mxu0 0.0
    %1081 = vmatpush1.msra.mxu0 0.0
    %1082 = vmatprep.subr.mxu0 0.0
    %1083 = vmatpush1.msra.mxu0 0.0
    %1084 = vmatprep.subr.mxu0 0.0
    %1085 = vmatpush1.msra.mxu0 0.0
    %1086 = vmatprep.subr.mxu0 0.0
    %1087 = vmatpush1.msra.mxu0 0.0
    %1088 = vmatprep.subr.mxu0 0.0
    %1089 = vmatpush1.msra.mxu0 0.0
    %1090 = vmatprep.subr.mxu0 0.0
    %1091 = vmatpush1.msra.mxu0 0.0
    %1092 = vmatprep.subr.mxu0 0.0
    %1093 = vmatpush1.msra.mxu0 0.0
    %1094 = vmatprep.subr.mxu0 0.0
    %1095 = vmatpush1.msra.mxu0 0.0
    %1096 = vmatprep.subr.mxu0 0.0
    %1097 = vmatpush1.msra.mxu0 0.0
    %1098 = vmatprep.subr.mxu0 0.0
    %1099 = vmatpush1.msra.mxu0 %v960
    %1100 = vmatprep.subr.mxu0 0.0
    %1101 = vmatpush1.msra.mxu0 %v959
    %1102 = vmatprep.subr.mxu0 0.0
    %1103 = vmatpush1.msra.mxu0 %v958
    %1104 = vmatprep.subr.mxu0 0.0
    %1105 = vmatpush1.msra.mxu0 %v957
    %1106 = vmatprep.subr.mxu0 0.0
    %1107 = vmatpush2.msra.mxu0 0.0
    %1108 = vmatprep.subr.mxu0 0.0
    %1109 = vmatpush2.msra.mxu0 0.0
    %1110 = vmatprep.subr.mxu0 0.0
    %1111 = vmatpush2.msra.mxu0 0.0
    %1112 = vmatprep.subr.mxu0 0.0
    %1113 = vmatpush2.msra.mxu0 0.0
    %1114 = vmatprep.subr.mxu0 0.0
    %1115 = vmatpush2.msra.mxu0 0.0
    %1116 = vmatprep.subr.mxu0 0.0
    %1117 = vmatpush2.msra.mxu0 0.0
    %1118 = vmatprep.subr.mxu0 0.0
    %1119 = vmatpush2.msra.mxu0 0.0
    %1120 = vmatprep.subr.mxu0 0.0
    %1121 = vmatpush2.msra.mxu0 0.0
    %1122 = vmatprep.subr.mxu0 0.0
    %1123 = vmatpush2.msra.mxu0 0.0
    %1124 = vmatprep.subr.mxu0 0.0
    %1125 = vmatpush2.msra.mxu0 0.0
    %1126 = vmatprep.subr.mxu0 0.0
    %1127 = vmatpush2.msra.mxu0 0.0
    %1128 = vmatprep.subr.mxu0 0.0
    %1129 = vmatpush2.msra.mxu0 0.0
    %1130 = vmatprep.subr.mxu0 0.0
    %1131 = vmatpush2.msra.mxu0 0.0
    %1132 = vmatprep.subr.mxu0 0.0
    %1133 = vmatpush2.msra.mxu0 0.0
    %1134 = vmatprep.subr.mxu0 0.0
    %1135 = vmatpush2.msra.mxu0 0.0
    %1136 = vmatprep.subr.mxu0 0.0
    %1137 = vmatpush2.msra.mxu0 0.0
    %1138 = vmatprep.mubr.f32.mxu0 0.0
    %1139 = vmatmul.mubr.f32.gmra.mxu0 %v978
    %v1140 = vpop.f32.mrf.mxu0
    %v1141 = vadd.f32 0.0, %v1140
    %v1142 = vpop.f32.mrf.mxu0
    %1143 = vmatprep.mubr.f32.mxu0 0.0
    %1144 = vmatmul.mubr.f32.gmra.mxu0 %v981
    %v1145 = vpop.f32.mrf.mxu0
    %v1146 = vadd.f32 0.0, %v1145
    %v1147 = vpop.f32.mrf.mxu0
    %1148 = vmatprep.mubr.f32.mxu0 0.0
    %1149 = vmatmul.mubr.f32.gmra.mxu0 %v984
    %v1150 = vpop.f32.mrf.mxu0
    %v1151 = vadd.f32 0.0, %v1150
    %v1152 = vpop.f32.mrf.mxu0
    %1153 = vmatprep.mubr.f32.mxu0 0.0
    %1154 = vmatmul.mubr.f32.gmra.mxu0 %v987
    %v1155 = vpop.f32.mrf.mxu0
    %v1156 = vadd.f32 0.0, %v1155
    %v1157 = vpop.f32.mrf.mxu0
    %1158 = vdwg.mxu0
    %1159 = vmatprep.subr.mxu0 0.0
    %1160 = vmatpush1.msra.mxu0 0.0
    %1161 = vmatprep.subr.mxu0 0.0
    %1162 = vmatpush1.msra.mxu0 0.0
    %1163 = vmatprep.subr.mxu0 0.0
    %1164 = vmatpush1.msra.mxu0 0.0
    %1165 = vmatprep.subr.mxu0 0.0
    %1166 = vmatpush1.msra.mxu0 0.0
    %1167 = vmatprep.subr.mxu0 0.0
    %1168 = vmatpush1.msra.mxu0 0.0
    %1169 = vmatprep.subr.mxu0 0.0
    %1170 = vmatpush1.msra.mxu0 0.0
    %1171 = vmatprep.subr.mxu0 0.0
    %1172 = vmatpush1.msra.mxu0 0.0
    %1173 = vmatprep.subr.mxu0 0.0
    %1174 = vmatpush1.msra.mxu0 0.0
    %1175 = vmatprep.subr.mxu0 0.0
    %1176 = vmatpush1.msra.mxu0 0.0
    %1177 = vmatprep.subr.mxu0 0.0
    %1178 = vmatpush1.msra.mxu0 0.0
    %1179 = vmatprep.subr.mxu0 0.0
    %1180 = vmatpush1.msra.mxu0 0.0
    %1181 = vmatprep.subr.mxu0 0.0
    %1182 = vmatpush1.msra.mxu0 0.0
    %1183 = vmatprep.subr.mxu0 0.0
    %1184 = vmatpush1.msra.mxu0 %v964
    %1185 = vmatprep.subr.mxu0 0.0
    %1186 = vmatpush1.msra.mxu0 %v963
    %1187 = vmatprep.subr.mxu0 0.0
    %1188 = vmatpush1.msra.mxu0 %v962
    %1189 = vmatprep.subr.mxu0 0.0
    %1190 = vmatpush1.msra.mxu0 %v961
    %1191 = vmatprep.subr.mxu0 0.0
    %1192 = vmatpush2.msra.mxu0 0.0
    %1193 = vmatprep.subr.mxu0 0.0
    %1194 = vmatpush2.msra.mxu0 0.0
    %1195 = vmatprep.subr.mxu0 0.0
    %1196 = vmatpush2.msra.mxu0 0.0
    %1197 = vmatprep.subr.mxu0 0.0
    %1198 = vmatpush2.msra.mxu0 0.0
    %1199 = vmatprep.subr.mxu0 0.0
    %1200 = vmatpush2.msra.mxu0 0.0
    %1201 = vmatprep.subr.mxu0 0.0
    %1202 = vmatpush2.msra.mxu0 0.0
    %1203 = vmatprep.subr.mxu0 0.0
    %1204 = vmatpush2.msra.mxu0 0.0
    %1205 = vmatprep.subr.mxu0 0.0
    %1206 = vmatpush2.msra.mxu0 0.0
    %1207 = vmatprep.subr.mxu0 0.0
    %1208 = vmatpush2.msra.mxu0 0.0
    %1209 = vmatprep.subr.mxu0 0.0
    %1210 = vmatpush2.msra.mxu0 0.0
    %1211 = vmatprep.subr.mxu0 0.0
    %1212 = vmatpush2.msra.mxu0 0.0
    %1213 = vmatprep.subr.mxu0 0.0
    %1214 = vmatpush2.msra.mxu0 0.0
    %1215 = vmatprep.subr.mxu0 0.0
    %1216 = vmatpush2.msra.mxu0 0.0
    %1217 = vmatprep.subr.mxu0 0.0
    %1218 = vmatpush2.msra.mxu0 0.0
    %1219 = vmatprep.subr.mxu0 0.0
    %1220 = vmatpush2.msra.mxu0 0.0
    %1221 = vmatprep.subr.mxu0 0.0
    %1222 = vmatpush2.msra.mxu0 0.0
    %1223 = vmatprep.mubr.f32.mxu0 0.0
    %1224 = vmatmul.mubr.f32.gmra.mxu0 %v978
    %v1225 = vpop.f32.mrf.mxu0
    %v1226 = vadd.f32 0.0, %v1225
    %v1227 = vpop.f32.mrf.mxu0
    %1228 = vmatprep.mubr.f32.mxu0 0.0
    %1229 = vmatmul.mubr.f32.gmra.mxu0 %v981
    %v1230 = vpop.f32.mrf.mxu0
    %v1231 = vadd.f32 0.0, %v1230
    %v1232 = vpop.f32.mrf.mxu0
    %1233 = vmatprep.mubr.f32.mxu0 0.0
    %1234 = vmatmul.mubr.f32.gmra.mxu0 %v984
    %v1235 = vpop.f32.mrf.mxu0
    %v1236 = vadd.f32 0.0, %v1235
    %v1237 = vpop.f32.mrf.mxu0
    %1238 = vmatprep.mubr.f32.mxu0 0.0
    %1239 = vmatmul.mubr.f32.gmra.mxu0 %v987
    %v1240 = vpop.f32.mrf.mxu0
    %v1241 = vadd.f32 0.0, %v1240
    %v1242 = vpop.f32.mrf.mxu0
    %1243 = vdwg.mxu0
    %1244 = vmatprep.subr.mxu0 0.0
    %1245 = vmatpush1.msra.mxu0 0.0
    %1246 = vmatprep.subr.mxu0 0.0
    %1247 = vmatpush1.msra.mxu0 0.0
    %1248 = vmatprep.subr.mxu0 0.0
    %1249 = vmatpush1.msra.mxu0 0.0
    %1250 = vmatprep.subr.mxu0 0.0
    %1251 = vmatpush1.msra.mxu0 0.0
    %1252 = vmatprep.subr.mxu0 0.0
    %1253 = vmatpush1.msra.mxu0 0.0
    %1254 = vmatprep.subr.mxu0 0.0
    %1255 = vmatpush1.msra.mxu0 0.0
    %1256 = vmatprep.subr.mxu0 0.0
    %1257 = vmatpush1.msra.mxu0 0.0
    %1258 = vmatprep.subr.mxu0 0.0
    %1259 = vmatpush1.msra.mxu0 0.0
    %1260 = vmatprep.subr.mxu0 0.0
    %1261 = vmatpush1.msra.mxu0 0.0
    %1262 = vmatprep.subr.mxu0 0.0
    %1263 = vmatpush1.msra.mxu0 0.0
    %1264 = vmatprep.subr.mxu0 0.0
    %1265 = vmatpush1.msra.mxu0 0.0
    %1266 = vmatprep.subr.mxu0 0.0
    %1267 = vmatpush1.msra.mxu0 0.0
    %1268 = vmatprep.subr.mxu0 0.0
    %1269 = vmatpush1.msra.mxu0 %v968
    %1270 = vmatprep.subr.mxu0 0.0
    %1271 = vmatpush1.msra.mxu0 %v967
    %1272 = vmatprep.subr.mxu0 0.0
    %1273 = vmatpush1.msra.mxu0 %v966
    %1274 = vmatprep.subr.mxu0 0.0
    %1275 = vmatpush1.msra.mxu0 %v965
    %1276 = vmatprep.subr.mxu0 0.0
    %1277 = vmatpush2.msra.mxu0 0.0
    %1278 = vmatprep.subr.mxu0 0.0
    %1279 = vmatpush2.msra.mxu0 0.0
    %1280 = vmatprep.subr.mxu0 0.0
    %1281 = vmatpush2.msra.mxu0 0.0
    %1282 = vmatprep.subr.mxu0 0.0
    %1283 = vmatpush2.msra.mxu0 0.0
    %1284 = vmatprep.subr.mxu0 0.0
    %1285 = vmatpush2.msra.mxu0 0.0
    %1286 = vmatprep.subr.mxu0 0.0
    %1287 = vmatpush2.msra.mxu0 0.0
    %1288 = vmatprep.subr.mxu0 0.0
    %1289 = vmatpush2.msra.mxu0 0.0
    %1290 = vmatprep.subr.mxu0 0.0
    %1291 = vmatpush2.msra.mxu0 0.0
    %1292 = vmatprep.subr.mxu0 0.0
    %1293 = vmatpush2.msra.mxu0 0.0
    %1294 = vmatprep.subr.mxu0 0.0
    %1295 = vmatpush2.msra.mxu0 0.0
    %1296 = vmatprep.subr.mxu0 0.0
    %1297 = vmatpush2.msra.mxu0 0.0
    %1298 = vmatprep.subr.mxu0 0.0
    %1299 = vmatpush2.msra.mxu0 0.0
    %1300 = vmatprep.subr.mxu0 0.0
    %1301 = vmatpush2.msra.mxu0 0.0
    %1302 = vmatprep.subr.mxu0 0.0
    %1303 = vmatpush2.msra.mxu0 0.0
    %1304 = vmatprep.subr.mxu0 0.0
    %1305 = vmatpush2.msra.mxu0 0.0
    %1306 = vmatprep.subr.mxu0 0.0
    %1307 = vmatpush2.msra.mxu0 0.0
    %1308 = vmatprep.mubr.f32.mxu0 0.0
    %1309 = vmatmul.mubr.f32.gmra.mxu0 %v978
    %v1310 = vpop.f32.mrf.mxu0
    %v1311 = vadd.f32 0.0, %v1310
    %v1312 = vpop.f32.mrf.mxu0
    %1313 = vmatprep.mubr.f32.mxu0 0.0
    %1314 = vmatmul.mubr.f32.gmra.mxu0 %v981
    %v1315 = vpop.f32.mrf.mxu0
    %v1316 = vadd.f32 0.0, %v1315
    %v1317 = vpop.f32.mrf.mxu0
    %1318 = vmatprep.mubr.f32.mxu0 0.0
    %1319 = vmatmul.mubr.f32.gmra.mxu0 %v984
    %v1320 = vpop.f32.mrf.mxu0
    %v1321 = vadd.f32 0.0, %v1320
    %v1322 = vpop.f32.mrf.mxu0
    %1323 = vmatprep.mubr.f32.mxu0 0.0
    %1324 = vmatmul.mubr.f32.gmra.mxu0 %v987
    %v1325 = vpop.f32.mrf.mxu0
    %v1326 = vadd.f32 0.0, %v1325
    %v1327 = vpop.f32.mrf.mxu0
    %1328 = vdwg.mxu0
    %v1330 = vsel %vm194, %v969, 0
    %v1333 = vsel %vm194, %v970, 0
    %v1336 = vsel %vm194, %v971, 0
    %v1339 = vsel %vm194, %v972, 0
    %1341 = vmatprep.subr.mxu0 0.0
    %1342 = vmatpush1.msra.mxu0 0.0
    %1343 = vmatprep.subr.mxu0 0.0
    %1344 = vmatpush1.msra.mxu0 0.0
    %1345 = vmatprep.subr.mxu0 0.0
    %1346 = vmatpush1.msra.mxu0 0.0
    %1347 = vmatprep.subr.mxu0 0.0
    %1348 = vmatpush1.msra.mxu0 0.0
    %1349 = vmatprep.subr.mxu0 0.0
    %1350 = vmatpush1.msra.mxu0 0.0
    %1351 = vmatprep.subr.mxu0 0.0
    %1352 = vmatpush1.msra.mxu0 0.0
    %1353 = vmatprep.subr.mxu0 0.0
    %1354 = vmatpush1.msra.mxu0 0.0
    %1355 = vmatprep.subr.mxu0 0.0
    %1356 = vmatpush1.msra.mxu0 0.0
    %1357 = vmatprep.subr.mxu0 0.0
    %1358 = vmatpush1.msra.mxu0 0.0
    %1359 = vmatprep.subr.mxu0 0.0
    %1360 = vmatpush1.msra.mxu0 0.0
    %1361 = vmatprep.subr.mxu0 0.0
    %1362 = vmatpush1.msra.mxu0 0.0
    %1363 = vmatprep.subr.mxu0 0.0
    %1364 = vmatpush1.msra.mxu0 0.0
    %1365 = vmatprep.subr.mxu0 0.0
    %1366 = vmatpush1.msra.mxu0 %v169
    %1367 = vmatprep.subr.mxu0 0.0
    %1368 = vmatpush1.msra.mxu0 %v168
    %1369 = vmatprep.subr.mxu0 0.0
    %1370 = vmatpush1.msra.mxu0 %v167
    %1371 = vmatprep.subr.mxu0 0.0
    %1372 = vmatpush1.msra.mxu0 %v166
    %1373 = vmatprep.subr.mxu0 0.0
    %1374 = vmatpush2.msra.mxu0 0.0
    %1375 = vmatprep.subr.mxu0 0.0
    %1376 = vmatpush2.msra.mxu0 0.0
    %1377 = vmatprep.subr.mxu0 0.0
    %1378 = vmatpush2.msra.mxu0 0.0
    %1379 = vmatprep.subr.mxu0 0.0
    %1380 = vmatpush2.msra.mxu0 0.0
    %1381 = vmatprep.subr.mxu0 0.0
    %1382 = vmatpush2.msra.mxu0 0.0
    %1383 = vmatprep.subr.mxu0 0.0
    %1384 = vmatpush2.msra.mxu0 0.0
    %1385 = vmatprep.subr.mxu0 0.0
    %1386 = vmatpush2.msra.mxu0 0.0
    %1387 = vmatprep.subr.mxu0 0.0
    %1388 = vmatpush2.msra.mxu0 0.0
    %1389 = vmatprep.subr.mxu0 0.0
    %1390 = vmatpush2.msra.mxu0 0.0
    %1391 = vmatprep.subr.mxu0 0.0
    %1392 = vmatpush2.msra.mxu0 0.0
    %1393 = vmatprep.subr.mxu0 0.0
    %1394 = vmatpush2.msra.mxu0 0.0
    %1395 = vmatprep.subr.mxu0 0.0
    %1396 = vmatpush2.msra.mxu0 0.0
    %1397 = vmatprep.subr.mxu0 0.0
    %1398 = vmatpush2.msra.mxu0 0.0
    %1399 = vmatprep.subr.mxu0 0.0
    %1400 = vmatpush2.msra.mxu0 0.0
    %1401 = vmatprep.subr.mxu0 0.0
    %1402 = vmatpush2.msra.mxu0 0.0
    %1403 = vmatprep.subr.mxu0 0.0
    %1404 = vmatpush2.msra.mxu0 0.0
    %1405 = vmatprep.mubr.f32.mxu0 0.0
    %1406 = vmatmul.mubr.f32.gmra.mxu0 %v1330
    %v1407 = vpop.f32.mrf.mxu0
    %v1408 = vadd.f32 %v1056, %v1407
    %v1409 = vpop.f32.mrf.mxu0
    %1410 = vmatprep.mubr.f32.mxu0 0.0
    %1411 = vmatmul.mubr.f32.gmra.mxu0 %v1333
    %v1412 = vpop.f32.mrf.mxu0
    %v1413 = vadd.f32 %v1061, %v1412
    %v1414 = vpop.f32.mrf.mxu0
    %1415 = vmatprep.mubr.f32.mxu0 0.0
    %1416 = vmatmul.mubr.f32.gmra.mxu0 %v1336
    %v1417 = vpop.f32.mrf.mxu0
    %v1418 = vadd.f32 %v1066, %v1417
    %v1419 = vpop.f32.mrf.mxu0
    %1420 = vmatprep.mubr.f32.mxu0 0.0
    %1421 = vmatmul.mubr.f32.gmra.mxu0 %v1339
    %v1422 = vpop.f32.mrf.mxu0
    %v1423 = vadd.f32 %v1071, %v1422
    %v1424 = vpop.f32.mrf.mxu0
    %1425 = vdwg.mxu0
    %1426 = vmatprep.subr.mxu0 0.0
    %1427 = vmatpush1.msra.mxu0 0.0
    %1428 = vmatprep.subr.mxu0 0.0
    %1429 = vmatpush1.msra.mxu0 0.0
    %1430 = vmatprep.subr.mxu0 0.0
    %1431 = vmatpush1.msra.mxu0 0.0
    %1432 = vmatprep.subr.mxu0 0.0
    %1433 = vmatpush1.msra.mxu0 0.0
    %1434 = vmatprep.subr.mxu0 0.0
    %1435 = vmatpush1.msra.mxu0 0.0
    %1436 = vmatprep.subr.mxu0 0.0
    %1437 = vmatpush1.msra.mxu0 0.0
    %1438 = vmatprep.subr.mxu0 0.0
    %1439 = vmatpush1.msra.mxu0 0.0
    %1440 = vmatprep.subr.mxu0 0.0
    %1441 = vmatpush1.msra.mxu0 0.0
    %1442 = vmatprep.subr.mxu0 0.0
    %1443 = vmatpush1.msra.mxu0 0.0
    %1444 = vmatprep.subr.mxu0 0.0
    %1445 = vmatpush1.msra.mxu0 0.0
    %1446 = vmatprep.subr.mxu0 0.0
    %1447 = vmatpush1.msra.mxu0 0.0
    %1448 = vmatprep.subr.mxu0 0.0
    %1449 = vmatpush1.msra.mxu0 0.0
    %1450 = vmatprep.subr.mxu0 0.0
    %1451 = vmatpush1.msra.mxu0 %v173
    %1452 = vmatprep.subr.mxu0 0.0
    %1453 = vmatpush1.msra.mxu0 %v172
    %1454 = vmatprep.subr.mxu0 0.0
    %1455 = vmatpush1.msra.mxu0 %v171
    %1456 = vmatprep.subr.mxu0 0.0
    %1457 = vmatpush1.msra.mxu0 %v170
    %1458 = vmatprep.subr.mxu0 0.0
    %1459 = vmatpush2.msra.mxu0 0.0
    %1460 = vmatprep.subr.mxu0 0.0
    %1461 = vmatpush2.msra.mxu0 0.0
    %1462 = vmatprep.subr.mxu0 0.0
    %1463 = vmatpush2.msra.mxu0 0.0
    %1464 = vmatprep.subr.mxu0 0.0
    %1465 = vmatpush2.msra.mxu0 0.0
    %1466 = vmatprep.subr.mxu0 0.0
    %1467 = vmatpush2.msra.mxu0 0.0
    %1468 = vmatprep.subr.mxu0 0.0
    %1469 = vmatpush2.msra.mxu0 0.0
    %1470 = vmatprep.subr.mxu0 0.0
    %1471 = vmatpush2.msra.mxu0 0.0
    %1472 = vmatprep.subr.mxu0 0.0
    %1473 = vmatpush2.msra.mxu0 0.0
    %1474 = vmatprep.subr.mxu0 0.0
    %1475 = vmatpush2.msra.mxu0 0.0
    %1476 = vmatprep.subr.mxu0 0.0
    %1477 = vmatpush2.msra.mxu0 0.0
    %1478 = vmatprep.subr.mxu0 0.0
    %1479 = vmatpush2.msra.mxu0 0.0
    %1480 = vmatprep.subr.mxu0 0.0
    %1481 = vmatpush2.msra.mxu0 0.0
    %1482 = vmatprep.subr.mxu0 0.0
    %1483 = vmatpush2.msra.mxu0 0.0
    %1484 = vmatprep.subr.mxu0 0.0
    %1485 = vmatpush2.msra.mxu0 0.0
    %1486 = vmatprep.subr.mxu0 0.0
    %1487 = vmatpush2.msra.mxu0 0.0
    %1488 = vmatprep.subr.mxu0 0.0
    %1489 = vmatpush2.msra.mxu0 0.0
    %1490 = vmatprep.mubr.f32.mxu0 0.0
    %1491 = vmatmul.mubr.f32.gmra.mxu0 %v1330
    %v1492 = vpop.f32.mrf.mxu0
    %v1493 = vadd.f32 %v1141, %v1492
    %v1494 = vpop.f32.mrf.mxu0
    %1495 = vmatprep.mubr.f32.mxu0 0.0
    %1496 = vmatmul.mubr.f32.gmra.mxu0 %v1333
    %v1497 = vpop.f32.mrf.mxu0
    %v1498 = vadd.f32 %v1146, %v1497
    %v1499 = vpop.f32.mrf.mxu0
    %1500 = vmatprep.mubr.f32.mxu0 0.0
    %1501 = vmatmul.mubr.f32.gmra.mxu0 %v1336
    %v1502 = vpop.f32.mrf.mxu0
    %v1503 = vadd.f32 %v1151, %v1502
    %v1504 = vpop.f32.mrf.mxu0
    %1505 = vmatprep.mubr.f32.mxu0 0.0
    %1506 = vmatmul.mubr.f32.gmra.mxu0 %v1339
    %v1507 = vpop.f32.mrf.mxu0
    %v1508 = vadd.f32 %v1156, %v1507
    %v1509 = vpop.f32.mrf.mxu0
    %1510 = vdwg.mxu0
    %1511 = vmatprep.subr.mxu0 0.0
    %1512 = vmatpush1.msra.mxu0 0.0
    %1513 = vmatprep.subr.mxu0 0.0
    %1514 = vmatpush1.msra.mxu0 0.0
    %1515 = vmatprep.subr.mxu0 0.0
    %1516 = vmatpush1.msra.mxu0 0.0
    %1517 = vmatprep.subr.mxu0 0.0
    %1518 = vmatpush1.msra.mxu0 0.0
    %1519 = vmatprep.subr.mxu0 0.0
    %1520 = vmatpush1.msra.mxu0 0.0
    %1521 = vmatprep.subr.mxu0 0.0
    %1522 = vmatpush1.msra.mxu0 0.0
    %1523 = vmatprep.subr.mxu0 0.0
    %1524 = vmatpush1.msra.mxu0 0.0
    %1525 = vmatprep.subr.mxu0 0.0
    %1526 = vmatpush1.msra.mxu0 0.0
    %1527 = vmatprep.subr.mxu0 0.0
    %1528 = vmatpush1.msra.mxu0 0.0
    %1529 = vmatprep.subr.mxu0 0.0
    %1530 = vmatpush1.msra.mxu0 0.0
    %1531 = vmatprep.subr.mxu0 0.0
    %1532 = vmatpush1.msra.mxu0 0.0
    %1533 = vmatprep.subr.mxu0 0.0
    %1534 = vmatpush1.msra.mxu0 0.0
    %1535 = vmatprep.subr.mxu0 0.0
    %1536 = vmatpush1.msra.mxu0 %v177
    %1537 = vmatprep.subr.mxu0 0.0
    %1538 = vmatpush1.msra.mxu0 %v176
    %1539 = vmatprep.subr.mxu0 0.0
    %1540 = vmatpush1.msra.mxu0 %v175
    %1541 = vmatprep.subr.mxu0 0.0
    %1542 = vmatpush1.msra.mxu0 %v174
    %1543 = vmatprep.subr.mxu0 0.0
    %1544 = vmatpush2.msra.mxu0 0.0
    %1545 = vmatprep.subr.mxu0 0.0
    %1546 = vmatpush2.msra.mxu0 0.0
    %1547 = vmatprep.subr.mxu0 0.0
    %1548 = vmatpush2.msra.mxu0 0.0
    %1549 = vmatprep.subr.mxu0 0.0
    %1550 = vmatpush2.msra.mxu0 0.0
    %1551 = vmatprep.subr.mxu0 0.0
    %1552 = vmatpush2.msra.mxu0 0.0
    %1553 = vmatprep.subr.mxu0 0.0
    %1554 = vmatpush2.msra.mxu0 0.0
    %1555 = vmatprep.subr.mxu0 0.0
    %1556 = vmatpush2.msra.mxu0 0.0
    %1557 = vmatprep.subr.mxu0 0.0
    %1558 = vmatpush2.msra.mxu0 0.0
    %1559 = vmatprep.subr.mxu0 0.0
    %1560 = vmatpush2.msra.mxu0 0.0
    %1561 = vmatprep.subr.mxu0 0.0
    %1562 = vmatpush2.msra.mxu0 0.0
    %1563 = vmatprep.subr.mxu0 0.0
    %1564 = vmatpush2.msra.mxu0 0.0
    %1565 = vmatprep.subr.mxu0 0.0
    %1566 = vmatpush2.msra.mxu0 0.0
    %1567 = vmatprep.subr.mxu0 0.0
    %1568 = vmatpush2.msra.mxu0 0.0
    %1569 = vmatprep.subr.mxu0 0.0
    %1570 = vmatpush2.msra.mxu0 0.0
    %1571 = vmatprep.subr.mxu0 0.0
    %1572 = vmatpush2.msra.mxu0 0.0
    %1573 = vmatprep.subr.mxu0 0.0
    %1574 = vmatpush2.msra.mxu0 0.0
    %1575 = vmatprep.mubr.f32.mxu0 0.0
    %1576 = vmatmul.mubr.f32.gmra.mxu0 %v1330
    %v1577 = vpop.f32.mrf.mxu0
    %v1578 = vadd.f32 %v1226, %v1577
    %v1579 = vpop.f32.mrf.mxu0
    %1580 = vmatprep.mubr.f32.mxu0 0.0
    %1581 = vmatmul.mubr.f32.gmra.mxu0 %v1333
    %v1582 = vpop.f32.mrf.mxu0
    %v1583 = vadd.f32 %v1231, %v1582
    %v1584 = vpop.f32.mrf.mxu0
    %1585 = vmatprep.mubr.f32.mxu0 0.0
    %1586 = vmatmul.mubr.f32.gmra.mxu0 %v1336
    %v1587 = vpop.f32.mrf.mxu0
    %v1588 = vadd.f32 %v1236, %v1587
    %v1589 = vpop.f32.mrf.mxu0
    %1590 = vmatprep.mubr.f32.mxu0 0.0
    %1591 = vmatmul.mubr.f32.gmra.mxu0 %v1339
    %v1592 = vpop.f32.mrf.mxu0
    %v1593 = vadd.f32 %v1241, %v1592
    %v1594 = vpop.f32.mrf.mxu0
    %1595 = vdwg.mxu0
    %1596 = vmatprep.subr.mxu0 0.0
    %1597 = vmatpush1.msra.mxu0 0.0
    %1598 = vmatprep.subr.mxu0 0.0
    %1599 = vmatpush1.msra.mxu0 0.0
    %1600 = vmatprep.subr.mxu0 0.0
    %1601 = vmatpush1.msra.mxu0 0.0
    %1602 = vmatprep.subr.mxu0 0.0
    %1603 = vmatpush1.msra.mxu0 0.0
    %1604 = vmatprep.subr.mxu0 0.0
    %1605 = vmatpush1.msra.mxu0 0.0
    %1606 = vmatprep.subr.mxu0 0.0
    %1607 = vmatpush1.msra.mxu0 0.0
    %1608 = vmatprep.subr.mxu0 0.0
    %1609 = vmatpush1.msra.mxu0 0.0
    %1610 = vmatprep.subr.mxu0 0.0
    %1611 = vmatpush1.msra.mxu0 0.0
    %1612 = vmatprep.subr.mxu0 0.0
    %1613 = vmatpush1.msra.mxu0 0.0
    %1614 = vmatprep.subr.mxu0 0.0
    %1615 = vmatpush1.msra.mxu0 0.0
    %1616 = vmatprep.subr.mxu0 0.0
    %1617 = vmatpush1.msra.mxu0 0.0
    %1618 = vmatprep.subr.mxu0 0.0
    %1619 = vmatpush1.msra.mxu0 0.0
    %1620 = vmatprep.subr.mxu0 0.0
    %1621 = vmatpush1.msra.mxu0 %v181
    %1622 = vmatprep.subr.mxu0 0.0
    %1623 = vmatpush1.msra.mxu0 %v180
    %1624 = vmatprep.subr.mxu0 0.0
    %1625 = vmatpush1.msra.mxu0 %v179
    %1626 = vmatprep.subr.mxu0 0.0
    %1627 = vmatpush1.msra.mxu0 %v178
    %1628 = vmatprep.subr.mxu0 0.0
    %1629 = vmatpush2.msra.mxu0 0.0
    %1630 = vmatprep.subr.mxu0 0.0
    %1631 = vmatpush2.msra.mxu0 0.0
    %1632 = vmatprep.subr.mxu0 0.0
    %1633 = vmatpush2.msra.mxu0 0.0
    %1634 = vmatprep.subr.mxu0 0.0
    %1635 = vmatpush2.msra.mxu0 0.0
    %1636 = vmatprep.subr.mxu0 0.0
    %1637 = vmatpush2.msra.mxu0 0.0
    %1638 = vmatprep.subr.mxu0 0.0
    %1639 = vmatpush2.msra.mxu0 0.0
    %1640 = vmatprep.subr.mxu0 0.0
    %1641 = vmatpush2.msra.mxu0 0.0
    %1642 = vmatprep.subr.mxu0 0.0
    %1643 = vmatpush2.msra.mxu0 0.0
    %1644 = vmatprep.subr.mxu0 0.0
    %1645 = vmatpush2.msra.mxu0 0.0
    %1646 = vmatprep.subr.mxu0 0.0
    %1647 = vmatpush2.msra.mxu0 0.0
    %1648 = vmatprep.subr.mxu0 0.0
    %1649 = vmatpush2.msra.mxu0 0.0
    %1650 = vmatprep.subr.mxu0 0.0
    %1651 = vmatpush2.msra.mxu0 0.0
    %1652 = vmatprep.subr.mxu0 0.0
    %1653 = vmatpush2.msra.mxu0 0.0
    %1654 = vmatprep.subr.mxu0 0.0
    %1655 = vmatpush2.msra.mxu0 0.0
    %1656 = vmatprep.subr.mxu0 0.0
    %1657 = vmatpush2.msra.mxu0 0.0
    %1658 = vmatprep.subr.mxu0 0.0
    %1659 = vmatpush2.msra.mxu0 0.0
    %1660 = vmatprep.mubr.f32.mxu0 0.0
    %1661 = vmatmul.mubr.f32.gmra.mxu0 %v1330
    %v1662 = vpop.f32.mrf.mxu0
    %v1663 = vadd.f32 %v1311, %v1662
    %v1664 = vpop.f32.mrf.mxu0
    %1665 = vmatprep.mubr.f32.mxu0 0.0
    %1666 = vmatmul.mubr.f32.gmra.mxu0 %v1333
    %v1667 = vpop.f32.mrf.mxu0
    %v1668 = vadd.f32 %v1316, %v1667
    %v1669 = vpop.f32.mrf.mxu0
    %1670 = vmatprep.mubr.f32.mxu0 0.0
    %1671 = vmatmul.mubr.f32.gmra.mxu0 %v1336
    %v1672 = vpop.f32.mrf.mxu0
    %v1673 = vadd.f32 %v1321, %v1672
    %v1674 = vpop.f32.mrf.mxu0
    %1675 = vmatprep.mubr.f32.mxu0 0.0
    %1676 = vmatmul.mubr.f32.gmra.mxu0 %v1339
    %v1677 = vpop.f32.mrf.mxu0
    %v1678 = vadd.f32 %v1326, %v1677
    %v1679 = vpop.f32.mrf.mxu0
    %1680 = vdwg.mxu0
    %v1681 = vld [vmem:[%s7] sm:$0xff]
    %v1682 = vld [vmem:[%s7 + $0x8] sm:$0xff]
    %v1683 = vld [vmem:[%s7 + $0x10] sm:$0xff]
    %v1684 = vld [vmem:[%s7 + $0x18] sm:$0xff]
    %1686 = vset.pattern.permute.xlu0 0
    %1687 = vperm.xlu0 %1686, %v1681
    %v1688 = vpop.permute.xlu0 %1687
    %1691 = vset.pattern.permute.xlu0 0
    %1692 = vperm.xlu0 %1691, %v1682
    %v1693 = vpop.permute.xlu0 %1692
    %1696 = vset.pattern.permute.xlu0 0
    %1697 = vperm.xlu0 %1696, %v1683
    %v1698 = vpop.permute.xlu0 %1697
    %1701 = vset.pattern.permute.xlu0 0
    %1702 = vperm.xlu0 %1701, %v1684
    %v1703 = vpop.permute.xlu0 %1702
    %v1705 = vadd.f32 %v1408, %v1688
    %v1706 = vadd.f32 %v1413, %v1693
    %v1707 = vadd.f32 %v1418, %v1698
    %v1708 = vadd.f32 %v1423, %v1703
    %v1709 = vadd.f32 %v1493, %v1688
    %v1710 = vadd.f32 %v1498, %v1693
    %v1711 = vadd.f32 %v1503, %v1698
    %v1712 = vadd.f32 %v1508, %v1703
    %v1713 = vadd.f32 %v1578, %v1688
    %v1714 = vadd.f32 %v1583, %v1693
    %v1715 = vadd.f32 %v1588, %v1698
    %v1716 = vadd.f32 %v1593, %v1703
    %v1717 = vadd.f32 %v1663, %v1688
    %v1718 = vadd.f32 %v1668, %v1693
    %v1719 = vadd.f32 %v1673, %v1698
    %v1720 = vadd.f32 %v1678, %v1703
    %v1721 = vsub.f32 0.0, %v1705
    %v1722 = vsub.f32 0.0, %v1706
    %v1723 = vsub.f32 0.0, %v1707
    %v1724 = vsub.f32 0.0, %v1708
    %v1725 = vsub.f32 0.0, %v1709
    %v1726 = vsub.f32 0.0, %v1710
    %v1727 = vsub.f32 0.0, %v1711
    %v1728 = vsub.f32 0.0, %v1712
    %v1729 = vsub.f32 0.0, %v1713
    %v1730 = vsub.f32 0.0, %v1714
    %v1731 = vsub.f32 0.0, %v1715
    %v1732 = vsub.f32 0.0, %v1716
    %v1733 = vsub.f32 0.0, %v1717
    %v1734 = vsub.f32 0.0, %v1718
    %v1735 = vsub.f32 0.0, %v1719
    %v1736 = vsub.f32 0.0, %v1720
    %v1737 = vmul.f32 %v1721, 1.442695
    %v1738 = vpow.pop %v1737
    %v1739 = vmul.f32 %v1722, 1.442695
    %v1740 = vpow.pop %v1739
    %v1741 = vmul.f32 %v1723, 1.442695
    %v1742 = vpow.pop %v1741
    %v1743 = vmul.f32 %v1724, 1.442695
    %v1744 = vpow.pop %v1743
    %v1745 = vmul.f32 %v1725, 1.442695
    %v1746 = vpow.pop %v1745
    %v1747 = vmul.f32 %v1726, 1.442695
    %v1748 = vpow.pop %v1747
    %v1749 = vmul.f32 %v1727, 1.442695
    %v1750 = vpow.pop %v1749
    %v1751 = vmul.f32 %v1728, 1.442695
    %v1752 = vpow.pop %v1751
    %v1753 = vmul.f32 %v1729, 1.442695
    %v1754 = vpow.pop %v1753
    %v1755 = vmul.f32 %v1730, 1.442695
    %v1756 = vpow.pop %v1755
    %v1757 = vmul.f32 %v1731, 1.442695
    %v1758 = vpow.pop %v1757
    %v1759 = vmul.f32 %v1732, 1.442695
    %v1760 = vpow.pop %v1759
    %v1761 = vmul.f32 %v1733, 1.442695
    %v1762 = vpow.pop %v1761
    %v1763 = vmul.f32 %v1734, 1.442695
    %v1764 = vpow.pop %v1763
    %v1765 = vmul.f32 %v1735, 1.442695
    %v1766 = vpow.pop %v1765
    %v1767 = vmul.f32 %v1736, 1.442695
    %v1768 = vpow.pop %v1767
    %v1769 = vadd.f32 %v1738, 1.0
    %v1770 = vadd.f32 %v1740, 1.0
    %v1771 = vadd.f32 %v1742, 1.0
    %v1772 = vadd.f32 %v1744, 1.0
    %v1773 = vadd.f32 %v1746, 1.0
    %v1774 = vadd.f32 %v1748, 1.0
    %v1775 = vadd.f32 %v1750, 1.0
    %v1776 = vadd.f32 %v1752, 1.0
    %v1777 = vadd.f32 %v1754, 1.0
    %v1778 = vadd.f32 %v1756, 1.0
    %v1779 = vadd.f32 %v1758, 1.0
    %v1780 = vadd.f32 %v1760, 1.0
    %v1781 = vadd.f32 %v1762, 1.0
    %v1782 = vadd.f32 %v1764, 1.0
    %v1783 = vadd.f32 %v1766, 1.0
    %v1784 = vadd.f32 %v1768, 1.0
    %v1785 = vrcp.pop %v1769
    %v1786 = vrcp.pop %v1770
    %v1787 = vrcp.pop %v1771
    %v1788 = vrcp.pop %v1772
    %v1789 = vrcp.pop %v1773
    %v1790 = vrcp.pop %v1774
    %v1791 = vrcp.pop %v1775
    %v1792 = vrcp.pop %v1776
    %v1793 = vrcp.pop %v1777
    %v1794 = vrcp.pop %v1778
    %v1795 = vrcp.pop %v1779
    %v1796 = vrcp.pop %v1780
    %v1797 = vrcp.pop %v1781
    %v1798 = vrcp.pop %v1782
    %v1799 = vrcp.pop %v1783
    %v1800 = vrcp.pop %v1784
    %v1802 = vsel %vm194, %v182, 0
    %v1805 = vsel %vm194, %v183, 0
    %v1808 = vsel %vm194, %v184, 0
    %v1811 = vsel %vm194, %v185, 0
    %v1814 = vsel %vm194, %v166, 0
    %v1817 = vsel %vm194, %v167, 0
    %v1820 = vsel %vm194, %v168, 0
    %v1823 = vsel %vm194, %v169, 0
    %1825 = vmatprep.subr.mxu0 0.0
    %1826 = vmatpush1.xpose.msra.mxu0 0.0
    %1827 = vmatprep.subr.mxu0 0.0
    %1828 = vmatpush1.xpose.msra.mxu0 0.0
    %1829 = vmatprep.subr.mxu0 0.0
    %1830 = vmatpush1.xpose.msra.mxu0 0.0
    %1831 = vmatprep.subr.mxu0 0.0
    %1832 = vmatpush1.xpose.msra.mxu0 0.0
    %1833 = vmatprep.subr.mxu0 0.0
    %1834 = vmatpush1.xpose.msra.mxu0 0.0
    %1835 = vmatprep.subr.mxu0 0.0
    %1836 = vmatpush1.xpose.msra.mxu0 0.0
    %1837 = vmatprep.subr.mxu0 0.0
    %1838 = vmatpush1.xpose.msra.mxu0 0.0
    %1839 = vmatprep.subr.mxu0 0.0
    %1840 = vmatpush1.xpose.msra.mxu0 0.0
    %1841 = vmatprep.subr.mxu0 0.0
    %1842 = vmatpush1.xpose.msra.mxu0 0.0
    %1843 = vmatprep.subr.mxu0 0.0
    %1844 = vmatpush1.xpose.msra.mxu0 0.0
    %1845 = vmatprep.subr.mxu0 0.0
    %1846 = vmatpush1.xpose.msra.mxu0 0.0
    %1847 = vmatprep.subr.mxu0 0.0
    %1848 = vmatpush1.xpose.msra.mxu0 0.0
    %1849 = vmatprep.subr.mxu0 0.0
    %1850 = vmatpush1.xpose.msra.mxu0 %v1823
    %1851 = vmatprep.subr.mxu0 0.0
    %1852 = vmatpush1.xpose.msra.mxu0 %v1820
    %1853 = vmatprep.subr.mxu0 0.0
    %1854 = vmatpush1.xpose.msra.mxu0 %v1817
    %1855 = vmatprep.subr.mxu0 0.0
    %1856 = vmatpush1.xpose.msra.mxu0 %v1814
    %1857 = vmatprep.subr.mxu0 0.0
    %1858 = vmatpush2.xpose.msra.mxu0 0.0
    %1859 = vmatprep.subr.mxu0 0.0
    %1860 = vmatpush2.xpose.msra.mxu0 0.0
    %1861 = vmatprep.subr.mxu0 0.0
    %1862 = vmatpush2.xpose.msra.mxu0 0.0
    %1863 = vmatprep.subr.mxu0 0.0
    %1864 = vmatpush2.xpose.msra.mxu0 0.0
    %1865 = vmatprep.subr.mxu0 0.0
    %1866 = vmatpush2.xpose.msra.mxu0 0.0
    %1867 = vmatprep.subr.mxu0 0.0
    %1868 = vmatpush2.xpose.msra.mxu0 0.0
    %1869 = vmatprep.subr.mxu0 0.0
    %1870 = vmatpush2.xpose.msra.mxu0 0.0
    %1871 = vmatprep.subr.mxu0 0.0
    %1872 = vmatpush2.xpose.msra.mxu0 0.0
    %1873 = vmatprep.subr.mxu0 0.0
    %1874 = vmatpush2.xpose.msra.mxu0 0.0
    %1875 = vmatprep.subr.mxu0 0.0
    %1876 = vmatpush2.xpose.msra.mxu0 0.0
    %1877 = vmatprep.subr.mxu0 0.0
    %1878 = vmatpush2.xpose.msra.mxu0 0.0
    %1879 = vmatprep.subr.mxu0 0.0
    %1880 = vmatpush2.xpose.msra.mxu0 0.0
    %1881 = vmatprep.subr.mxu0 0.0
    %1882 = vmatpush2.xpose.msra.mxu0 0.0
    %1883 = vmatprep.subr.mxu0 0.0
    %1884 = vmatpush2.xpose.msra.mxu0 0.0
    %1885 = vmatprep.subr.mxu0 0.0
    %1886 = vmatpush2.xpose.msra.mxu0 0.0
    %1887 = vmatprep.subr.mxu0 0.0
    %1888 = vmatpush2.xpose.msra.mxu0 0.0
    %1889 = vmatprep.mubr.f32.mxu0 0.0
    %1890 = vmatmul.mubr.f32.gmra.mxu0 %v1802
    %v1891 = vpop.f32.mrf.mxu0
    %v1892 = vadd.f32 0.0, %v1891
    %v1893 = vpop.f32.mrf.mxu0
    %1894 = vmatprep.mubr.f32.mxu0 0.0
    %1895 = vmatmul.mubr.f32.gmra.mxu0 %v1805
    %v1896 = vpop.f32.mrf.mxu0
    %v1897 = vadd.f32 0.0, %v1896
    %v1898 = vpop.f32.mrf.mxu0
    %1899 = vmatprep.mubr.f32.mxu0 0.0
    %1900 = vmatmul.mubr.f32.gmra.mxu0 %v1808
    %v1901 = vpop.f32.mrf.mxu0
    %v1902 = vadd.f32 0.0, %v1901
    %v1903 = vpop.f32.mrf.mxu0
    %1904 = vmatprep.mubr.f32.mxu0 0.0
    %1905 = vmatmul.mubr.f32.gmra.mxu0 %v1811
    %v1906 = vpop.f32.mrf.mxu0
    %v1907 = vadd.f32 0.0, %v1906
    %v1908 = vpop.f32.mrf.mxu0
    %1909 = vdwg.mxu0
    %v1911 = vsel %vm194, %v170, 0
    %v1914 = vsel %vm194, %v171, 0
    %v1917 = vsel %vm194, %v172, 0
    %v1920 = vsel %vm194, %v173, 0
    %1922 = vmatprep.subr.mxu0 0.0
    %1923 = vmatpush1.xpose.msra.mxu0 0.0
    %1924 = vmatprep.subr.mxu0 0.0
    %1925 = vmatpush1.xpose.msra.mxu0 0.0
    %1926 = vmatprep.subr.mxu0 0.0
    %1927 = vmatpush1.xpose.msra.mxu0 0.0
    %1928 = vmatprep.subr.mxu0 0.0
    %1929 = vmatpush1.xpose.msra.mxu0 0.0
    %1930 = vmatprep.subr.mxu0 0.0
    %1931 = vmatpush1.xpose.msra.mxu0 0.0
    %1932 = vmatprep.subr.mxu0 0.0
    %1933 = vmatpush1.xpose.msra.mxu0 0.0
    %1934 = vmatprep.subr.mxu0 0.0
    %1935 = vmatpush1.xpose.msra.mxu0 0.0
    %1936 = vmatprep.subr.mxu0 0.0
    %1937 = vmatpush1.xpose.msra.mxu0 0.0
    %1938 = vmatprep.subr.mxu0 0.0
    %1939 = vmatpush1.xpose.msra.mxu0 0.0
    %1940 = vmatprep.subr.mxu0 0.0
    %1941 = vmatpush1.xpose.msra.mxu0 0.0
    %1942 = vmatprep.subr.mxu0 0.0
    %1943 = vmatpush1.xpose.msra.mxu0 0.0
    %1944 = vmatprep.subr.mxu0 0.0
    %1945 = vmatpush1.xpose.msra.mxu0 0.0
    %1946 = vmatprep.subr.mxu0 0.0
    %1947 = vmatpush1.xpose.msra.mxu0 %v1920
    %1948 = vmatprep.subr.mxu0 0.0
    %1949 = vmatpush1.xpose.msra.mxu0 %v1917
    %1950 = vmatprep.subr.mxu0 0.0
    %1951 = vmatpush1.xpose.msra.mxu0 %v1914
    %1952 = vmatprep.subr.mxu0 0.0
    %1953 = vmatpush1.xpose.msra.mxu0 %v1911
    %1954 = vmatprep.subr.mxu0 0.0
    %1955 = vmatpush2.xpose.msra.mxu0 0.0
    %1956 = vmatprep.subr.mxu0 0.0
    %1957 = vmatpush2.xpose.msra.mxu0 0.0
    %1958 = vmatprep.subr.mxu0 0.0
    %1959 = vmatpush2.xpose.msra.mxu0 0.0
    %1960 = vmatprep.subr.mxu0 0.0
    %1961 = vmatpush2.xpose.msra.mxu0 0.0
    %1962 = vmatprep.subr.mxu0 0.0
    %1963 = vmatpush2.xpose.msra.mxu0 0.0
    %1964 = vmatprep.subr.mxu0 0.0
    %1965 = vmatpush2.xpose.msra.mxu0 0.0
    %1966 = vmatprep.subr.mxu0 0.0
    %1967 = vmatpush2.xpose.msra.mxu0 0.0
    %1968 = vmatprep.subr.mxu0 0.0
    %1969 = vmatpush2.xpose.msra.mxu0 0.0
    %1970 = vmatprep.subr.mxu0 0.0
    %1971 = vmatpush2.xpose.msra.mxu0 0.0
    %1972 = vmatprep.subr.mxu0 0.0
    %1973 = vmatpush2.xpose.msra.mxu0 0.0
    %1974 = vmatprep.subr.mxu0 0.0
    %1975 = vmatpush2.xpose.msra.mxu0 0.0
    %1976 = vmatprep.subr.mxu0 0.0
    %1977 = vmatpush2.xpose.msra.mxu0 0.0
    %1978 = vmatprep.subr.mxu0 0.0
    %1979 = vmatpush2.xpose.msra.mxu0 0.0
    %1980 = vmatprep.subr.mxu0 0.0
    %1981 = vmatpush2.xpose.msra.mxu0 0.0
    %1982 = vmatprep.subr.mxu0 0.0
    %1983 = vmatpush2.xpose.msra.mxu0 0.0
    %1984 = vmatprep.subr.mxu0 0.0
    %1985 = vmatpush2.xpose.msra.mxu0 0.0
    %1986 = vmatprep.mubr.f32.mxu0 0.0
    %1987 = vmatmul.mubr.f32.gmra.mxu0 %v1802
    %v1988 = vpop.f32.mrf.mxu0
    %v1989 = vadd.f32 0.0, %v1988
    %v1990 = vpop.f32.mrf.mxu0
    %1991 = vmatprep.mubr.f32.mxu0 0.0
    %1992 = vmatmul.mubr.f32.gmra.mxu0 %v1805
    %v1993 = vpop.f32.mrf.mxu0
    %v1994 = vadd.f32 0.0, %v1993
    %v1995 = vpop.f32.mrf.mxu0
    %1996 = vmatprep.mubr.f32.mxu0 0.0
    %1997 = vmatmul.mubr.f32.gmra.mxu0 %v1808
    %v1998 = vpop.f32.mrf.mxu0
    %v1999 = vadd.f32 0.0, %v1998
    %v2000 = vpop.f32.mrf.mxu0
    %2001 = vmatprep.mubr.f32.mxu0 0.0
    %2002 = vmatmul.mubr.f32.gmra.mxu0 %v1811
    %v2003 = vpop.f32.mrf.mxu0
    %v2004 = vadd.f32 0.0, %v2003
    %v2005 = vpop.f32.mrf.mxu0
    %2006 = vdwg.mxu0
    %v2008 = vsel %vm194, %v174, 0
    %v2011 = vsel %vm194, %v175, 0
    %v2014 = vsel %vm194, %v176, 0
    %v2017 = vsel %vm194, %v177, 0
    %2019 = vmatprep.subr.mxu0 0.0
    %2020 = vmatpush1.xpose.msra.mxu0 0.0
    %2021 = vmatprep.subr.mxu0 0.0
    %2022 = vmatpush1.xpose.msra.mxu0 0.0
    %2023 = vmatprep.subr.mxu0 0.0
    %2024 = vmatpush1.xpose.msra.mxu0 0.0
    %2025 = vmatprep.subr.mxu0 0.0
    %2026 = vmatpush1.xpose.msra.mxu0 0.0
    %2027 = vmatprep.subr.mxu0 0.0
    %2028 = vmatpush1.xpose.msra.mxu0 0.0
    %2029 = vmatprep.subr.mxu0 0.0
    %2030 = vmatpush1.xpose.msra.mxu0 0.0
    %2031 = vmatprep.subr.mxu0 0.0
    %2032 = vmatpush1.xpose.msra.mxu0 0.0
    %2033 = vmatprep.subr.mxu0 0.0
    %2034 = vmatpush1.xpose.msra.mxu0 0.0
    %2035 = vmatprep.subr.mxu0 0.0
    %2036 = vmatpush1.xpose.msra.mxu0 0.0
    %2037 = vmatprep.subr.mxu0 0.0
    %2038 = vmatpush1.xpose.msra.mxu0 0.0
    %2039 = vmatprep.subr.mxu0 0.0
    %2040 = vmatpush1.xpose.msra.mxu0 0.0
    %2041 = vmatprep.subr.mxu0 0.0
    %2042 = vmatpush1.xpose.msra.mxu0 0.0
    %2043 = vmatprep.subr.mxu0 0.0
    %2044 = vmatpush1.xpose.msra.mxu0 %v2017
    %2045 = vmatprep.subr.mxu0 0.0
    %2046 = vmatpush1.xpose.msra.mxu0 %v2014
    %2047 = vmatprep.subr.mxu0 0.0
    %2048 = vmatpush1.xpose.msra.mxu0 %v2011
    %2049 = vmatprep.subr.mxu0 0.0
    %2050 = vmatpush1.xpose.msra.mxu0 %v2008
    %2051 = vmatprep.subr.mxu0 0.0
    %2052 = vmatpush2.xpose.msra.mxu0 0.0
    %2053 = vmatprep.subr.mxu0 0.0
    %2054 = vmatpush2.xpose.msra.mxu0 0.0
    %2055 = vmatprep.subr.mxu0 0.0
    %2056 = vmatpush2.xpose.msra.mxu0 0.0
    %2057 = vmatprep.subr.mxu0 0.0
    %2058 = vmatpush2.xpose.msra.mxu0 0.0
    %2059 = vmatprep.subr.mxu0 0.0
    %2060 = vmatpush2.xpose.msra.mxu0 0.0
    %2061 = vmatprep.subr.mxu0 0.0
    %2062 = vmatpush2.xpose.msra.mxu0 0.0
    %2063 = vmatprep.subr.mxu0 0.0
    %2064 = vmatpush2.xpose.msra.mxu0 0.0
    %2065 = vmatprep.subr.mxu0 0.0
    %2066 = vmatpush2.xpose.msra.mxu0 0.0
    %2067 = vmatprep.subr.mxu0 0.0
    %2068 = vmatpush2.xpose.msra.mxu0 0.0
    %2069 = vmatprep.subr.mxu0 0.0
    %2070 = vmatpush2.xpose.msra.mxu0 0.0
    %2071 = vmatprep.subr.mxu0 0.0
    %2072 = vmatpush2.xpose.msra.mxu0 0.0
    %2073 = vmatprep.subr.mxu0 0.0
    %2074 = vmatpush2.xpose.msra.mxu0 0.0
    %2075 = vmatprep.subr.mxu0 0.0
    %2076 = vmatpush2.xpose.msra.mxu0 0.0
    %2077 = vmatprep.subr.mxu0 0.0
    %2078 = vmatpush2.xpose.msra.mxu0 0.0
    %2079 = vmatprep.subr.mxu0 0.0
    %2080 = vmatpush2.xpose.msra.mxu0 0.0
    %2081 = vmatprep.subr.mxu0 0.0
    %2082 = vmatpush2.xpose.msra.mxu0 0.0
    %2083 = vmatprep.mubr.f32.mxu0 0.0
    %2084 = vmatmul.mubr.f32.gmra.mxu0 %v1802
    %v2085 = vpop.f32.mrf.mxu0
    %v2086 = vadd.f32 0.0, %v2085
    %v2087 = vpop.f32.mrf.mxu0
    %2088 = vmatprep.mubr.f32.mxu0 0.0
    %2089 = vmatmul.mubr.f32.gmra.mxu0 %v1805
    %v2090 = vpop.f32.mrf.mxu0
    %v2091 = vadd.f32 0.0, %v2090
    %v2092 = vpop.f32.mrf.mxu0
    %2093 = vmatprep.mubr.f32.mxu0 0.0
    %2094 = vmatmul.mubr.f32.gmra.mxu0 %v1808
    %v2095 = vpop.f32.mrf.mxu0
    %v2096 = vadd.f32 0.0, %v2095
    %v2097 = vpop.f32.mrf.mxu0
    %2098 = vmatprep.mubr.f32.mxu0 0.0
    %2099 = vmatmul.mubr.f32.gmra.mxu0 %v1811
    %v2100 = vpop.f32.mrf.mxu0
    %v2101 = vadd.f32 0.0, %v2100
    %v2102 = vpop.f32.mrf.mxu0
    %2103 = vdwg.mxu0
    %v2105 = vsel %vm194, %v178, 0
    %v2108 = vsel %vm194, %v179, 0
    %v2111 = vsel %vm194, %v180, 0
    %v2114 = vsel %vm194, %v181, 0
    %2116 = vmatprep.subr.mxu0 0.0
    %2117 = vmatpush1.xpose.msra.mxu0 0.0
    %2118 = vmatprep.subr.mxu0 0.0
    %2119 = vmatpush1.xpose.msra.mxu0 0.0
    %2120 = vmatprep.subr.mxu0 0.0
    %2121 = vmatpush1.xpose.msra.mxu0 0.0
    %2122 = vmatprep.subr.mxu0 0.0
    %2123 = vmatpush1.xpose.msra.mxu0 0.0
    %2124 = vmatprep.subr.mxu0 0.0
    %2125 = vmatpush1.xpose.msra.mxu0 0.0
    %2126 = vmatprep.subr.mxu0 0.0
    %2127 = vmatpush1.xpose.msra.mxu0 0.0
    %2128 = vmatprep.subr.mxu0 0.0
    %2129 = vmatpush1.xpose.msra.mxu0 0.0
    %2130 = vmatprep.subr.mxu0 0.0
    %2131 = vmatpush1.xpose.msra.mxu0 0.0
    %2132 = vmatprep.subr.mxu0 0.0
    %2133 = vmatpush1.xpose.msra.mxu0 0.0
    %2134 = vmatprep.subr.mxu0 0.0
    %2135 = vmatpush1.xpose.msra.mxu0 0.0
    %2136 = vmatprep.subr.mxu0 0.0
    %2137 = vmatpush1.xpose.msra.mxu0 0.0
    %2138 = vmatprep.subr.mxu0 0.0
    %2139 = vmatpush1.xpose.msra.mxu0 0.0
    %2140 = vmatprep.subr.mxu0 0.0
    %2141 = vmatpush1.xpose.msra.mxu0 %v2114
    %2142 = vmatprep.subr.mxu0 0.0
    %2143 = vmatpush1.xpose.msra.mxu0 %v2111
    %2144 = vmatprep.subr.mxu0 0.0
    %2145 = vmatpush1.xpose.msra.mxu0 %v2108
    %2146 = vmatprep.subr.mxu0 0.0
    %2147 = vmatpush1.xpose.msra.mxu0 %v2105
    %2148 = vmatprep.subr.mxu0 0.0
    %2149 = vmatpush2.xpose.msra.mxu0 0.0
    %2150 = vmatprep.subr.mxu0 0.0
    %2151 = vmatpush2.xpose.msra.mxu0 0.0
    %2152 = vmatprep.subr.mxu0 0.0
    %2153 = vmatpush2.xpose.msra.mxu0 0.0
    %2154 = vmatprep.subr.mxu0 0.0
    %2155 = vmatpush2.xpose.msra.mxu0 0.0
    %2156 = vmatprep.subr.mxu0 0.0
    %2157 = vmatpush2.xpose.msra.mxu0 0.0
    %2158 = vmatprep.subr.mxu0 0.0
    %2159 = vmatpush2.xpose.msra.mxu0 0.0
    %2160 = vmatprep.subr.mxu0 0.0
    %2161 = vmatpush2.xpose.msra.mxu0 0.0
    %2162 = vmatprep.subr.mxu0 0.0
    %2163 = vmatpush2.xpose.msra.mxu0 0.0
    %2164 = vmatprep.subr.mxu0 0.0
    %2165 = vmatpush2.xpose.msra.mxu0 0.0
    %2166 = vmatprep.subr.mxu0 0.0
    %2167 = vmatpush2.xpose.msra.mxu0 0.0
    %2168 = vmatprep.subr.mxu0 0.0
    %2169 = vmatpush2.xpose.msra.mxu0 0.0
    %2170 = vmatprep.subr.mxu0 0.0
    %2171 = vmatpush2.xpose.msra.mxu0 0.0
    %2172 = vmatprep.subr.mxu0 0.0
    %2173 = vmatpush2.xpose.msra.mxu0 0.0
    %2174 = vmatprep.subr.mxu0 0.0
    %2175 = vmatpush2.xpose.msra.mxu0 0.0
    %2176 = vmatprep.subr.mxu0 0.0
    %2177 = vmatpush2.xpose.msra.mxu0 0.0
    %2178 = vmatprep.subr.mxu0 0.0
    %2179 = vmatpush2.xpose.msra.mxu0 0.0
    %2180 = vmatprep.mubr.f32.mxu0 0.0
    %2181 = vmatmul.mubr.f32.gmra.mxu0 %v1802
    %v2182 = vpop.f32.mrf.mxu0
    %v2183 = vadd.f32 0.0, %v2182
    %v2184 = vpop.f32.mrf.mxu0
    %2185 = vmatprep.mubr.f32.mxu0 0.0
    %2186 = vmatmul.mubr.f32.gmra.mxu0 %v1805
    %v2187 = vpop.f32.mrf.mxu0
    %v2188 = vadd.f32 0.0, %v2187
    %v2189 = vpop.f32.mrf.mxu0
    %2190 = vmatprep.mubr.f32.mxu0 0.0
    %2191 = vmatmul.mubr.f32.gmra.mxu0 %v1808
    %v2192 = vpop.f32.mrf.mxu0
    %v2193 = vadd.f32 0.0, %v2192
    %v2194 = vpop.f32.mrf.mxu0
    %2195 = vmatprep.mubr.f32.mxu0 0.0
    %2196 = vmatmul.mubr.f32.gmra.mxu0 %v1811
    %v2197 = vpop.f32.mrf.mxu0
    %v2198 = vadd.f32 0.0, %v2197
    %v2199 = vpop.f32.mrf.mxu0
    %2200 = vdwg.mxu0
    %v2201 = vmul.f32 %v1892, 0.2
    %v2202 = vmul.f32 %v1897, 0.2
    %v2203 = vmul.f32 %v1902, 0.2
    %v2204 = vmul.f32 %v1907, 0.2
    %v2205 = vmul.f32 %v1989, 0.2
    %v2206 = vmul.f32 %v1994, 0.2
    %v2207 = vmul.f32 %v1999, 0.2
    %v2208 = vmul.f32 %v2004, 0.2
    %v2209 = vmul.f32 %v2086, 0.2
    %v2210 = vmul.f32 %v2091, 0.2
    %v2211 = vmul.f32 %v2096, 0.2
    %v2212 = vmul.f32 %v2101, 0.2
    %v2213 = vmul.f32 %v2183, 0.2
    %v2214 = vmul.f32 %v2188, 0.2
    %v2215 = vmul.f32 %v2193, 0.2
    %v2216 = vmul.f32 %v2198, 0.2
    %v2217 = vmax.f32 %v1892, %v2201
    %v2218 = vmax.f32 %v1897, %v2202
    %v2219 = vmax.f32 %v1902, %v2203
    %v2220 = vmax.f32 %v1907, %v2204
    %v2221 = vmax.f32 %v1989, %v2205
    %v2222 = vmax.f32 %v1994, %v2206
    %v2223 = vmax.f32 %v1999, %v2207
    %v2224 = vmax.f32 %v2004, %v2208
    %v2225 = vmax.f32 %v2086, %v2209
    %v2226 = vmax.f32 %v2091, %v2210
    %v2227 = vmax.f32 %v2096, %v2211
    %v2228 = vmax.f32 %v2101, %v2212
    %v2229 = vmax.f32 %v2183, %v2213
    %v2230 = vmax.f32 %v2188, %v2214
    %v2231 = vmax.f32 %v2193, %v2215
    %v2232 = vmax.f32 %v2198, %v2216
    %2234 = vset.pattern.permute.xlu0 0
    %2235 = vperm.xlu0 %2234, %v190
    %v2236 = vpop.permute.xlu0 %2235
    %2239 = vset.pattern.permute.xlu0 0
    %2240 = vperm.xlu0 %2239, %v191
    %v2241 = vpop.permute.xlu0 %2240
    %2244 = vset.pattern.permute.xlu0 0
    %2245 = vperm.xlu0 %2244, %v192
    %v2246 = vpop.permute.xlu0 %2245
    %2249 = vset.pattern.permute.xlu0 0
    %2250 = vperm.xlu0 %2249, %v193
    %v2251 = vpop.permute.xlu0 %2250
    %v2254 = vsel %vm194, %v186, 0
    %v2257 = vsel %vm194, %v187, 0
    %v2260 = vsel %vm194, %v188, 0
    %v2263 = vsel %vm194, %v189, 0
    %2265 = vmatprep.subr.mxu0 0.0
    %2266 = vmatpush1.msra.mxu0 0.0
    %2267 = vmatprep.subr.mxu0 0.0
    %2268 = vmatpush1.msra.mxu0 0.0
    %2269 = vmatprep.subr.mxu0 0.0
    %2270 = vmatpush1.msra.mxu0 0.0
    %2271 = vmatprep.subr.mxu0 0.0
    %2272 = vmatpush1.msra.mxu0 0.0
    %2273 = vmatprep.subr.mxu0 0.0
    %2274 = vmatpush1.msra.mxu0 0.0
    %2275 = vmatprep.subr.mxu0 0.0
    %2276 = vmatpush1.msra.mxu0 0.0
    %2277 = vmatprep.subr.mxu0 0.0
    %2278 = vmatpush1.msra.mxu0 0.0
    %2279 = vmatprep.subr.mxu0 0.0
    %2280 = vmatpush1.msra.mxu0 0.0
    %2281 = vmatprep.subr.mxu0 0.0
    %2282 = vmatpush1.msra.mxu0 0.0
    %2283 = vmatprep.subr.mxu0 0.0
    %2284 = vmatpush1.msra.mxu0 0.0
    %2285 = vmatprep.subr.mxu0 0.0
    %2286 = vmatpush1.msra.mxu0 0.0
    %2287 = vmatprep.subr.mxu0 0.0
    %2288 = vmatpush1.msra.mxu0 0.0
    %2289 = vmatprep.subr.mxu0 0.0
    %2290 = vmatpush1.msra.mxu0 %v1788
    %2291 = vmatprep.subr.mxu0 0.0
    %2292 = vmatpush1.msra.mxu0 %v1787
    %2293 = vmatprep.subr.mxu0 0.0
    %2294 = vmatpush1.msra.mxu0 %v1786
    %2295 = vmatprep.subr.mxu0 0.0
    %2296 = vmatpush1.msra.mxu0 %v1785
    %2297 = vmatprep.subr.mxu0 0.0
    %2298 = vmatpush2.msra.mxu0 0.0
    %2299 = vmatprep.subr.mxu0 0.0
    %2300 = vmatpush2.msra.mxu0 0.0
    %2301 = vmatprep.subr.mxu0 0.0
    %2302 = vmatpush2.msra.mxu0 0.0
    %2303 = vmatprep.subr.mxu0 0.0
    %2304 = vmatpush2.msra.mxu0 0.0
    %2305 = vmatprep.subr.mxu0 0.0
    %2306 = vmatpush2.msra.mxu0 0.0
    %2307 = vmatprep.subr.mxu0 0.0
    %2308 = vmatpush2.msra.mxu0 0.0
    %2309 = vmatprep.subr.mxu0 0.0
    %2310 = vmatpush2.msra.mxu0 0.0
    %2311 = vmatprep.subr.mxu0 0.0
    %2312 = vmatpush2.msra.mxu0 0.0
    %2313 = vmatprep.subr.mxu0 0.0
    %2314 = vmatpush2.msra.mxu0 0.0
    %2315 = vmatprep.subr.mxu0 0.0
    %2316 = vmatpush2.msra.mxu0 0.0
    %2317 = vmatprep.subr.mxu0 0.0
    %2318 = vmatpush2.msra.mxu0 0.0
    %2319 = vmatprep.subr.mxu0 0.0
    %2320 = vmatpush2.msra.mxu0 0.0
    %2321 = vmatprep.subr.mxu0 0.0
    %2322 = vmatpush2.msra.mxu0 0.0
    %2323 = vmatprep.subr.mxu0 0.0
    %2324 = vmatpush2.msra.mxu0 0.0
    %2325 = vmatprep.subr.mxu0 0.0
    %2326 = vmatpush2.msra.mxu0 0.0
    %2327 = vmatprep.subr.mxu0 0.0
    %2328 = vmatpush2.msra.mxu0 0.0
    %2329 = vmatprep.mubr.f32.mxu0 0.0
    %2330 = vmatmul.mubr.f32.gmra.mxu0 %v2254
    %v2331 = vpop.f32.mrf.mxu0
    %v2332 = vadd.f32 %v2236, %v2331
    %v2333 = vpop.f32.mrf.mxu0
    %2334 = vmatprep.mubr.f32.mxu0 0.0
    %2335 = vmatmul.mubr.f32.gmra.mxu0 %v2257
    %v2336 = vpop.f32.mrf.mxu0
    %v2337 = vadd.f32 %v2241, %v2336
    %v2338 = vpop.f32.mrf.mxu0
    %2339 = vmatprep.mubr.f32.mxu0 0.0
    %2340 = vmatmul.mubr.f32.gmra.mxu0 %v2260
    %v2341 = vpop.f32.mrf.mxu0
    %v2342 = vadd.f32 %v2246, %v2341
    %v2343 = vpop.f32.mrf.mxu0
    %2344 = vmatprep.mubr.f32.mxu0 0.0
    %2345 = vmatmul.mubr.f32.gmra.mxu0 %v2263
    %v2346 = vpop.f32.mrf.mxu0
    %v2347 = vadd.f32 %v2251, %v2346
    %v2348 = vpop.f32.mrf.mxu0
    %2349 = vdwg.mxu0
    %2350 = vmatprep.subr.mxu0 0.0
    %2351 = vmatpush1.msra.mxu0 0.0
    %2352 = vmatprep.subr.mxu0 0.0
    %2353 = vmatpush1.msra.mxu0 0.0
    %2354 = vmatprep.subr.mxu0 0.0
    %2355 = vmatpush1.msra.mxu0 0.0
    %2356 = vmatprep.subr.mxu0 0.0
    %2357 = vmatpush1.msra.mxu0 0.0
    %2358 = vmatprep.subr.mxu0 0.0
    %2359 = vmatpush1.msra.mxu0 0.0
    %2360 = vmatprep.subr.mxu0 0.0
    %2361 = vmatpush1.msra.mxu0 0.0
    %2362 = vmatprep.subr.mxu0 0.0
    %2363 = vmatpush1.msra.mxu0 0.0
    %2364 = vmatprep.subr.mxu0 0.0
    %2365 = vmatpush1.msra.mxu0 0.0
    %2366 = vmatprep.subr.mxu0 0.0
    %2367 = vmatpush1.msra.mxu0 0.0
    %2368 = vmatprep.subr.mxu0 0.0
    %2369 = vmatpush1.msra.mxu0 0.0
    %2370 = vmatprep.subr.mxu0 0.0
    %2371 = vmatpush1.msra.mxu0 0.0
    %2372 = vmatprep.subr.mxu0 0.0
    %2373 = vmatpush1.msra.mxu0 0.0
    %2374 = vmatprep.subr.mxu0 0.0
    %2375 = vmatpush1.msra.mxu0 %v1792
    %2376 = vmatprep.subr.mxu0 0.0
    %2377 = vmatpush1.msra.mxu0 %v1791
    %2378 = vmatprep.subr.mxu0 0.0
    %2379 = vmatpush1.msra.mxu0 %v1790
    %2380 = vmatprep.subr.mxu0 0.0
    %2381 = vmatpush1.msra.mxu0 %v1789
    %2382 = vmatprep.subr.mxu0 0.0
    %2383 = vmatpush2.msra.mxu0 0.0
    %2384 = vmatprep.subr.mxu0 0.0
    %2385 = vmatpush2.msra.mxu0 0.0
    %2386 = vmatprep.subr.mxu0 0.0
    %2387 = vmatpush2.msra.mxu0 0.0
    %2388 = vmatprep.subr.mxu0 0.0
    %2389 = vmatpush2.msra.mxu0 0.0
    %2390 = vmatprep.subr.mxu0 0.0
    %2391 = vmatpush2.msra.mxu0 0.0
    %2392 = vmatprep.subr.mxu0 0.0
    %2393 = vmatpush2.msra.mxu0 0.0
    %2394 = vmatprep.subr.mxu0 0.0
    %2395 = vmatpush2.msra.mxu0 0.0
    %2396 = vmatprep.subr.mxu0 0.0
    %2397 = vmatpush2.msra.mxu0 0.0
    %2398 = vmatprep.subr.mxu0 0.0
    %2399 = vmatpush2.msra.mxu0 0.0
    %2400 = vmatprep.subr.mxu0 0.0
    %2401 = vmatpush2.msra.mxu0 0.0
    %2402 = vmatprep.subr.mxu0 0.0
    %2403 = vmatpush2.msra.mxu0 0.0
    %2404 = vmatprep.subr.mxu0 0.0
    %2405 = vmatpush2.msra.mxu0 0.0
    %2406 = vmatprep.subr.mxu0 0.0
    %2407 = vmatpush2.msra.mxu0 0.0
    %2408 = vmatprep.subr.mxu0 0.0
    %2409 = vmatpush2.msra.mxu0 0.0
    %2410 = vmatprep.subr.mxu0 0.0
    %2411 = vmatpush2.msra.mxu0 0.0
    %2412 = vmatprep.subr.mxu0 0.0
    %2413 = vmatpush2.msra.mxu0 0.0
    %2414 = vmatprep.mubr.f32.mxu0 0.0
    %2415 = vmatmul.mubr.f32.gmra.mxu0 %v2254
    %v2416 = vpop.f32.mrf.mxu0
    %v2417 = vadd.f32 %v2236, %v2416
    %v2418 = vpop.f32.mrf.mxu0
    %2419 = vmatprep.mubr.f32.mxu0 0.0
    %2420 = vmatmul.mubr.f32.gmra.mxu0 %v2257
    %v2421 = vpop.f32.mrf.mxu0
    %v2422 = vadd.f32 %v2241, %v2421
    %v2423 = vpop.f32.mrf.mxu0
    %2424 = vmatprep.mubr.f32.mxu0 0.0
    %2425 = vmatmul.mubr.f32.gmra.mxu0 %v2260
    %v2426 = vpop.f32.mrf.mxu0
    %v2427 = vadd.f32 %v2246, %v2426
    %v2428 = vpop.f32.mrf.mxu0
    %2429 = vmatprep.mubr.f32.mxu0 0.0
    %2430 = vmatmul.mubr.f32.gmra.mxu0 %v2263
    %v2431 = vpop.f32.mrf.mxu0
    %v2432 = vadd.f32 %v2251, %v2431
    %v2433 = vpop.f32.mrf.mxu0
    %2434 = vdwg.mxu0
    %2435 = vmatprep.subr.mxu0 0.0
    %2436 = vmatpush1.msra.mxu0 0.0
    %2437 = vmatprep.subr.mxu0 0.0
    %2438 = vmatpush1.msra.mxu0 0.0
    %2439 = vmatprep.subr.mxu0 0.0
    %2440 = vmatpush1.msra.mxu0 0.0
    %2441 = vmatprep.subr.mxu0 0.0
    %2442 = vmatpush1.msra.mxu0 0.0
    %2443 = vmatprep.subr.mxu0 0.0
    %2444 = vmatpush1.msra.mxu0 0.0
    %2445 = vmatprep.subr.mxu0 0.0
    %2446 = vmatpush1.msra.mxu0 0.0
    %2447 = vmatprep.subr.mxu0 0.0
    %2448 = vmatpush1.msra.mxu0 0.0
    %2449 = vmatprep.subr.mxu0 0.0
    %2450 = vmatpush1.msra.mxu0 0.0
    %2451 = vmatprep.subr.mxu0 0.0
    %2452 = vmatpush1.msra.mxu0 0.0
    %2453 = vmatprep.subr.mxu0 0.0
    %2454 = vmatpush1.msra.mxu0 0.0
    %2455 = vmatprep.subr.mxu0 0.0
    %2456 = vmatpush1.msra.mxu0 0.0
    %2457 = vmatprep.subr.mxu0 0.0
    %2458 = vmatpush1.msra.mxu0 0.0
    %2459 = vmatprep.subr.mxu0 0.0
    %2460 = vmatpush1.msra.mxu0 %v1796
    %2461 = vmatprep.subr.mxu0 0.0
    %2462 = vmatpush1.msra.mxu0 %v1795
    %2463 = vmatprep.subr.mxu0 0.0
    %2464 = vmatpush1.msra.mxu0 %v1794
    %2465 = vmatprep.subr.mxu0 0.0
    %2466 = vmatpush1.msra.mxu0 %v1793
    %2467 = vmatprep.subr.mxu0 0.0
    %2468 = vmatpush2.msra.mxu0 0.0
    %2469 = vmatprep.subr.mxu0 0.0
    %2470 = vmatpush2.msra.mxu0 0.0
    %2471 = vmatprep.subr.mxu0 0.0
    %2472 = vmatpush2.msra.mxu0 0.0
    %2473 = vmatprep.subr.mxu0 0.0
    %2474 = vmatpush2.msra.mxu0 0.0
    %2475 = vmatprep.subr.mxu0 0.0
    %2476 = vmatpush2.msra.mxu0 0.0
    %2477 = vmatprep.subr.mxu0 0.0
    %2478 = vmatpush2.msra.mxu0 0.0
    %2479 = vmatprep.subr.mxu0 0.0
    %2480 = vmatpush2.msra.mxu0 0.0
    %2481 = vmatprep.subr.mxu0 0.0
    %2482 = vmatpush2.msra.mxu0 0.0
    %2483 = vmatprep.subr.mxu0 0.0
    %2484 = vmatpush2.msra.mxu0 0.0
    %2485 = vmatprep.subr.mxu0 0.0
    %2486 = vmatpush2.msra.mxu0 0.0
    %2487 = vmatprep.subr.mxu0 0.0
    %2488 = vmatpush2.msra.mxu0 0.0
    %2489 = vmatprep.subr.mxu0 0.0
    %2490 = vmatpush2.msra.mxu0 0.0
    %2491 = vmatprep.subr.mxu0 0.0
    %2492 = vmatpush2.msra.mxu0 0.0
    %2493 = vmatprep.subr.mxu0 0.0
    %2494 = vmatpush2.msra.mxu0 0.0
    %2495 = vmatprep.subr.mxu0 0.0
    %2496 = vmatpush2.msra.mxu0 0.0
    %2497 = vmatprep.subr.mxu0 0.0
    %2498 = vmatpush2.msra.mxu0 0.0
    %2499 = vmatprep.mubr.f32.mxu0 0.0
    %2500 = vmatmul.mubr.f32.gmra.mxu0 %v2254
    %v2501 = vpop.f32.mrf.mxu0
    %v2502 = vadd.f32 %v2236, %v2501
    %v2503 = vpop.f32.mrf.mxu0
    %2504 = vmatprep.mubr.f32.mxu0 0.0
    %2505 = vmatmul.mubr.f32.gmra.mxu0 %v2257
    %v2506 = vpop.f32.mrf.mxu0
    %v2507 = vadd.f32 %v2241, %v2506
    %v2508 = vpop.f32.mrf.mxu0
    %2509 = vmatprep.mubr.f32.mxu0 0.0
    %2510 = vmatmul.mubr.f32.gmra.mxu0 %v2260
    %v2511 = vpop.f32.mrf.mxu0
    %v2512 = vadd.f32 %v2246, %v2511
    %v2513 = vpop.f32.mrf.mxu0
    %2514 = vmatprep.mubr.f32.mxu0 0.0
    %2515 = vmatmul.mubr.f32.gmra.mxu0 %v2263
    %v2516 = vpop.f32.mrf.mxu0
    %v2517 = vadd.f32 %v2251, %v2516
    %v2518 = vpop.f32.mrf.mxu0
    %2519 = vdwg.mxu0
    %2520 = vmatprep.subr.mxu0 0.0
    %2521 = vmatpush1.msra.mxu0 0.0
    %2522 = vmatprep.subr.mxu0 0.0
    %2523 = vmatpush1.msra.mxu0 0.0
    %2524 = vmatprep.subr.mxu0 0.0
    %2525 = vmatpush1.msra.mxu0 0.0
    %2526 = vmatprep.subr.mxu0 0.0
    %2527 = vmatpush1.msra.mxu0 0.0
    %2528 = vmatprep.subr.mxu0 0.0
    %2529 = vmatpush1.msra.mxu0 0.0
    %2530 = vmatprep.subr.mxu0 0.0
    %2531 = vmatpush1.msra.mxu0 0.0
    %2532 = vmatprep.subr.mxu0 0.0
    %2533 = vmatpush1.msra.mxu0 0.0
    %2534 = vmatprep.subr.mxu0 0.0
    %2535 = vmatpush1.msra.mxu0 0.0
    %2536 = vmatprep.subr.mxu0 0.0
    %2537 = vmatpush1.msra.mxu0 0.0
    %2538 = vmatprep.subr.mxu0 0.0
    %2539 = vmatpush1.msra.mxu0 0.0
    %2540 = vmatprep.subr.mxu0 0.0
    %2541 = vmatpush1.msra.mxu0 0.0
    %2542 = vmatprep.subr.mxu0 0.0
    %2543 = vmatpush1.msra.mxu0 0.0
    %2544 = vmatprep.subr.mxu0 0.0
    %2545 = vmatpush1.msra.mxu0 %v1800
    %2546 = vmatprep.subr.mxu0 0.0
    %2547 = vmatpush1.msra.mxu0 %v1799
    %2548 = vmatprep.subr.mxu0 0.0
    %2549 = vmatpush1.msra.mxu0 %v1798
    %2550 = vmatprep.subr.mxu0 0.0
    %2551 = vmatpush1.msra.mxu0 %v1797
    %2552 = vmatprep.subr.mxu0 0.0
    %2553 = vmatpush2.msra.mxu0 0.0
    %2554 = vmatprep.subr.mxu0 0.0
    %2555 = vmatpush2.msra.mxu0 0.0
    %2556 = vmatprep.subr.mxu0 0.0
    %2557 = vmatpush2.msra.mxu0 0.0
    %2558 = vmatprep.subr.mxu0 0.0
    %2559 = vmatpush2.msra.mxu0 0.0
    %2560 = vmatprep.subr.mxu0 0.0
    %2561 = vmatpush2.msra.mxu0 0.0
    %2562 = vmatprep.subr.mxu0 0.0
    %2563 = vmatpush2.msra.mxu0 0.0
    %2564 = vmatprep.subr.mxu0 0.0
    %2565 = vmatpush2.msra.mxu0 0.0
    %2566 = vmatprep.subr.mxu0 0.0
    %2567 = vmatpush2.msra.mxu0 0.0
    %2568 = vmatprep.subr.mxu0 0.0
    %2569 = vmatpush2.msra.mxu0 0.0
    %2570 = vmatprep.subr.mxu0 0.0
    %2571 = vmatpush2.msra.mxu0 0.0
    %2572 = vmatprep.subr.mxu0 0.0
    %2573 = vmatpush2.msra.mxu0 0.0
    %2574 = vmatprep.subr.mxu0 0.0
    %2575 = vmatpush2.msra.mxu0 0.0
    %2576 = vmatprep.subr.mxu0 0.0
    %2577 = vmatpush2.msra.mxu0 0.0
    %2578 = vmatprep.subr.mxu0 0.0
    %2579 = vmatpush2.msra.mxu0 0.0
    %2580 = vmatprep.subr.mxu0 0.0
    %2581 = vmatpush2.msra.mxu0 0.0
    %2582 = vmatprep.subr.mxu0 0.0
    %2583 = vmatpush2.msra.mxu0 0.0
    %2584 = vmatprep.mubr.f32.mxu0 0.0
    %2585 = vmatmul.mubr.f32.gmra.mxu0 %v2254
    %v2586 = vpop.f32.mrf.mxu0
    %v2587 = vadd.f32 %v2236, %v2586
    %v2588 = vpop.f32.mrf.mxu0
    %2589 = vmatprep.mubr.f32.mxu0 0.0
    %2590 = vmatmul.mubr.f32.gmra.mxu0 %v2257
    %v2591 = vpop.f32.mrf.mxu0
    %v2592 = vadd.f32 %v2241, %v2591
    %v2593 = vpop.f32.mrf.mxu0
    %2594 = vmatprep.mubr.f32.mxu0 0.0
    %2595 = vmatmul.mubr.f32.gmra.mxu0 %v2260
    %v2596 = vpop.f32.mrf.mxu0
    %v2597 = vadd.f32 %v2246, %v2596
    %v2598 = vpop.f32.mrf.mxu0
    %2599 = vmatprep.mubr.f32.mxu0 0.0
    %2600 = vmatmul.mubr.f32.gmra.mxu0 %v2263
    %v2601 = vpop.f32.mrf.mxu0
    %v2602 = vadd.f32 %v2251, %v2601
    %v2603 = vpop.f32.mrf.mxu0
    %2604 = vdwg.mxu0
    %v2605 = vmul.f32 %v2332, 0.2
    %v2606 = vmul.f32 %v2337, 0.2
    %v2607 = vmul.f32 %v2342, 0.2
    %v2608 = vmul.f32 %v2347, 0.2
    %v2609 = vmul.f32 %v2417, 0.2
    %v2610 = vmul.f32 %v2422, 0.2
    %v2611 = vmul.f32 %v2427, 0.2
    %v2612 = vmul.f32 %v2432, 0.2
    %v2613 = vmul.f32 %v2502, 0.2
    %v2614 = vmul.f32 %v2507, 0.2
    %v2615 = vmul.f32 %v2512, 0.2
    %v2616 = vmul.f32 %v2517, 0.2
    %v2617 = vmul.f32 %v2587, 0.2
    %v2618 = vmul.f32 %v2592, 0.2
    %v2619 = vmul.f32 %v2597, 0.2
    %v2620 = vmul.f32 %v2602, 0.2
    %v2621 = vmax.f32 %v2332, %v2605
    %v2622 = vmax.f32 %v2337, %v2606
    %v2623 = vmax.f32 %v2342, %v2607
    %v2624 = vmax.f32 %v2347, %v2608
    %v2625 = vmax.f32 %v2417, %v2609
    %v2626 = vmax.f32 %v2422, %v2610
    %v2627 = vmax.f32 %v2427, %v2611
    %v2628 = vmax.f32 %v2432, %v2612
    %v2629 = vmax.f32 %v2502, %v2613
    %v2630 = vmax.f32 %v2507, %v2614
    %v2631 = vmax.f32 %v2512, %v2615
    %v2632 = vmax.f32 %v2517, %v2616
    %v2633 = vmax.f32 %v2587, %v2617
    %v2634 = vmax.f32 %v2592, %v2618
    %v2635 = vmax.f32 %v2597, %v2619
    %v2636 = vmax.f32 %v2602, %v2620
    %v2637 = vld [vmem:[#allocation10] sm:$0xff]
    %v2638 = vld [vmem:[#allocation10 + $0x8] sm:$0xff]
    %v2639 = vld [vmem:[#allocation10 + $0x10] sm:$0xff]
    %v2640 = vld [vmem:[#allocation10 + $0x18] sm:$0xff]
    %v2641 = vld [vmem:[#allocation11] sm:$0xff]
    %v2642 = vld [vmem:[#allocation11 + $0x8] sm:$0xff]
    %v2643 = vld [vmem:[#allocation11 + $0x10] sm:$0xff]
    %v2644 = vld [vmem:[#allocation11 + $0x18] sm:$0xff]
    %v2646 = vsel %vm194, %v2217, 0
    %v2649 = vsel %vm194, %v2218, 0
    %v2652 = vsel %vm194, %v2219, 0
    %v2655 = vsel %vm194, %v2220, 0
    %v2658 = vsel %vm194, %v2221, 0
    %v2661 = vsel %vm194, %v2222, 0
    %v2664 = vsel %vm194, %v2223, 0
    %v2667 = vsel %vm194, %v2224, 0
    %v2670 = vsel %vm194, %v2225, 0
    %v2673 = vsel %vm194, %v2226, 0
    %v2676 = vsel %vm194, %v2227, 0
    %v2679 = vsel %vm194, %v2228, 0
    %v2682 = vsel %vm194, %v2229, 0
    %v2685 = vsel %vm194, %v2230, 0
    %v2688 = vsel %vm194, %v2231, 0
    %v2691 = vsel %vm194, %v2232, 0
    %v2694 = vsel %vm194, %v2641, 0
    %v2697 = vsel %vm194, %v2642, 0
    %v2700 = vsel %vm194, %v2643, 0
    %v2703 = vsel %vm194, %v2644, 0
    %2705 = vmatprep.subr.mxu0 0.0
    %2706 = vmatpush1.xpose.msra.mxu0 0.0
    %2707 = vmatprep.subr.mxu0 0.0
    %2708 = vmatpush1.xpose.msra.mxu0 0.0
    %2709 = vmatprep.subr.mxu0 0.0
    %2710 = vmatpush1.xpose.msra.mxu0 0.0
    %2711 = vmatprep.subr.mxu0 0.0
    %2712 = vmatpush1.xpose.msra.mxu0 0.0
    %2713 = vmatprep.subr.mxu0 0.0
    %2714 = vmatpush1.xpose.msra.mxu0 0.0
    %2715 = vmatprep.subr.mxu0 0.0
    %2716 = vmatpush1.xpose.msra.mxu0 0.0
    %2717 = vmatprep.subr.mxu0 0.0
    %2718 = vmatpush1.xpose.msra.mxu0 0.0
    %2719 = vmatprep.subr.mxu0 0.0
    %2720 = vmatpush1.xpose.msra.mxu0 0.0
    %2721 = vmatprep.subr.mxu0 0.0
    %2722 = vmatpush1.xpose.msra.mxu0 0.0
    %2723 = vmatprep.subr.mxu0 0.0
    %2724 = vmatpush1.xpose.msra.mxu0 0.0
    %2725 = vmatprep.subr.mxu0 0.0
    %2726 = vmatpush1.xpose.msra.mxu0 0.0
    %2727 = vmatprep.subr.mxu0 0.0
    %2728 = vmatpush1.xpose.msra.mxu0 0.0
    %2729 = vmatprep.subr.mxu0 0.0
    %2730 = vmatpush1.xpose.msra.mxu0 %v2703
    %2731 = vmatprep.subr.mxu0 0.0
    %2732 = vmatpush1.xpose.msra.mxu0 %v2700
    %2733 = vmatprep.subr.mxu0 0.0
    %2734 = vmatpush1.xpose.msra.mxu0 %v2697
    %2735 = vmatprep.subr.mxu0 0.0
    %2736 = vmatpush1.xpose.msra.mxu0 %v2694
    %2737 = vmatprep.subr.mxu0 0.0
    %2738 = vmatpush2.xpose.msra.mxu0 0.0
    %2739 = vmatprep.subr.mxu0 0.0
    %2740 = vmatpush2.xpose.msra.mxu0 0.0
    %2741 = vmatprep.subr.mxu0 0.0
    %2742 = vmatpush2.xpose.msra.mxu0 0.0
    %2743 = vmatprep.subr.mxu0 0.0
    %2744 = vmatpush2.xpose.msra.mxu0 0.0
    %2745 = vmatprep.subr.mxu0 0.0
    %2746 = vmatpush2.xpose.msra.mxu0 0.0
    %2747 = vmatprep.subr.mxu0 0.0
    %2748 = vmatpush2.xpose.msra.mxu0 0.0
    %2749 = vmatprep.subr.mxu0 0.0
    %2750 = vmatpush2.xpose.msra.mxu0 0.0
    %2751 = vmatprep.subr.mxu0 0.0
    %2752 = vmatpush2.xpose.msra.mxu0 0.0
    %2753 = vmatprep.subr.mxu0 0.0
    %2754 = vmatpush2.xpose.msra.mxu0 0.0
    %2755 = vmatprep.subr.mxu0 0.0
    %2756 = vmatpush2.xpose.msra.mxu0 0.0
    %2757 = vmatprep.subr.mxu0 0.0
    %2758 = vmatpush2.xpose.msra.mxu0 0.0
    %2759 = vmatprep.subr.mxu0 0.0
    %2760 = vmatpush2.xpose.msra.mxu0 0.0
    %2761 = vmatprep.subr.mxu0 0.0
    %2762 = vmatpush2.xpose.msra.mxu0 0.0
    %2763 = vmatprep.subr.mxu0 0.0
    %2764 = vmatpush2.xpose.msra.mxu0 0.0
    %2765 = vmatprep.subr.mxu0 0.0
    %2766 = vmatpush2.xpose.msra.mxu0 0.0
    %2767 = vmatprep.subr.mxu0 0.0
    %2768 = vmatpush2.xpose.msra.mxu0 0.0
    %2769 = vmatprep.mubr.f32.mxu0 0.0
    %2770 = vmatmul.mubr.f32.gmra.mxu0 %v2646
    %v2771 = vpop.f32.mrf.mxu0
    %v2772 = vadd.f32 0.0, %v2771
    %v2773 = vpop.f32.mrf.mxu0
    %2774 = vmatprep.mubr.f32.mxu0 0.0
    %2775 = vmatmul.mubr.f32.gmra.mxu0 %v2649
    %v2776 = vpop.f32.mrf.mxu0
    %v2777 = vadd.f32 0.0, %v2776
    %v2778 = vpop.f32.mrf.mxu0
    %2779 = vmatprep.mubr.f32.mxu0 0.0
    %2780 = vmatmul.mubr.f32.gmra.mxu0 %v2652
    %v2781 = vpop.f32.mrf.mxu0
    %v2782 = vadd.f32 0.0, %v2781
    %v2783 = vpop.f32.mrf.mxu0
    %2784 = vmatprep.mubr.f32.mxu0 0.0
    %2785 = vmatmul.mubr.f32.gmra.mxu0 %v2655
    %v2786 = vpop.f32.mrf.mxu0
    %v2787 = vadd.f32 0.0, %v2786
    %v2788 = vpop.f32.mrf.mxu0
    %2789 = vmatprep.mubr.f32.mxu0 0.0
    %2790 = vmatmul.mubr.f32.gmra.mxu0 %v2658
    %v2791 = vpop.f32.mrf.mxu0
    %v2792 = vadd.f32 0.0, %v2791
    %v2793 = vpop.f32.mrf.mxu0
    %2794 = vmatprep.mubr.f32.mxu0 0.0
    %2795 = vmatmul.mubr.f32.gmra.mxu0 %v2661
    %v2796 = vpop.f32.mrf.mxu0
    %v2797 = vadd.f32 0.0, %v2796
    %v2798 = vpop.f32.mrf.mxu0
    %2799 = vmatprep.mubr.f32.mxu0 0.0
    %2800 = vmatmul.mubr.f32.gmra.mxu0 %v2664
    %v2801 = vpop.f32.mrf.mxu0
    %v2802 = vadd.f32 0.0, %v2801
    %v2803 = vpop.f32.mrf.mxu0
    %2804 = vmatprep.mubr.f32.mxu0 0.0
    %2805 = vmatmul.mubr.f32.gmra.mxu0 %v2667
    %v2806 = vpop.f32.mrf.mxu0
    %v2807 = vadd.f32 0.0, %v2806
    %v2808 = vpop.f32.mrf.mxu0
    %2809 = vmatprep.mubr.f32.mxu0 0.0
    %2810 = vmatmul.mubr.f32.gmra.mxu0 %v2670
    %v2811 = vpop.f32.mrf.mxu0
    %v2812 = vadd.f32 0.0, %v2811
    %v2813 = vpop.f32.mrf.mxu0
    %2814 = vmatprep.mubr.f32.mxu0 0.0
    %2815 = vmatmul.mubr.f32.gmra.mxu0 %v2673
    %v2816 = vpop.f32.mrf.mxu0
    %v2817 = vadd.f32 0.0, %v2816
    %v2818 = vpop.f32.mrf.mxu0
    %2819 = vmatprep.mubr.f32.mxu0 0.0
    %2820 = vmatmul.mubr.f32.gmra.mxu0 %v2676
    %v2821 = vpop.f32.mrf.mxu0
    %v2822 = vadd.f32 0.0, %v2821
    %v2823 = vpop.f32.mrf.mxu0
    %2824 = vmatprep.mubr.f32.mxu0 0.0
    %2825 = vmatmul.mubr.f32.gmra.mxu0 %v2679
    %v2826 = vpop.f32.mrf.mxu0
    %v2827 = vadd.f32 0.0, %v2826
    %v2828 = vpop.f32.mrf.mxu0
    %2829 = vmatprep.mubr.f32.mxu0 0.0
    %2830 = vmatmul.mubr.f32.gmra.mxu0 %v2682
    %v2831 = vpop.f32.mrf.mxu0
    %v2832 = vadd.f32 0.0, %v2831
    %v2833 = vpop.f32.mrf.mxu0
    %2834 = vmatprep.mubr.f32.mxu0 0.0
    %2835 = vmatmul.mubr.f32.gmra.mxu0 %v2685
    %v2836 = vpop.f32.mrf.mxu0
    %v2837 = vadd.f32 0.0, %v2836
    %v2838 = vpop.f32.mrf.mxu0
    %2839 = vmatprep.mubr.f32.mxu0 0.0
    %2840 = vmatmul.mubr.f32.gmra.mxu0 %v2688
    %v2841 = vpop.f32.mrf.mxu0
    %v2842 = vadd.f32 0.0, %v2841
    %v2843 = vpop.f32.mrf.mxu0
    %2844 = vmatprep.mubr.f32.mxu0 0.0
    %2845 = vmatmul.mubr.f32.gmra.mxu0 %v2691
    %v2846 = vpop.f32.mrf.mxu0
    %v2847 = vadd.f32 0.0, %v2846
    %v2848 = vpop.f32.mrf.mxu0
    %2849 = vdwg.mxu0
    %v2851 = vsel %vm194, %v2637, 0
    %v2854 = vsel %vm194, %v2638, 0
    %v2857 = vsel %vm194, %v2639, 0
    %v2860 = vsel %vm194, %v2640, 0
    %2862 = vmatprep.subr.mxu0 0.0
    %2863 = vmatpush1.xpose.msra.mxu0 0.0
    %2864 = vmatprep.subr.mxu0 0.0
    %2865 = vmatpush1.xpose.msra.mxu0 0.0
    %2866 = vmatprep.subr.mxu0 0.0
    %2867 = vmatpush1.xpose.msra.mxu0 0.0
    %2868 = vmatprep.subr.mxu0 0.0
    %2869 = vmatpush1.xpose.msra.mxu0 0.0
    %2870 = vmatprep.subr.mxu0 0.0
    %2871 = vmatpush1.xpose.msra.mxu0 0.0
    %2872 = vmatprep.subr.mxu0 0.0
    %2873 = vmatpush1.xpose.msra.mxu0 0.0
    %2874 = vmatprep.subr.mxu0 0.0
    %2875 = vmatpush1.xpose.msra.mxu0 0.0
    %2876 = vmatprep.subr.mxu0 0.0
    %2877 = vmatpush1.xpose.msra.mxu0 0.0
    %2878 = vmatprep.subr.mxu0 0.0
    %2879 = vmatpush1.xpose.msra.mxu0 0.0
    %2880 = vmatprep.subr.mxu0 0.0
    %2881 = vmatpush1.xpose.msra.mxu0 0.0
    %2882 = vmatprep.subr.mxu0 0.0
    %2883 = vmatpush1.xpose.msra.mxu0 0.0
    %2884 = vmatprep.subr.mxu0 0.0
    %2885 = vmatpush1.xpose.msra.mxu0 0.0
    %2886 = vmatprep.subr.mxu0 0.0
    %2887 = vmatpush1.xpose.msra.mxu0 %v2860
    %2888 = vmatprep.subr.mxu0 0.0
    %2889 = vmatpush1.xpose.msra.mxu0 %v2857
    %2890 = vmatprep.subr.mxu0 0.0
    %2891 = vmatpush1.xpose.msra.mxu0 %v2854
    %2892 = vmatprep.subr.mxu0 0.0
    %2893 = vmatpush1.xpose.msra.mxu0 %v2851
    %2894 = vmatprep.subr.mxu0 0.0
    %2895 = vmatpush2.xpose.msra.mxu0 0.0
    %2896 = vmatprep.subr.mxu0 0.0
    %2897 = vmatpush2.xpose.msra.mxu0 0.0
    %2898 = vmatprep.subr.mxu0 0.0
    %2899 = vmatpush2.xpose.msra.mxu0 0.0
    %2900 = vmatprep.subr.mxu0 0.0
    %2901 = vmatpush2.xpose.msra.mxu0 0.0
    %2902 = vmatprep.subr.mxu0 0.0
    %2903 = vmatpush2.xpose.msra.mxu0 0.0
    %2904 = vmatprep.subr.mxu0 0.0
    %2905 = vmatpush2.xpose.msra.mxu0 0.0
    %2906 = vmatprep.subr.mxu0 0.0
    %2907 = vmatpush2.xpose.msra.mxu0 0.0
    %2908 = vmatprep.subr.mxu0 0.0
    %2909 = vmatpush2.xpose.msra.mxu0 0.0
    %2910 = vmatprep.subr.mxu0 0.0
    %2911 = vmatpush2.xpose.msra.mxu0 0.0
    %2912 = vmatprep.subr.mxu0 0.0
    %2913 = vmatpush2.xpose.msra.mxu0 0.0
    %2914 = vmatprep.subr.mxu0 0.0
    %2915 = vmatpush2.xpose.msra.mxu0 0.0
    %2916 = vmatprep.subr.mxu0 0.0
    %2917 = vmatpush2.xpose.msra.mxu0 0.0
    %2918 = vmatprep.subr.mxu0 0.0
    %2919 = vmatpush2.xpose.msra.mxu0 0.0
    %2920 = vmatprep.subr.mxu0 0.0
    %2921 = vmatpush2.xpose.msra.mxu0 0.0
    %2922 = vmatprep.subr.mxu0 0.0
    %2923 = vmatpush2.xpose.msra.mxu0 0.0
    %2924 = vmatprep.subr.mxu0 0.0
    %2925 = vmatpush2.xpose.msra.mxu0 0.0
    %2926 = vmatprep.mubr.f32.mxu0 0.0
    %2927 = vmatmul.mubr.f32.gmra.mxu0 %v1814
    %v2928 = vpop.f32.mrf.mxu0
    %v2929 = vadd.f32 %v2772, %v2928
    %v2930 = vpop.f32.mrf.mxu0
    %2931 = vmatprep.mubr.f32.mxu0 0.0
    %2932 = vmatmul.mubr.f32.gmra.mxu0 %v1817
    %v2933 = vpop.f32.mrf.mxu0
    %v2934 = vadd.f32 %v2777, %v2933
    %v2935 = vpop.f32.mrf.mxu0
    %2936 = vmatprep.mubr.f32.mxu0 0.0
    %2937 = vmatmul.mubr.f32.gmra.mxu0 %v1820
    %v2938 = vpop.f32.mrf.mxu0
    %v2939 = vadd.f32 %v2782, %v2938
    %v2940 = vpop.f32.mrf.mxu0
    %2941 = vmatprep.mubr.f32.mxu0 0.0
    %2942 = vmatmul.mubr.f32.gmra.mxu0 %v1823
    %v2943 = vpop.f32.mrf.mxu0
    %v2944 = vadd.f32 %v2787, %v2943
    %v2945 = vpop.f32.mrf.mxu0
    %2946 = vmatprep.mubr.f32.mxu0 0.0
    %2947 = vmatmul.mubr.f32.gmra.mxu0 %v1911
    %v2948 = vpop.f32.mrf.mxu0
    %v2949 = vadd.f32 %v2792, %v2948
    %v2950 = vpop.f32.mrf.mxu0
    %2951 = vmatprep.mubr.f32.mxu0 0.0
    %2952 = vmatmul.mubr.f32.gmra.mxu0 %v1914
    %v2953 = vpop.f32.mrf.mxu0
    %v2954 = vadd.f32 %v2797, %v2953
    %v2955 = vpop.f32.mrf.mxu0
    %2956 = vmatprep.mubr.f32.mxu0 0.0
    %2957 = vmatmul.mubr.f32.gmra.mxu0 %v1917
    %v2958 = vpop.f32.mrf.mxu0
    %v2959 = vadd.f32 %v2802, %v2958
    %v2960 = vpop.f32.mrf.mxu0
    %2961 = vmatprep.mubr.f32.mxu0 0.0
    %2962 = vmatmul.mubr.f32.gmra.mxu0 %v1920
    %v2963 = vpop.f32.mrf.mxu0
    %v2964 = vadd.f32 %v2807, %v2963
    %v2965 = vpop.f32.mrf.mxu0
    %2966 = vmatprep.mubr.f32.mxu0 0.0
    %2967 = vmatmul.mubr.f32.gmra.mxu0 %v2008
    %v2968 = vpop.f32.mrf.mxu0
    %v2969 = vadd.f32 %v2812, %v2968
    %v2970 = vpop.f32.mrf.mxu0
    %2971 = vmatprep.mubr.f32.mxu0 0.0
    %2972 = vmatmul.mubr.f32.gmra.mxu0 %v2011
    %v2973 = vpop.f32.mrf.mxu0
    %v2974 = vadd.f32 %v2817, %v2973
    %v2975 = vpop.f32.mrf.mxu0
    %2976 = vmatprep.mubr.f32.mxu0 0.0
    %2977 = vmatmul.mubr.f32.gmra.mxu0 %v2014
    %v2978 = vpop.f32.mrf.mxu0
    %v2979 = vadd.f32 %v2822, %v2978
    %v2980 = vpop.f32.mrf.mxu0
    %2981 = vmatprep.mubr.f32.mxu0 0.0
    %2982 = vmatmul.mubr.f32.gmra.mxu0 %v2017
    %v2983 = vpop.f32.mrf.mxu0
    %v2984 = vadd.f32 %v2827, %v2983
    %v2985 = vpop.f32.mrf.mxu0
    %2986 = vmatprep.mubr.f32.mxu0 0.0
    %2987 = vmatmul.mubr.f32.gmra.mxu0 %v2105
    %v2988 = vpop.f32.mrf.mxu0
    %v2989 = vadd.f32 %v2832, %v2988
    %v2990 = vpop.f32.mrf.mxu0
    %2991 = vmatprep.mubr.f32.mxu0 0.0
    %2992 = vmatmul.mubr.f32.gmra.mxu0 %v2108
    %v2993 = vpop.f32.mrf.mxu0
    %v2994 = vadd.f32 %v2837, %v2993
    %v2995 = vpop.f32.mrf.mxu0
    %2996 = vmatprep.mubr.f32.mxu0 0.0
    %2997 = vmatmul.mubr.f32.gmra.mxu0 %v2111
    %v2998 = vpop.f32.mrf.mxu0
    %v2999 = vadd.f32 %v2842, %v2998
    %v3000 = vpop.f32.mrf.mxu0
    %3001 = vmatprep.mubr.f32.mxu0 0.0
    %3002 = vmatmul.mubr.f32.gmra.mxu0 %v2114
    %v3003 = vpop.f32.mrf.mxu0
    %v3004 = vadd.f32 %v2847, %v3003
    %v3005 = vpop.f32.mrf.mxu0
    %3006 = vdwg.mxu0
    %v3007 = vld [vmem:[%s13] sm:$0x1]
    %v3009 = vlaneseq
    %v3010 = vshrl.u32 %v3009, 7
    %v3011 = vsub.s32 0, %v3010
    %v3012 = vrot.slane %v3007, %v3011
    %v3014 = vadd.f32 %v2929, %v3012
    %v3015 = vadd.f32 %v2934, %v3012
    %v3016 = vadd.f32 %v2939, %v3012
    %v3017 = vadd.f32 %v2944, %v3012
    %v3018 = vadd.f32 %v2949, %v3012
    %v3019 = vadd.f32 %v2954, %v3012
    %v3020 = vadd.f32 %v2959, %v3012
    %v3021 = vadd.f32 %v2964, %v3012
    %v3022 = vadd.f32 %v2969, %v3012
    %v3023 = vadd.f32 %v2974, %v3012
    %v3024 = vadd.f32 %v2979, %v3012
    %v3025 = vadd.f32 %v2984, %v3012
    %v3026 = vadd.f32 %v2989, %v3012
    %v3027 = vadd.f32 %v2994, %v3012
    %v3028 = vadd.f32 %v2999, %v3012
    %v3029 = vadd.f32 %v3004, %v3012
    %v3030 = vtanh.pop %v3014
    %v3031 = vtanh.pop %v3015
    %v3032 = vtanh.pop %v3016
    %v3033 = vtanh.pop %v3017
    %v3034 = vtanh.pop %v3018
    %v3035 = vtanh.pop %v3019
    %v3036 = vtanh.pop %v3020
    %v3037 = vtanh.pop %v3021
    %v3038 = vtanh.pop %v3022
    %v3039 = vtanh.pop %v3023
    %v3040 = vtanh.pop %v3024
    %v3041 = vtanh.pop %v3025
    %v3042 = vtanh.pop %v3026
    %v3043 = vtanh.pop %v3027
    %v3044 = vtanh.pop %v3028
    %v3045 = vtanh.pop %v3029
    %v3046 = vmul.f32 %v3030, %v2217
    %v3047 = vmul.f32 %v3031, %v2218
    %v3048 = vmul.f32 %v3032, %v2219
    %v3049 = vmul.f32 %v3033, %v2220
    %v3050 = vmul.f32 %v3034, %v2221
    %v3051 = vmul.f32 %v3035, %v2222
    %v3052 = vmul.f32 %v3036, %v2223
    %v3053 = vmul.f32 %v3037, %v2224
    %v3054 = vmul.f32 %v3038, %v2225
    %v3055 = vmul.f32 %v3039, %v2226
    %v3056 = vmul.f32 %v3040, %v2227
    %v3057 = vmul.f32 %v3041, %v2228
    %v3058 = vmul.f32 %v3042, %v2229
    %v3059 = vmul.f32 %v3043, %v2230
    %v3060 = vmul.f32 %v3044, %v2231
    %v3061 = vmul.f32 %v3045, %v2232
    %v3062 = vadd.f32 %v166, %v3046
    %v3063 = vadd.f32 %v167, %v3047
    %v3064 = vadd.f32 %v168, %v3048
    %v3065 = vadd.f32 %v169, %v3049
    %v3066 = vadd.f32 %v170, %v3050
    %v3067 = vadd.f32 %v171, %v3051
    %v3068 = vadd.f32 %v172, %v3052
    %v3069 = vadd.f32 %v173, %v3053
    %v3070 = vadd.f32 %v174, %v3054
    %v3071 = vadd.f32 %v175, %v3055
    %v3072 = vadd.f32 %v176, %v3056
    %v3073 = vadd.f32 %v177, %v3057
    %v3074 = vadd.f32 %v178, %v3058
    %v3075 = vadd.f32 %v179, %v3059
    %v3076 = vadd.f32 %v180, %v3060
    %v3077 = vadd.f32 %v181, %v3061
    %v3078 = vld [vmem:[#allocation13] sm:$0xff]
    %v3079 = vld [vmem:[#allocation13 + $0x8] sm:$0xff]
    %v3080 = vld [vmem:[#allocation13 + $0x10] sm:$0xff]
    %v3081 = vld [vmem:[#allocation13 + $0x18] sm:$0xff]
    %v3082 = vld [vmem:[#allocation14] sm:$0xff]
    %v3083 = vld [vmem:[#allocation14 + $0x8] sm:$0xff]
    %v3084 = vld [vmem:[#allocation14 + $0x10] sm:$0xff]
    %v3085 = vld [vmem:[#allocation14 + $0x18] sm:$0xff]
    %v3087 = vsel %vm194, %v2621, 0
    %v3090 = vsel %vm194, %v2622, 0
    %v3093 = vsel %vm194, %v2623, 0
    %v3096 = vsel %vm194, %v2624, 0
    %v3099 = vsel %vm194, %v2625, 0
    %v3102 = vsel %vm194, %v2626, 0
    %v3105 = vsel %vm194, %v2627, 0
    %v3108 = vsel %vm194, %v2628, 0
    %v3111 = vsel %vm194, %v2629, 0
    %v3114 = vsel %vm194, %v2630, 0
    %v3117 = vsel %vm194, %v2631, 0
    %v3120 = vsel %vm194, %v2632, 0
    %v3123 = vsel %vm194, %v2633, 0
    %v3126 = vsel %vm194, %v2634, 0
    %v3129 = vsel %vm194, %v2635, 0
    %v3132 = vsel %vm194, %v2636, 0
    %v3135 = vsel %vm194, %v3082, 0
    %v3138 = vsel %vm194, %v3083, 0
    %v3141 = vsel %vm194, %v3084, 0
    %v3144 = vsel %vm194, %v3085, 0
    %3146 = vmatprep.subr.mxu0 0.0
    %3147 = vmatpush1.xpose.msra.mxu0 0.0
    %3148 = vmatprep.subr.mxu0 0.0
    %3149 = vmatpush1.xpose.msra.mxu0 0.0
    %3150 = vmatprep.subr.mxu0 0.0
    %3151 = vmatpush1.xpose.msra.mxu0 0.0
    %3152 = vmatprep.subr.mxu0 0.0
    %3153 = vmatpush1.xpose.msra.mxu0 0.0
    %3154 = vmatprep.subr.mxu0 0.0
    %3155 = vmatpush1.xpose.msra.mxu0 0.0
    %3156 = vmatprep.subr.mxu0 0.0
    %3157 = vmatpush1.xpose.msra.mxu0 0.0
    %3158 = vmatprep.subr.mxu0 0.0
    %3159 = vmatpush1.xpose.msra.mxu0 0.0
    %3160 = vmatprep.subr.mxu0 0.0
    %3161 = vmatpush1.xpose.msra.mxu0 0.0
    %3162 = vmatprep.subr.mxu0 0.0
    %3163 = vmatpush1.xpose.msra.mxu0 0.0
    %3164 = vmatprep.subr.mxu0 0.0
    %3165 = vmatpush1.xpose.msra.mxu0 0.0
    %3166 = vmatprep.subr.mxu0 0.0
    %3167 = vmatpush1.xpose.msra.mxu0 0.0
    %3168 = vmatprep.subr.mxu0 0.0
    %3169 = vmatpush1.xpose.msra.mxu0 0.0
    %3170 = vmatprep.subr.mxu0 0.0
    %3171 = vmatpush1.xpose.msra.mxu0 %v3144
    %3172 = vmatprep.subr.mxu0 0.0
    %3173 = vmatpush1.xpose.msra.mxu0 %v3141
    %3174 = vmatprep.subr.mxu0 0.0
    %3175 = vmatpush1.xpose.msra.mxu0 %v3138
    %3176 = vmatprep.subr.mxu0 0.0
    %3177 = vmatpush1.xpose.msra.mxu0 %v3135
    %3178 = vmatprep.subr.mxu0 0.0
    %3179 = vmatpush2.xpose.msra.mxu0 0.0
    %3180 = vmatprep.subr.mxu0 0.0
    %3181 = vmatpush2.xpose.msra.mxu0 0.0
    %3182 = vmatprep.subr.mxu0 0.0
    %3183 = vmatpush2.xpose.msra.mxu0 0.0
    %3184 = vmatprep.subr.mxu0 0.0
    %3185 = vmatpush2.xpose.msra.mxu0 0.0
    %3186 = vmatprep.subr.mxu0 0.0
    %3187 = vmatpush2.xpose.msra.mxu0 0.0
    %3188 = vmatprep.subr.mxu0 0.0
    %3189 = vmatpush2.xpose.msra.mxu0 0.0
    %3190 = vmatprep.subr.mxu0 0.0
    %3191 = vmatpush2.xpose.msra.mxu0 0.0
    %3192 = vmatprep.subr.mxu0 0.0
    %3193 = vmatpush2.xpose.msra.mxu0 0.0
    %3194 = vmatprep.subr.mxu0 0.0
    %3195 = vmatpush2.xpose.msra.mxu0 0.0
    %3196 = vmatprep.subr.mxu0 0.0
    %3197 = vmatpush2.xpose.msra.mxu0 0.0
    %3198 = vmatprep.subr.mxu0 0.0
    %3199 = vmatpush2.xpose.msra.mxu0 0.0
    %3200 = vmatprep.subr.mxu0 0.0
    %3201 = vmatpush2.xpose.msra.mxu0 0.0
    %3202 = vmatprep.subr.mxu0 0.0
    %3203 = vmatpush2.xpose.msra.mxu0 0.0
    %3204 = vmatprep.subr.mxu0 0.0
    %3205 = vmatpush2.xpose.msra.mxu0 0.0
    %3206 = vmatprep.subr.mxu0 0.0
    %3207 = vmatpush2.xpose.msra.mxu0 0.0
    %3208 = vmatprep.subr.mxu0 0.0
    %3209 = vmatpush2.xpose.msra.mxu0 0.0
    %3210 = vmatprep.mubr.f32.mxu0 0.0
    %3211 = vmatmul.mubr.f32.gmra.mxu0 %v3087
    %v3212 = vpop.f32.mrf.mxu0
    %v3213 = vadd.f32 0.0, %v3212
    %v3214 = vpop.f32.mrf.mxu0
    %3215 = vmatprep.mubr.f32.mxu0 0.0
    %3216 = vmatmul.mubr.f32.gmra.mxu0 %v3090
    %v3217 = vpop.f32.mrf.mxu0
    %v3218 = vadd.f32 0.0, %v3217
    %v3219 = vpop.f32.mrf.mxu0
    %3220 = vmatprep.mubr.f32.mxu0 0.0
    %3221 = vmatmul.mubr.f32.gmra.mxu0 %v3093
    %v3222 = vpop.f32.mrf.mxu0
    %v3223 = vadd.f32 0.0, %v3222
    %v3224 = vpop.f32.mrf.mxu0
    %3225 = vmatprep.mubr.f32.mxu0 0.0
    %3226 = vmatmul.mubr.f32.gmra.mxu0 %v3096
    %v3227 = vpop.f32.mrf.mxu0
    %v3228 = vadd.f32 0.0, %v3227
    %v3229 = vpop.f32.mrf.mxu0
    %3230 = vmatprep.mubr.f32.mxu0 0.0
    %3231 = vmatmul.mubr.f32.gmra.mxu0 %v3099
    %v3232 = vpop.f32.mrf.mxu0
    %v3233 = vadd.f32 0.0, %v3232
    %v3234 = vpop.f32.mrf.mxu0
    %3235 = vmatprep.mubr.f32.mxu0 0.0
    %3236 = vmatmul.mubr.f32.gmra.mxu0 %v3102
    %v3237 = vpop.f32.mrf.mxu0
    %v3238 = vadd.f32 0.0, %v3237
    %v3239 = vpop.f32.mrf.mxu0
    %3240 = vmatprep.mubr.f32.mxu0 0.0
    %3241 = vmatmul.mubr.f32.gmra.mxu0 %v3105
    %v3242 = vpop.f32.mrf.mxu0
    %v3243 = vadd.f32 0.0, %v3242
    %v3244 = vpop.f32.mrf.mxu0
    %3245 = vmatprep.mubr.f32.mxu0 0.0
    %3246 = vmatmul.mubr.f32.gmra.mxu0 %v3108
    %v3247 = vpop.f32.mrf.mxu0
    %v3248 = vadd.f32 0.0, %v3247
    %v3249 = vpop.f32.mrf.mxu0
    %3250 = vmatprep.mubr.f32.mxu0 0.0
    %3251 = vmatmul.mubr.f32.gmra.mxu0 %v3111
    %v3252 = vpop.f32.mrf.mxu0
    %v3253 = vadd.f32 0.0, %v3252
    %v3254 = vpop.f32.mrf.mxu0
    %3255 = vmatprep.mubr.f32.mxu0 0.0
    %3256 = vmatmul.mubr.f32.gmra.mxu0 %v3114
    %v3257 = vpop.f32.mrf.mxu0
    %v3258 = vadd.f32 0.0, %v3257
    %v3259 = vpop.f32.mrf.mxu0
    %3260 = vmatprep.mubr.f32.mxu0 0.0
    %3261 = vmatmul.mubr.f32.gmra.mxu0 %v3117
    %v3262 = vpop.f32.mrf.mxu0
    %v3263 = vadd.f32 0.0, %v3262
    %v3264 = vpop.f32.mrf.mxu0
    %3265 = vmatprep.mubr.f32.mxu0 0.0
    %3266 = vmatmul.mubr.f32.gmra.mxu0 %v3120
    %v3267 = vpop.f32.mrf.mxu0
    %v3268 = vadd.f32 0.0, %v3267
    %v3269 = vpop.f32.mrf.mxu0
    %3270 = vmatprep.mubr.f32.mxu0 0.0
    %3271 = vmatmul.mubr.f32.gmra.mxu0 %v3123
    %v3272 = vpop.f32.mrf.mxu0
    %v3273 = vadd.f32 0.0, %v3272
    %v3274 = vpop.f32.mrf.mxu0
    %3275 = vmatprep.mubr.f32.mxu0 0.0
    %3276 = vmatmul.mubr.f32.gmra.mxu0 %v3126
    %v3277 = vpop.f32.mrf.mxu0
    %v3278 = vadd.f32 0.0, %v3277
    %v3279 = vpop.f32.mrf.mxu0
    %3280 = vmatprep.mubr.f32.mxu0 0.0
    %3281 = vmatmul.mubr.f32.gmra.mxu0 %v3129
    %v3282 = vpop.f32.mrf.mxu0
    %v3283 = vadd.f32 0.0, %v3282
    %v3284 = vpop.f32.mrf.mxu0
    %3285 = vmatprep.mubr.f32.mxu0 0.0
    %3286 = vmatmul.mubr.f32.gmra.mxu0 %v3132
    %v3287 = vpop.f32.mrf.mxu0
    %v3288 = vadd.f32 0.0, %v3287
    %v3289 = vpop.f32.mrf.mxu0
    %3290 = vdwg.mxu0
    %v3292 = vsel %vm194, %v1785, 0
    %v3295 = vsel %vm194, %v1786, 0
    %v3298 = vsel %vm194, %v1787, 0
    %v3301 = vsel %vm194, %v1788, 0
    %v3304 = vsel %vm194, %v1789, 0
    %v3307 = vsel %vm194, %v1790, 0
    %v3310 = vsel %vm194, %v1791, 0
    %v3313 = vsel %vm194, %v1792, 0
    %v3316 = vsel %vm194, %v1793, 0
    %v3319 = vsel %vm194, %v1794, 0
    %v3322 = vsel %vm194, %v1795, 0
    %v3325 = vsel %vm194, %v1796, 0
    %v3328 = vsel %vm194, %v1797, 0
    %v3331 = vsel %vm194, %v1798, 0
    %v3334 = vsel %vm194, %v1799, 0
    %v3337 = vsel %vm194, %v1800, 0
    %v3340 = vsel %vm194, %v3078, 0
    %v3343 = vsel %vm194, %v3079, 0
    %v3346 = vsel %vm194, %v3080, 0
    %v3349 = vsel %vm194, %v3081, 0
    %3351 = vmatprep.subr.mxu0 0.0
    %3352 = vmatpush1.xpose.msra.mxu0 0.0
    %3353 = vmatprep.subr.mxu0 0.0
    %3354 = vmatpush1.xpose.msra.mxu0 0.0
    %3355 = vmatprep.subr.mxu0 0.0
    %3356 = vmatpush1.xpose.msra.mxu0 0.0
    %3357 = vmatprep.subr.mxu0 0.0
    %3358 = vmatpush1.xpose.msra.mxu0 0.0
    %3359 = vmatprep.subr.mxu0 0.0
    %3360 = vmatpush1.xpose.msra.mxu0 0.0
    %3361 = vmatprep.subr.mxu0 0.0
    %3362 = vmatpush1.xpose.msra.mxu0 0.0
    %3363 = vmatprep.subr.mxu0 0.0
    %3364 = vmatpush1.xpose.msra.mxu0 0.0
    %3365 = vmatprep.subr.mxu0 0.0
    %3366 = vmatpush1.xpose.msra.mxu0 0.0
    %3367 = vmatprep.subr.mxu0 0.0
    %3368 = vmatpush1.xpose.msra.mxu0 0.0
    %3369 = vmatprep.subr.mxu0 0.0
    %3370 = vmatpush1.xpose.msra.mxu0 0.0
    %3371 = vmatprep.subr.mxu0 0.0
    %3372 = vmatpush1.xpose.msra.mxu0 0.0
    %3373 = vmatprep.subr.mxu0 0.0
    %3374 = vmatpush1.xpose.msra.mxu0 0.0
    %3375 = vmatprep.subr.mxu0 0.0
    %3376 = vmatpush1.xpose.msra.mxu0 %v3349
    %3377 = vmatprep.subr.mxu0 0.0
    %3378 = vmatpush1.xpose.msra.mxu0 %v3346
    %3379 = vmatprep.subr.mxu0 0.0
    %3380 = vmatpush1.xpose.msra.mxu0 %v3343
    %3381 = vmatprep.subr.mxu0 0.0
    %3382 = vmatpush1.xpose.msra.mxu0 %v3340
    %3383 = vmatprep.subr.mxu0 0.0
    %3384 = vmatpush2.xpose.msra.mxu0 0.0
    %3385 = vmatprep.subr.mxu0 0.0
    %3386 = vmatpush2.xpose.msra.mxu0 0.0
    %3387 = vmatprep.subr.mxu0 0.0
    %3388 = vmatpush2.xpose.msra.mxu0 0.0
    %3389 = vmatprep.subr.mxu0 0.0
    %3390 = vmatpush2.xpose.msra.mxu0 0.0
    %3391 = vmatprep.subr.mxu0 0.0
    %3392 = vmatpush2.xpose.msra.mxu0 0.0
    %3393 = vmatprep.subr.mxu0 0.0
    %3394 = vmatpush2.xpose.msra.mxu0 0.0
    %3395 = vmatprep.subr.mxu0 0.0
    %3396 = vmatpush2.xpose.msra.mxu0 0.0
    %3397 = vmatprep.subr.mxu0 0.0
    %3398 = vmatpush2.xpose.msra.mxu0 0.0
    %3399 = vmatprep.subr.mxu0 0.0
    %3400 = vmatpush2.xpose.msra.mxu0 0.0
    %3401 = vmatprep.subr.mxu0 0.0
    %3402 = vmatpush2.xpose.msra.mxu0 0.0
    %3403 = vmatprep.subr.mxu0 0.0
    %3404 = vmatpush2.xpose.msra.mxu0 0.0
    %3405 = vmatprep.subr.mxu0 0.0
    %3406 = vmatpush2.xpose.msra.mxu0 0.0
    %3407 = vmatprep.subr.mxu0 0.0
    %3408 = vmatpush2.xpose.msra.mxu0 0.0
    %3409 = vmatprep.subr.mxu0 0.0
    %3410 = vmatpush2.xpose.msra.mxu0 0.0
    %3411 = vmatprep.subr.mxu0 0.0
    %3412 = vmatpush2.xpose.msra.mxu0 0.0
    %3413 = vmatprep.subr.mxu0 0.0
    %3414 = vmatpush2.xpose.msra.mxu0 0.0
    %3415 = vmatprep.mubr.f32.mxu0 0.0
    %3416 = vmatmul.mubr.f32.gmra.mxu0 %v3292
    %v3417 = vpop.f32.mrf.mxu0
    %v3418 = vadd.f32 %v3213, %v3417
    %v3419 = vpop.f32.mrf.mxu0
    %3420 = vmatprep.mubr.f32.mxu0 0.0
    %3421 = vmatmul.mubr.f32.gmra.mxu0 %v3295
    %v3422 = vpop.f32.mrf.mxu0
    %v3423 = vadd.f32 %v3218, %v3422
    %v3424 = vpop.f32.mrf.mxu0
    %3425 = vmatprep.mubr.f32.mxu0 0.0
    %3426 = vmatmul.mubr.f32.gmra.mxu0 %v3298
    %v3427 = vpop.f32.mrf.mxu0
    %v3428 = vadd.f32 %v3223, %v3427
    %v3429 = vpop.f32.mrf.mxu0
    %3430 = vmatprep.mubr.f32.mxu0 0.0
    %3431 = vmatmul.mubr.f32.gmra.mxu0 %v3301
    %v3432 = vpop.f32.mrf.mxu0
    %v3433 = vadd.f32 %v3228, %v3432
    %v3434 = vpop.f32.mrf.mxu0
    %3435 = vmatprep.mubr.f32.mxu0 0.0
    %3436 = vmatmul.mubr.f32.gmra.mxu0 %v3304
    %v3437 = vpop.f32.mrf.mxu0
    %v3438 = vadd.f32 %v3233, %v3437
    %v3439 = vpop.f32.mrf.mxu0
    %3440 = vmatprep.mubr.f32.mxu0 0.0
    %3441 = vmatmul.mubr.f32.gmra.mxu0 %v3307
    %v3442 = vpop.f32.mrf.mxu0
    %v3443 = vadd.f32 %v3238, %v3442
    %v3444 = vpop.f32.mrf.mxu0
    %3445 = vmatprep.mubr.f32.mxu0 0.0
    %3446 = vmatmul.mubr.f32.gmra.mxu0 %v3310
    %v3447 = vpop.f32.mrf.mxu0
    %v3448 = vadd.f32 %v3243, %v3447
    %v3449 = vpop.f32.mrf.mxu0
    %3450 = vmatprep.mubr.f32.mxu0 0.0
    %3451 = vmatmul.mubr.f32.gmra.mxu0 %v3313
    %v3452 = vpop.f32.mrf.mxu0
    %v3453 = vadd.f32 %v3248, %v3452
    %v3454 = vpop.f32.mrf.mxu0
    %3455 = vmatprep.mubr.f32.mxu0 0.0
    %3456 = vmatmul.mubr.f32.gmra.mxu0 %v3316
    %v3457 = vpop.f32.mrf.mxu0
    %v3458 = vadd.f32 %v3253, %v3457
    %v3459 = vpop.f32.mrf.mxu0
    %3460 = vmatprep.mubr.f32.mxu0 0.0
    %3461 = vmatmul.mubr.f32.gmra.mxu0 %v3319
    %v3462 = vpop.f32.mrf.mxu0
    %v3463 = vadd.f32 %v3258, %v3462
    %v3464 = vpop.f32.mrf.mxu0
    %3465 = vmatprep.mubr.f32.mxu0 0.0
    %3466 = vmatmul.mubr.f32.gmra.mxu0 %v3322
    %v3467 = vpop.f32.mrf.mxu0
    %v3468 = vadd.f32 %v3263, %v3467
    %v3469 = vpop.f32.mrf.mxu0
    %3470 = vmatprep.mubr.f32.mxu0 0.0
    %3471 = vmatmul.mubr.f32.gmra.mxu0 %v3325
    %v3472 = vpop.f32.mrf.mxu0
    %v3473 = vadd.f32 %v3268, %v3472
    %v3474 = vpop.f32.mrf.mxu0
    %3475 = vmatprep.mubr.f32.mxu0 0.0
    %3476 = vmatmul.mubr.f32.gmra.mxu0 %v3328
    %v3477 = vpop.f32.mrf.mxu0
    %v3478 = vadd.f32 %v3273, %v3477
    %v3479 = vpop.f32.mrf.mxu0
    %3480 = vmatprep.mubr.f32.mxu0 0.0
    %3481 = vmatmul.mubr.f32.gmra.mxu0 %v3331
    %v3482 = vpop.f32.mrf.mxu0
    %v3483 = vadd.f32 %v3278, %v3482
    %v3484 = vpop.f32.mrf.mxu0
    %3485 = vmatprep.mubr.f32.mxu0 0.0
    %3486 = vmatmul.mubr.f32.gmra.mxu0 %v3334
    %v3487 = vpop.f32.mrf.mxu0
    %v3488 = vadd.f32 %v3283, %v3487
    %v3489 = vpop.f32.mrf.mxu0
    %3490 = vmatprep.mubr.f32.mxu0 0.0
    %3491 = vmatmul.mubr.f32.gmra.mxu0 %v3337
    %v3492 = vpop.f32.mrf.mxu0
    %v3493 = vadd.f32 %v3288, %v3492
    %v3494 = vpop.f32.mrf.mxu0
    %3495 = vdwg.mxu0
    %v3496 = vld [vmem:[%s16] sm:$0x1]
    %v3498 = vlaneseq
    %v3499 = vshrl.u32 %v3498, 7
    %v3500 = vsub.s32 0, %v3499
    %v3501 = vrot.slane %v3496, %v3500
    %v3503 = vadd.f32 %v3418, %v3501
    %v3504 = vadd.f32 %v3423, %v3501
    %v3505 = vadd.f32 %v3428, %v3501
    %v3506 = vadd.f32 %v3433, %v3501
    %v3507 = vadd.f32 %v3438, %v3501
    %v3508 = vadd.f32 %v3443, %v3501
    %v3509 = vadd.f32 %v3448, %v3501
    %v3510 = vadd.f32 %v3453, %v3501
    %v3511 = vadd.f32 %v3458, %v3501
    %v3512 = vadd.f32 %v3463, %v3501
    %v3513 = vadd.f32 %v3468, %v3501
    %v3514 = vadd.f32 %v3473, %v3501
    %v3515 = vadd.f32 %v3478, %v3501
    %v3516 = vadd.f32 %v3483, %v3501
    %v3517 = vadd.f32 %v3488, %v3501
    %v3518 = vadd.f32 %v3493, %v3501
    %v3519 = vtanh.pop %v3503
    %v3520 = vtanh.pop %v3504
    %v3521 = vtanh.pop %v3505
    %v3522 = vtanh.pop %v3506
    %v3523 = vtanh.pop %v3507
    %v3524 = vtanh.pop %v3508
    %v3525 = vtanh.pop %v3509
    %v3526 = vtanh.pop %v3510
    %v3527 = vtanh.pop %v3511
    %v3528 = vtanh.pop %v3512
    %v3529 = vtanh.pop %v3513
    %v3530 = vtanh.pop %v3514
    %v3531 = vtanh.pop %v3515
    %v3532 = vtanh.pop %v3516
    %v3533 = vtanh.pop %v3517
    %v3534 = vtanh.pop %v3518
    %v3535 = vmul.f32 %v3519, %v2621
    %v3536 = vmul.f32 %v3520, %v2622
    %v3537 = vmul.f32 %v3521, %v2623
    %v3538 = vmul.f32 %v3522, %v2624
    %v3539 = vmul.f32 %v3523, %v2625
    %v3540 = vmul.f32 %v3524, %v2626
    %v3541 = vmul.f32 %v3525, %v2627
    %v3542 = vmul.f32 %v3526, %v2628
    %v3543 = vmul.f32 %v3527, %v2629
    %v3544 = vmul.f32 %v3528, %v2630
    %v3545 = vmul.f32 %v3529, %v2631
    %v3546 = vmul.f32 %v3530, %v2632
    %v3547 = vmul.f32 %v3531, %v2633
    %v3548 = vmul.f32 %v3532, %v2634
    %v3549 = vmul.f32 %v3533, %v2635
    %v3550 = vmul.f32 %v3534, %v2636
    %v3551 = vadd.f32 %v1785, %v3535
    %v3552 = vadd.f32 %v1786, %v3536
    %v3553 = vadd.f32 %v1787, %v3537
    %v3554 = vadd.f32 %v1788, %v3538
    %v3555 = vadd.f32 %v1789, %v3539
    %v3556 = vadd.f32 %v1790, %v3540
    %v3557 = vadd.f32 %v1791, %v3541
    %v3558 = vadd.f32 %v1792, %v3542
    %v3559 = vadd.f32 %v1793, %v3543
    %v3560 = vadd.f32 %v1794, %v3544
    %v3561 = vadd.f32 %v1795, %v3545
    %v3562 = vadd.f32 %v1796, %v3546
    %v3563 = vadd.f32 %v1797, %v3547
    %v3564 = vadd.f32 %v1798, %v3548
    %v3565 = vadd.f32 %v1799, %v3549
    %v3566 = vadd.f32 %v1800, %v3550
    %3567 = vxpose.xlu0.b32.start [1/16] %v3062, 128
    %3568 = vxpose.xlu0.b32.cont [2/16] %v3063, 128
    %3569 = vxpose.xlu0.b32.cont [3/16] %v3064, 128
    %3570 = vxpose.xlu0.b32.cont [4/16] %v3065, 128
    %3571 = vxpose.xlu0.b32.cont [5/16] 0.0, 128
    %3572 = vxpose.xlu0.b32.cont [6/16] 0.0, 128
    %3573 = vxpose.xlu0.b32.cont [7/16] 0.0, 128
    %3574 = vxpose.xlu0.b32.cont [8/16] 0.0, 128
    %3575 = vxpose.xlu0.b32.cont [9/16] 0.0, 128
    %3576 = vxpose.xlu0.b32.cont [10/16] 0.0, 128
    %3577 = vxpose.xlu0.b32.cont [11/16] 0.0, 128
    %3578 = vxpose.xlu0.b32.cont [12/16] 0.0, 128
    %3579 = vxpose.xlu0.b32.cont [13/16] 0.0, 128
    %3580 = vxpose.xlu0.b32.cont [14/16] 0.0, 128
    %3581 = vxpose.xlu0.b32.cont [15/16] 0.0, 128
    %3582 = vxpose.xlu0.b32.end [16/16] 0.0, 128
    %v3583 = vpop.trf.xlu0
    %v3584 = vpop.trf.xlu0
    %v3585 = vpop.trf.xlu0
    %v3586 = vpop.trf.xlu0
    %v3587 = vpop.trf.xlu0
    %v3588 = vpop.trf.xlu0
    %v3589 = vpop.trf.xlu0
    %v3590 = vpop.trf.xlu0
    %v3591 = vpop.trf.xlu0
    %v3592 = vpop.trf.xlu0
    %v3593 = vpop.trf.xlu0
    %v3594 = vpop.trf.xlu0
    %v3595 = vpop.trf.xlu0
    %v3596 = vpop.trf.xlu0
    %v3597 = vpop.trf.xlu0
    %v3598 = vpop.trf.xlu0
    %v3600 = vsel %vm194, %v3583, 0
    %v3603 = vsel %vm194, %v3584, 0
    %v3606 = vsel %vm194, %v3585, 0
    %v3609 = vsel %vm194, %v3586, 0
    %3611 = vmatprep.subr.mxu0 0.0
    %3612 = vmatpush1.xpose.msra.mxu0 0.0
    %3613 = vmatprep.subr.mxu0 0.0
    %3614 = vmatpush1.xpose.msra.mxu0 0.0
    %3615 = vmatprep.subr.mxu0 0.0
    %3616 = vmatpush1.xpose.msra.mxu0 0.0
    %3617 = vmatprep.subr.mxu0 0.0
    %3618 = vmatpush1.xpose.msra.mxu0 0.0
    %3619 = vmatprep.subr.mxu0 0.0
    %3620 = vmatpush1.xpose.msra.mxu0 0.0
    %3621 = vmatprep.subr.mxu0 0.0
    %3622 = vmatpush1.xpose.msra.mxu0 0.0
    %3623 = vmatprep.subr.mxu0 0.0
    %3624 = vmatpush1.xpose.msra.mxu0 0.0
    %3625 = vmatprep.subr.mxu0 0.0
    %3626 = vmatpush1.xpose.msra.mxu0 0.0
    %3627 = vmatprep.subr.mxu0 0.0
    %3628 = vmatpush1.xpose.msra.mxu0 0.0
    %3629 = vmatprep.subr.mxu0 0.0
    %3630 = vmatpush1.xpose.msra.mxu0 0.0
    %3631 = vmatprep.subr.mxu0 0.0
    %3632 = vmatpush1.xpose.msra.mxu0 0.0
    %3633 = vmatprep.subr.mxu0 0.0
    %3634 = vmatpush1.xpose.msra.mxu0 0.0
    %3635 = vmatprep.subr.mxu0 0.0
    %3636 = vmatpush1.xpose.msra.mxu0 %v1811
    %3637 = vmatprep.subr.mxu0 0.0
    %3638 = vmatpush1.xpose.msra.mxu0 %v1808
    %3639 = vmatprep.subr.mxu0 0.0
    %3640 = vmatpush1.xpose.msra.mxu0 %v1805
    %3641 = vmatprep.subr.mxu0 0.0
    %3642 = vmatpush1.xpose.msra.mxu0 %v1802
    %3643 = vmatprep.subr.mxu0 0.0
    %3644 = vmatpush2.xpose.msra.mxu0 0.0
    %3645 = vmatprep.subr.mxu0 0.0
    %3646 = vmatpush2.xpose.msra.mxu0 0.0
    %3647 = vmatprep.subr.mxu0 0.0
    %3648 = vmatpush2.xpose.msra.mxu0 0.0
    %3649 = vmatprep.subr.mxu0 0.0
    %3650 = vmatpush2.xpose.msra.mxu0 0.0
    %3651 = vmatprep.subr.mxu0 0.0
    %3652 = vmatpush2.xpose.msra.mxu0 0.0
    %3653 = vmatprep.subr.mxu0 0.0
    %3654 = vmatpush2.xpose.msra.mxu0 0.0
    %3655 = vmatprep.subr.mxu0 0.0
    %3656 = vmatpush2.xpose.msra.mxu0 0.0
    %3657 = vmatprep.subr.mxu0 0.0
    %3658 = vmatpush2.xpose.msra.mxu0 0.0
    %3659 = vmatprep.subr.mxu0 0.0
    %3660 = vmatpush2.xpose.msra.mxu0 0.0
    %3661 = vmatprep.subr.mxu0 0.0
    %3662 = vmatpush2.xpose.msra.mxu0 0.0
    %3663 = vmatprep.subr.mxu0 0.0
    %3664 = vmatpush2.xpose.msra.mxu0 0.0
    %3665 = vmatprep.subr.mxu0 0.0
    %3666 = vmatpush2.xpose.msra.mxu0 0.0
    %3667 = vmatprep.subr.mxu0 0.0
    %3668 = vmatpush2.xpose.msra.mxu0 0.0
    %3669 = vmatprep.subr.mxu0 0.0
    %3670 = vmatpush2.xpose.msra.mxu0 0.0
    %3671 = vmatprep.subr.mxu0 0.0
    %3672 = vmatpush2.xpose.msra.mxu0 0.0
    %3673 = vmatprep.subr.mxu0 0.0
    %3674 = vmatpush2.xpose.msra.mxu0 0.0
    %3675 = vmatprep.mubr.f32.mxu0 0.0
    %3676 = vmatmul.mubr.f32.gmra.mxu0 %v3600
    %v3677 = vpop.f32.mrf.mxu0
    %v3678 = vadd.f32 0.0, %v3677
    %v3679 = vpop.f32.mrf.mxu0
    %3680 = vmatprep.mubr.f32.mxu0 0.0
    %3681 = vmatmul.mubr.f32.gmra.mxu0 %v3603
    %v3682 = vpop.f32.mrf.mxu0
    %v3683 = vadd.f32 0.0, %v3682
    %v3684 = vpop.f32.mrf.mxu0
    %3685 = vmatprep.mubr.f32.mxu0 0.0
    %3686 = vmatmul.mubr.f32.gmra.mxu0 %v3606
    %v3687 = vpop.f32.mrf.mxu0
    %v3688 = vadd.f32 0.0, %v3687
    %v3689 = vpop.f32.mrf.mxu0
    %3690 = vmatprep.mubr.f32.mxu0 0.0
    %3691 = vmatmul.mubr.f32.gmra.mxu0 %v3609
    %v3692 = vpop.f32.mrf.mxu0
    %v3693 = vadd.f32 0.0, %v3692
    %v3694 = vpop.f32.mrf.mxu0
    %3695 = vdwg.mxu0
    %3696 = vxpose.xlu0.b32.start [1/16] %v3066, 128
    %3697 = vxpose.xlu0.b32.cont [2/16] %v3067, 128
    %3698 = vxpose.xlu0.b32.cont [3/16] %v3068, 128
    %3699 = vxpose.xlu0.b32.cont [4/16] %v3069, 128
    %3700 = vxpose.xlu0.b32.cont [5/16] 0.0, 128
    %3701 = vxpose.xlu0.b32.cont [6/16] 0.0, 128
    %3702 = vxpose.xlu0.b32.cont [7/16] 0.0, 128
    %3703 = vxpose.xlu0.b32.cont [8/16] 0.0, 128
    %3704 = vxpose.xlu0.b32.cont [9/16] 0.0, 128
    %3705 = vxpose.xlu0.b32.cont [10/16] 0.0, 128
    %3706 = vxpose.xlu0.b32.cont [11/16] 0.0, 128
    %3707 = vxpose.xlu0.b32.cont [12/16] 0.0, 128
    %3708 = vxpose.xlu0.b32.cont [13/16] 0.0, 128
    %3709 = vxpose.xlu0.b32.cont [14/16] 0.0, 128
    %3710 = vxpose.xlu0.b32.cont [15/16] 0.0, 128
    %3711 = vxpose.xlu0.b32.end [16/16] 0.0, 128
    %v3712 = vpop.trf.xlu0
    %v3713 = vpop.trf.xlu0
    %v3714 = vpop.trf.xlu0
    %v3715 = vpop.trf.xlu0
    %v3716 = vpop.trf.xlu0
    %v3717 = vpop.trf.xlu0
    %v3718 = vpop.trf.xlu0
    %v3719 = vpop.trf.xlu0
    %v3720 = vpop.trf.xlu0
    %v3721 = vpop.trf.xlu0
    %v3722 = vpop.trf.xlu0
    %v3723 = vpop.trf.xlu0
    %v3724 = vpop.trf.xlu0
    %v3725 = vpop.trf.xlu0
    %v3726 = vpop.trf.xlu0
    %v3727 = vpop.trf.xlu0
    %v3729 = vsel %vm194, %v3712, 0
    %v3732 = vsel %vm194, %v3713, 0
    %v3735 = vsel %vm194, %v3714, 0
    %v3738 = vsel %vm194, %v3715, 0
    %3740 = vmatprep.subr.mxu0 0.0
    %3741 = vmatpush1.xpose.msra.mxu0 0.0
    %3742 = vmatprep.subr.mxu0 0.0
    %3743 = vmatpush1.xpose.msra.mxu0 0.0
    %3744 = vmatprep.subr.mxu0 0.0
    %3745 = vmatpush1.xpose.msra.mxu0 0.0
    %3746 = vmatprep.subr.mxu0 0.0
    %3747 = vmatpush1.xpose.msra.mxu0 0.0
    %3748 = vmatprep.subr.mxu0 0.0
    %3749 = vmatpush1.xpose.msra.mxu0 0.0
    %3750 = vmatprep.subr.mxu0 0.0
    %3751 = vmatpush1.xpose.msra.mxu0 0.0
    %3752 = vmatprep.subr.mxu0 0.0
    %3753 = vmatpush1.xpose.msra.mxu0 0.0
    %3754 = vmatprep.subr.mxu0 0.0
    %3755 = vmatpush1.xpose.msra.mxu0 0.0
    %3756 = vmatprep.subr.mxu0 0.0
    %3757 = vmatpush1.xpose.msra.mxu0 0.0
    %3758 = vmatprep.subr.mxu0 0.0
    %3759 = vmatpush1.xpose.msra.mxu0 0.0
    %3760 = vmatprep.subr.mxu0 0.0
    %3761 = vmatpush1.xpose.msra.mxu0 0.0
    %3762 = vmatprep.subr.mxu0 0.0
    %3763 = vmatpush1.xpose.msra.mxu0 0.0
    %3764 = vmatprep.subr.mxu0 0.0
    %3765 = vmatpush1.xpose.msra.mxu0 %v1811
    %3766 = vmatprep.subr.mxu0 0.0
    %3767 = vmatpush1.xpose.msra.mxu0 %v1808
    %3768 = vmatprep.subr.mxu0 0.0
    %3769 = vmatpush1.xpose.msra.mxu0 %v1805
    %3770 = vmatprep.subr.mxu0 0.0
    %3771 = vmatpush1.xpose.msra.mxu0 %v1802
    %3772 = vmatprep.subr.mxu0 0.0
    %3773 = vmatpush2.xpose.msra.mxu0 0.0
    %3774 = vmatprep.subr.mxu0 0.0
    %3775 = vmatpush2.xpose.msra.mxu0 0.0
    %3776 = vmatprep.subr.mxu0 0.0
    %3777 = vmatpush2.xpose.msra.mxu0 0.0
    %3778 = vmatprep.subr.mxu0 0.0
    %3779 = vmatpush2.xpose.msra.mxu0 0.0
    %3780 = vmatprep.subr.mxu0 0.0
    %3781 = vmatpush2.xpose.msra.mxu0 0.0
    %3782 = vmatprep.subr.mxu0 0.0
    %3783 = vmatpush2.xpose.msra.mxu0 0.0
    %3784 = vmatprep.subr.mxu0 0.0
    %3785 = vmatpush2.xpose.msra.mxu0 0.0
    %3786 = vmatprep.subr.mxu0 0.0
    %3787 = vmatpush2.xpose.msra.mxu0 0.0
    %3788 = vmatprep.subr.mxu0 0.0
    %3789 = vmatpush2.xpose.msra.mxu0 0.0
    %3790 = vmatprep.subr.mxu0 0.0
    %3791 = vmatpush2.xpose.msra.mxu0 0.0
    %3792 = vmatprep.subr.mxu0 0.0
    %3793 = vmatpush2.xpose.msra.mxu0 0.0
    %3794 = vmatprep.subr.mxu0 0.0
    %3795 = vmatpush2.xpose.msra.mxu0 0.0
    %3796 = vmatprep.subr.mxu0 0.0
    %3797 = vmatpush2.xpose.msra.mxu0 0.0
    %3798 = vmatprep.subr.mxu0 0.0
    %3799 = vmatpush2.xpose.msra.mxu0 0.0
    %3800 = vmatprep.subr.mxu0 0.0
    %3801 = vmatpush2.xpose.msra.mxu0 0.0
    %3802 = vmatprep.subr.mxu0 0.0
    %3803 = vmatpush2.xpose.msra.mxu0 0.0
    %3804 = vmatprep.mubr.f32.mxu0 0.0
    %3805 = vmatmul.mubr.f32.gmra.mxu0 %v3729
    %v3806 = vpop.f32.mrf.mxu0
    %v3807 = vadd.f32 0.0, %v3806
    %v3808 = vpop.f32.mrf.mxu0
    %3809 = vmatprep.mubr.f32.mxu0 0.0
    %3810 = vmatmul.mubr.f32.gmra.mxu0 %v3732
    %v3811 = vpop.f32.mrf.mxu0
    %v3812 = vadd.f32 0.0, %v3811
    %v3813 = vpop.f32.mrf.mxu0
    %3814 = vmatprep.mubr.f32.mxu0 0.0
    %3815 = vmatmul.mubr.f32.gmra.mxu0 %v3735
    %v3816 = vpop.f32.mrf.mxu0
    %v3817 = vadd.f32 0.0, %v3816
    %v3818 = vpop.f32.mrf.mxu0
    %3819 = vmatprep.mubr.f32.mxu0 0.0
    %3820 = vmatmul.mubr.f32.gmra.mxu0 %v3738
    %v3821 = vpop.f32.mrf.mxu0
    %v3822 = vadd.f32 0.0, %v3821
    %v3823 = vpop.f32.mrf.mxu0
    %3824 = vdwg.mxu0
    %3825 = vxpose.xlu0.b32.start [1/16] %v3070, 128
    %3826 = vxpose.xlu0.b32.cont [2/16] %v3071, 128
    %3827 = vxpose.xlu0.b32.cont [3/16] %v3072, 128
    %3828 = vxpose.xlu0.b32.cont [4/16] %v3073, 128
    %3829 = vxpose.xlu0.b32.cont [5/16] 0.0, 128
    %3830 = vxpose.xlu0.b32.cont [6/16] 0.0, 128
    %3831 = vxpose.xlu0.b32.cont [7/16] 0.0, 128
    %3832 = vxpose.xlu0.b32.cont [8/16] 0.0, 128
    %3833 = vxpose.xlu0.b32.cont [9/16] 0.0, 128
    %3834 = vxpose.xlu0.b32.cont [10/16] 0.0, 128
    %3835 = vxpose.xlu0.b32.cont [11/16] 0.0, 128
    %3836 = vxpose.xlu0.b32.cont [12/16] 0.0, 128
    %3837 = vxpose.xlu0.b32.cont [13/16] 0.0, 128
    %3838 = vxpose.xlu0.b32.cont [14/16] 0.0, 128
    %3839 = vxpose.xlu0.b32.cont [15/16] 0.0, 128
    %3840 = vxpose.xlu0.b32.end [16/16] 0.0, 128
    %v3841 = vpop.trf.xlu0
    %v3842 = vpop.trf.xlu0
    %v3843 = vpop.trf.xlu0
    %v3844 = vpop.trf.xlu0
    %v3845 = vpop.trf.xlu0
    %v3846 = vpop.trf.xlu0
    %v3847 = vpop.trf.xlu0
    %v3848 = vpop.trf.xlu0
    %v3849 = vpop.trf.xlu0
    %v3850 = vpop.trf.xlu0
    %v3851 = vpop.trf.xlu0
    %v3852 = vpop.trf.xlu0
    %v3853 = vpop.trf.xlu0
    %v3854 = vpop.trf.xlu0
    %v3855 = vpop.trf.xlu0
    %v3856 = vpop.trf.xlu0
    %v3858 = vsel %vm194, %v3841, 0
    %v3861 = vsel %vm194, %v3842, 0
    %v3864 = vsel %vm194, %v3843, 0
    %v3867 = vsel %vm194, %v3844, 0
    %3869 = vmatprep.subr.mxu0 0.0
    %3870 = vmatpush1.xpose.msra.mxu0 0.0
    %3871 = vmatprep.subr.mxu0 0.0
    %3872 = vmatpush1.xpose.msra.mxu0 0.0
    %3873 = vmatprep.subr.mxu0 0.0
    %3874 = vmatpush1.xpose.msra.mxu0 0.0
    %3875 = vmatprep.subr.mxu0 0.0
    %3876 = vmatpush1.xpose.msra.mxu0 0.0
    %3877 = vmatprep.subr.mxu0 0.0
    %3878 = vmatpush1.xpose.msra.mxu0 0.0
    %3879 = vmatprep.subr.mxu0 0.0
    %3880 = vmatpush1.xpose.msra.mxu0 0.0
    %3881 = vmatprep.subr.mxu0 0.0
    %3882 = vmatpush1.xpose.msra.mxu0 0.0
    %3883 = vmatprep.subr.mxu0 0.0
    %3884 = vmatpush1.xpose.msra.mxu0 0.0
    %3885 = vmatprep.subr.mxu0 0.0
    %3886 = vmatpush1.xpose.msra.mxu0 0.0
    %3887 = vmatprep.subr.mxu0 0.0
    %3888 = vmatpush1.xpose.msra.mxu0 0.0
    %3889 = vmatprep.subr.mxu0 0.0
    %3890 = vmatpush1.xpose.msra.mxu0 0.0
    %3891 = vmatprep.subr.mxu0 0.0
    %3892 = vmatpush1.xpose.msra.mxu0 0.0
    %3893 = vmatprep.subr.mxu0 0.0
    %3894 = vmatpush1.xpose.msra.mxu0 %v1811
    %3895 = vmatprep.subr.mxu0 0.0
    %3896 = vmatpush1.xpose.msra.mxu0 %v1808
    %3897 = vmatprep.subr.mxu0 0.0
    %3898 = vmatpush1.xpose.msra.mxu0 %v1805
    %3899 = vmatprep.subr.mxu0 0.0
    %3900 = vmatpush1.xpose.msra.mxu0 %v1802
    %3901 = vmatprep.subr.mxu0 0.0
    %3902 = vmatpush2.xpose.msra.mxu0 0.0
    %3903 = vmatprep.subr.mxu0 0.0
    %3904 = vmatpush2.xpose.msra.mxu0 0.0
    %3905 = vmatprep.subr.mxu0 0.0
    %3906 = vmatpush2.xpose.msra.mxu0 0.0
    %3907 = vmatprep.subr.mxu0 0.0
    %3908 = vmatpush2.xpose.msra.mxu0 0.0
    %3909 = vmatprep.subr.mxu0 0.0
    %3910 = vmatpush2.xpose.msra.mxu0 0.0
    %3911 = vmatprep.subr.mxu0 0.0
    %3912 = vmatpush2.xpose.msra.mxu0 0.0
    %3913 = vmatprep.subr.mxu0 0.0
    %3914 = vmatpush2.xpose.msra.mxu0 0.0
    %3915 = vmatprep.subr.mxu0 0.0
    %3916 = vmatpush2.xpose.msra.mxu0 0.0
    %3917 = vmatprep.subr.mxu0 0.0
    %3918 = vmatpush2.xpose.msra.mxu0 0.0
    %3919 = vmatprep.subr.mxu0 0.0
    %3920 = vmatpush2.xpose.msra.mxu0 0.0
    %3921 = vmatprep.subr.mxu0 0.0
    %3922 = vmatpush2.xpose.msra.mxu0 0.0
    %3923 = vmatprep.subr.mxu0 0.0
    %3924 = vmatpush2.xpose.msra.mxu0 0.0
    %3925 = vmatprep.subr.mxu0 0.0
    %3926 = vmatpush2.xpose.msra.mxu0 0.0
    %3927 = vmatprep.subr.mxu0 0.0
    %3928 = vmatpush2.xpose.msra.mxu0 0.0
    %3929 = vmatprep.subr.mxu0 0.0
    %3930 = vmatpush2.xpose.msra.mxu0 0.0
    %3931 = vmatprep.subr.mxu0 0.0
    %3932 = vmatpush2.xpose.msra.mxu0 0.0
    %3933 = vmatprep.mubr.f32.mxu0 0.0
    %3934 = vmatmul.mubr.f32.gmra.mxu0 %v3858
    %v3935 = vpop.f32.mrf.mxu0
    %v3936 = vadd.f32 0.0, %v3935
    %v3937 = vpop.f32.mrf.mxu0
    %3938 = vmatprep.mubr.f32.mxu0 0.0
    %3939 = vmatmul.mubr.f32.gmra.mxu0 %v3861
    %v3940 = vpop.f32.mrf.mxu0
    %v3941 = vadd.f32 0.0, %v3940
    %v3942 = vpop.f32.mrf.mxu0
    %3943 = vmatprep.mubr.f32.mxu0 0.0
    %3944 = vmatmul.mubr.f32.gmra.mxu0 %v3864
    %v3945 = vpop.f32.mrf.mxu0
    %v3946 = vadd.f32 0.0, %v3945
    %v3947 = vpop.f32.mrf.mxu0
    %3948 = vmatprep.mubr.f32.mxu0 0.0
    %3949 = vmatmul.mubr.f32.gmra.mxu0 %v3867
    %v3950 = vpop.f32.mrf.mxu0
    %v3951 = vadd.f32 0.0, %v3950
    %v3952 = vpop.f32.mrf.mxu0
    %3953 = vdwg.mxu0
    %3954 = vxpose.xlu0.b32.start [1/16] %v3074, 128
    %3955 = vxpose.xlu0.b32.cont [2/16] %v3075, 128
    %3956 = vxpose.xlu0.b32.cont [3/16] %v3076, 128
    %3957 = vxpose.xlu0.b32.cont [4/16] %v3077, 128
    %3958 = vxpose.xlu0.b32.cont [5/16] 0.0, 128
    %3959 = vxpose.xlu0.b32.cont [6/16] 0.0, 128
    %3960 = vxpose.xlu0.b32.cont [7/16] 0.0, 128
    %3961 = vxpose.xlu0.b32.cont [8/16] 0.0, 128
    %3962 = vxpose.xlu0.b32.cont [9/16] 0.0, 128
    %3963 = vxpose.xlu0.b32.cont [10/16] 0.0, 128
    %3964 = vxpose.xlu0.b32.cont [11/16] 0.0, 128
    %3965 = vxpose.xlu0.b32.cont [12/16] 0.0, 128
    %3966 = vxpose.xlu0.b32.cont [13/16] 0.0, 128
    %3967 = vxpose.xlu0.b32.cont [14/16] 0.0, 128
    %3968 = vxpose.xlu0.b32.cont [15/16] 0.0, 128
    %3969 = vxpose.xlu0.b32.end [16/16] 0.0, 128
    %v3970 = vpop.trf.xlu0
    %v3971 = vpop.trf.xlu0
    %v3972 = vpop.trf.xlu0
    %v3973 = vpop.trf.xlu0
    %v3974 = vpop.trf.xlu0
    %v3975 = vpop.trf.xlu0
    %v3976 = vpop.trf.xlu0
    %v3977 = vpop.trf.xlu0
    %v3978 = vpop.trf.xlu0
    %v3979 = vpop.trf.xlu0
    %v3980 = vpop.trf.xlu0
    %v3981 = vpop.trf.xlu0
    %v3982 = vpop.trf.xlu0
    %v3983 = vpop.trf.xlu0
    %v3984 = vpop.trf.xlu0
    %v3985 = vpop.trf.xlu0
    %v3987 = vsel %vm194, %v3970, 0
    %v3990 = vsel %vm194, %v3971, 0
    %v3993 = vsel %vm194, %v3972, 0
    %v3996 = vsel %vm194, %v3973, 0
    %3998 = vmatprep.subr.mxu0 0.0
    %3999 = vmatpush1.xpose.msra.mxu0 0.0
    %4000 = vmatprep.subr.mxu0 0.0
    %4001 = vmatpush1.xpose.msra.mxu0 0.0
    %4002 = vmatprep.subr.mxu0 0.0
    %4003 = vmatpush1.xpose.msra.mxu0 0.0
    %4004 = vmatprep.subr.mxu0 0.0
    %4005 = vmatpush1.xpose.msra.mxu0 0.0
    %4006 = vmatprep.subr.mxu0 0.0
    %4007 = vmatpush1.xpose.msra.mxu0 0.0
    %4008 = vmatprep.subr.mxu0 0.0
    %4009 = vmatpush1.xpose.msra.mxu0 0.0
    %4010 = vmatprep.subr.mxu0 0.0
    %4011 = vmatpush1.xpose.msra.mxu0 0.0
    %4012 = vmatprep.subr.mxu0 0.0
    %4013 = vmatpush1.xpose.msra.mxu0 0.0
    %4014 = vmatprep.subr.mxu0 0.0
    %4015 = vmatpush1.xpose.msra.mxu0 0.0
    %4016 = vmatprep.subr.mxu0 0.0
    %4017 = vmatpush1.xpose.msra.mxu0 0.0
    %4018 = vmatprep.subr.mxu0 0.0
    %4019 = vmatpush1.xpose.msra.mxu0 0.0
    %4020 = vmatprep.subr.mxu0 0.0
    %4021 = vmatpush1.xpose.msra.mxu0 0.0
    %4022 = vmatprep.subr.mxu0 0.0
    %4023 = vmatpush1.xpose.msra.mxu0 %v1811
    %4024 = vmatprep.subr.mxu0 0.0
    %4025 = vmatpush1.xpose.msra.mxu0 %v1808
    %4026 = vmatprep.subr.mxu0 0.0
    %4027 = vmatpush1.xpose.msra.mxu0 %v1805
    %4028 = vmatprep.subr.mxu0 0.0
    %4029 = vmatpush1.xpose.msra.mxu0 %v1802
    %4030 = vmatprep.subr.mxu0 0.0
    %4031 = vmatpush2.xpose.msra.mxu0 0.0
    %4032 = vmatprep.subr.mxu0 0.0
    %4033 = vmatpush2.xpose.msra.mxu0 0.0
    %4034 = vmatprep.subr.mxu0 0.0
    %4035 = vmatpush2.xpose.msra.mxu0 0.0
    %4036 = vmatprep.subr.mxu0 0.0
    %4037 = vmatpush2.xpose.msra.mxu0 0.0
    %4038 = vmatprep.subr.mxu0 0.0
    %4039 = vmatpush2.xpose.msra.mxu0 0.0
    %4040 = vmatprep.subr.mxu0 0.0
    %4041 = vmatpush2.xpose.msra.mxu0 0.0
    %4042 = vmatprep.subr.mxu0 0.0
    %4043 = vmatpush2.xpose.msra.mxu0 0.0
    %4044 = vmatprep.subr.mxu0 0.0
    %4045 = vmatpush2.xpose.msra.mxu0 0.0
    %4046 = vmatprep.subr.mxu0 0.0
    %4047 = vmatpush2.xpose.msra.mxu0 0.0
    %4048 = vmatprep.subr.mxu0 0.0
    %4049 = vmatpush2.xpose.msra.mxu0 0.0
    %4050 = vmatprep.subr.mxu0 0.0
    %4051 = vmatpush2.xpose.msra.mxu0 0.0
    %4052 = vmatprep.subr.mxu0 0.0
    %4053 = vmatpush2.xpose.msra.mxu0 0.0
    %4054 = vmatprep.subr.mxu0 0.0
    %4055 = vmatpush2.xpose.msra.mxu0 0.0
    %4056 = vmatprep.subr.mxu0 0.0
    %4057 = vmatpush2.xpose.msra.mxu0 0.0
    %4058 = vmatprep.subr.mxu0 0.0
    %4059 = vmatpush2.xpose.msra.mxu0 0.0
    %4060 = vmatprep.subr.mxu0 0.0
    %4061 = vmatpush2.xpose.msra.mxu0 0.0
    %4062 = vmatprep.mubr.f32.mxu0 0.0
    %4063 = vmatmul.mubr.f32.gmra.mxu0 %v3987
    %v4064 = vpop.f32.mrf.mxu0
    %v4065 = vadd.f32 0.0, %v4064
    %v4066 = vpop.f32.mrf.mxu0
    %4067 = vmatprep.mubr.f32.mxu0 0.0
    %4068 = vmatmul.mubr.f32.gmra.mxu0 %v3990
    %v4069 = vpop.f32.mrf.mxu0
    %v4070 = vadd.f32 0.0, %v4069
    %v4071 = vpop.f32.mrf.mxu0
    %4072 = vmatprep.mubr.f32.mxu0 0.0
    %4073 = vmatmul.mubr.f32.gmra.mxu0 %v3993
    %v4074 = vpop.f32.mrf.mxu0
    %v4075 = vadd.f32 0.0, %v4074
    %v4076 = vpop.f32.mrf.mxu0
    %4077 = vmatprep.mubr.f32.mxu0 0.0
    %4078 = vmatmul.mubr.f32.gmra.mxu0 %v3996
    %v4079 = vpop.f32.mrf.mxu0
    %v4080 = vadd.f32 0.0, %v4079
    %v4081 = vpop.f32.mrf.mxu0
    %4082 = vdwg.mxu0
    %v4083 = vmul.f32 %v3678, 0.2
    %v4084 = vmul.f32 %v3683, 0.2
    %v4085 = vmul.f32 %v3688, 0.2
    %v4086 = vmul.f32 %v3693, 0.2
    %v4087 = vmul.f32 %v3807, 0.2
    %v4088 = vmul.f32 %v3812, 0.2
    %v4089 = vmul.f32 %v3817, 0.2
    %v4090 = vmul.f32 %v3822, 0.2
    %v4091 = vmul.f32 %v3936, 0.2
    %v4092 = vmul.f32 %v3941, 0.2
    %v4093 = vmul.f32 %v3946, 0.2
    %v4094 = vmul.f32 %v3951, 0.2
    %v4095 = vmul.f32 %v4065, 0.2
    %v4096 = vmul.f32 %v4070, 0.2
    %v4097 = vmul.f32 %v4075, 0.2
    %v4098 = vmul.f32 %v4080, 0.2
    %v4099 = vmax.f32 %v3678, %v4083
    %v4100 = vmax.f32 %v3683, %v4084
    %v4101 = vmax.f32 %v3688, %v4085
    %v4102 = vmax.f32 %v3693, %v4086
    %v4103 = vmax.f32 %v3807, %v4087
    %v4104 = vmax.f32 %v3812, %v4088
    %v4105 = vmax.f32 %v3817, %v4089
    %v4106 = vmax.f32 %v3822, %v4090
    %v4107 = vmax.f32 %v3936, %v4091
    %v4108 = vmax.f32 %v3941, %v4092
    %v4109 = vmax.f32 %v3946, %v4093
    %v4110 = vmax.f32 %v3951, %v4094
    %v4111 = vmax.f32 %v4065, %v4095
    %v4112 = vmax.f32 %v4070, %v4096
    %v4113 = vmax.f32 %v4075, %v4097
    %v4114 = vmax.f32 %v4080, %v4098
    %4115 = vmatprep.subr.mxu0 0.0
    %4116 = vmatpush1.msra.mxu0 0.0
    %4117 = vmatprep.subr.mxu0 0.0
    %4118 = vmatpush1.msra.mxu0 0.0
    %4119 = vmatprep.subr.mxu0 0.0
    %4120 = vmatpush1.msra.mxu0 0.0
    %4121 = vmatprep.subr.mxu0 0.0
    %4122 = vmatpush1.msra.mxu0 0.0
    %4123 = vmatprep.subr.mxu0 0.0
    %4124 = vmatpush1.msra.mxu0 0.0
    %4125 = vmatprep.subr.mxu0 0.0
    %4126 = vmatpush1.msra.mxu0 0.0
    %4127 = vmatprep.subr.mxu0 0.0
    %4128 = vmatpush1.msra.mxu0 0.0
    %4129 = vmatprep.subr.mxu0 0.0
    %4130 = vmatpush1.msra.mxu0 0.0
    %4131 = vmatprep.subr.mxu0 0.0
    %4132 = vmatpush1.msra.mxu0 0.0
    %4133 = vmatprep.subr.mxu0 0.0
    %4134 = vmatpush1.msra.mxu0 0.0
    %4135 = vmatprep.subr.mxu0 0.0
    %4136 = vmatpush1.msra.mxu0 0.0
    %4137 = vmatprep.subr.mxu0 0.0
    %4138 = vmatpush1.msra.mxu0 0.0
    %4139 = vmatprep.subr.mxu0 0.0
    %4140 = vmatpush1.msra.mxu0 %v3554
    %4141 = vmatprep.subr.mxu0 0.0
    %4142 = vmatpush1.msra.mxu0 %v3553
    %4143 = vmatprep.subr.mxu0 0.0
    %4144 = vmatpush1.msra.mxu0 %v3552
    %4145 = vmatprep.subr.mxu0 0.0
    %4146 = vmatpush1.msra.mxu0 %v3551
    %4147 = vmatprep.subr.mxu0 0.0
    %4148 = vmatpush2.msra.mxu0 0.0
    %4149 = vmatprep.subr.mxu0 0.0
    %4150 = vmatpush2.msra.mxu0 0.0
    %4151 = vmatprep.subr.mxu0 0.0
    %4152 = vmatpush2.msra.mxu0 0.0
    %4153 = vmatprep.subr.mxu0 0.0
    %4154 = vmatpush2.msra.mxu0 0.0
    %4155 = vmatprep.subr.mxu0 0.0
    %4156 = vmatpush2.msra.mxu0 0.0
    %4157 = vmatprep.subr.mxu0 0.0
    %4158 = vmatpush2.msra.mxu0 0.0
    %4159 = vmatprep.subr.mxu0 0.0
    %4160 = vmatpush2.msra.mxu0 0.0
    %4161 = vmatprep.subr.mxu0 0.0
    %4162 = vmatpush2.msra.mxu0 0.0
    %4163 = vmatprep.subr.mxu0 0.0
    %4164 = vmatpush2.msra.mxu0 0.0
    %4165 = vmatprep.subr.mxu0 0.0
    %4166 = vmatpush2.msra.mxu0 0.0
    %4167 = vmatprep.subr.mxu0 0.0
    %4168 = vmatpush2.msra.mxu0 0.0
    %4169 = vmatprep.subr.mxu0 0.0
    %4170 = vmatpush2.msra.mxu0 0.0
    %4171 = vmatprep.subr.mxu0 0.0
    %4172 = vmatpush2.msra.mxu0 0.0
    %4173 = vmatprep.subr.mxu0 0.0
    %4174 = vmatpush2.msra.mxu0 0.0
    %4175 = vmatprep.subr.mxu0 0.0
    %4176 = vmatpush2.msra.mxu0 0.0
    %4177 = vmatprep.subr.mxu0 0.0
    %4178 = vmatpush2.msra.mxu0 0.0
    %4179 = vmatprep.mubr.f32.mxu0 0.0
    %4180 = vmatmul.mubr.f32.gmra.mxu0 %v2254
    %v4181 = vpop.f32.mrf.mxu0
    %v4182 = vadd.f32 %v2236, %v4181
    %v4183 = vpop.f32.mrf.mxu0
    %4184 = vmatprep.mubr.f32.mxu0 0.0
    %4185 = vmatmul.mubr.f32.gmra.mxu0 %v2257
    %v4186 = vpop.f32.mrf.mxu0
    %v4187 = vadd.f32 %v2241, %v4186
    %v4188 = vpop.f32.mrf.mxu0
    %4189 = vmatprep.mubr.f32.mxu0 0.0
    %4190 = vmatmul.mubr.f32.gmra.mxu0 %v2260
    %v4191 = vpop.f32.mrf.mxu0
    %v4192 = vadd.f32 %v2246, %v4191
    %v4193 = vpop.f32.mrf.mxu0
    %4194 = vmatprep.mubr.f32.mxu0 0.0
    %4195 = vmatmul.mubr.f32.gmra.mxu0 %v2263
    %v4196 = vpop.f32.mrf.mxu0
    %v4197 = vadd.f32 %v2251, %v4196
    %v4198 = vpop.f32.mrf.mxu0
    %4199 = vdwg.mxu0
    %4200 = vmatprep.subr.mxu0 0.0
    %4201 = vmatpush1.msra.mxu0 0.0
    %4202 = vmatprep.subr.mxu0 0.0
    %4203 = vmatpush1.msra.mxu0 0.0
    %4204 = vmatprep.subr.mxu0 0.0
    %4205 = vmatpush1.msra.mxu0 0.0
    %4206 = vmatprep.subr.mxu0 0.0
    %4207 = vmatpush1.msra.mxu0 0.0
    %4208 = vmatprep.subr.mxu0 0.0
    %4209 = vmatpush1.msra.mxu0 0.0
    %4210 = vmatprep.subr.mxu0 0.0
    %4211 = vmatpush1.msra.mxu0 0.0
    %4212 = vmatprep.subr.mxu0 0.0
    %4213 = vmatpush1.msra.mxu0 0.0
    %4214 = vmatprep.subr.mxu0 0.0
    %4215 = vmatpush1.msra.mxu0 0.0
    %4216 = vmatprep.subr.mxu0 0.0
    %4217 = vmatpush1.msra.mxu0 0.0
    %4218 = vmatprep.subr.mxu0 0.0
    %4219 = vmatpush1.msra.mxu0 0.0
    %4220 = vmatprep.subr.mxu0 0.0
    %4221 = vmatpush1.msra.mxu0 0.0
    %4222 = vmatprep.subr.mxu0 0.0
    %4223 = vmatpush1.msra.mxu0 0.0
    %4224 = vmatprep.subr.mxu0 0.0
    %4225 = vmatpush1.msra.mxu0 %v3558
    %4226 = vmatprep.subr.mxu0 0.0
    %4227 = vmatpush1.msra.mxu0 %v3557
    %4228 = vmatprep.subr.mxu0 0.0
    %4229 = vmatpush1.msra.mxu0 %v3556
    %4230 = vmatprep.subr.mxu0 0.0
    %4231 = vmatpush1.msra.mxu0 %v3555
    %4232 = vmatprep.subr.mxu0 0.0
    %4233 = vmatpush2.msra.mxu0 0.0
    %4234 = vmatprep.subr.mxu0 0.0
    %4235 = vmatpush2.msra.mxu0 0.0
    %4236 = vmatprep.subr.mxu0 0.0
    %4237 = vmatpush2.msra.mxu0 0.0
    %4238 = vmatprep.subr.mxu0 0.0
    %4239 = vmatpush2.msra.mxu0 0.0
    %4240 = vmatprep.subr.mxu0 0.0
    %4241 = vmatpush2.msra.mxu0 0.0
    %4242 = vmatprep.subr.mxu0 0.0
    %4243 = vmatpush2.msra.mxu0 0.0
    %4244 = vmatprep.subr.mxu0 0.0
    %4245 = vmatpush2.msra.mxu0 0.0
    %4246 = vmatprep.subr.mxu0 0.0
    %4247 = vmatpush2.msra.mxu0 0.0
    %4248 = vmatprep.subr.mxu0 0.0
    %4249 = vmatpush2.msra.mxu0 0.0
    %4250 = vmatprep.subr.mxu0 0.0
    %4251 = vmatpush2.msra.mxu0 0.0
    %4252 = vmatprep.subr.mxu0 0.0
    %4253 = vmatpush2.msra.mxu0 0.0
    %4254 = vmatprep.subr.mxu0 0.0
    %4255 = vmatpush2.msra.mxu0 0.0
    %4256 = vmatprep.subr.mxu0 0.0
    %4257 = vmatpush2.msra.mxu0 0.0
    %4258 = vmatprep.subr.mxu0 0.0
    %4259 = vmatpush2.msra.mxu0 0.0
    %4260 = vmatprep.subr.mxu0 0.0
    %4261 = vmatpush2.msra.mxu0 0.0
    %4262 = vmatprep.subr.mxu0 0.0
    %4263 = vmatpush2.msra.mxu0 0.0
    %4264 = vmatprep.mubr.f32.mxu0 0.0
    %4265 = vmatmul.mubr.f32.gmra.mxu0 %v2254
    %v4266 = vpop.f32.mrf.mxu0
    %v4267 = vadd.f32 %v2236, %v4266
    %v4268 = vpop.f32.mrf.mxu0
    %4269 = vmatprep.mubr.f32.mxu0 0.0
    %4270 = vmatmul.mubr.f32.gmra.mxu0 %v2257
    %v4271 = vpop.f32.mrf.mxu0
    %v4272 = vadd.f32 %v2241, %v4271
    %v4273 = vpop.f32.mrf.mxu0
    %4274 = vmatprep.mubr.f32.mxu0 0.0
    %4275 = vmatmul.mubr.f32.gmra.mxu0 %v2260
    %v4276 = vpop.f32.mrf.mxu0
    %v4277 = vadd.f32 %v2246, %v4276
    %v4278 = vpop.f32.mrf.mxu0
    %4279 = vmatprep.mubr.f32.mxu0 0.0
    %4280 = vmatmul.mubr.f32.gmra.mxu0 %v2263
    %v4281 = vpop.f32.mrf.mxu0
    %v4282 = vadd.f32 %v2251, %v4281
    %v4283 = vpop.f32.mrf.mxu0
    %4284 = vdwg.mxu0
    %4285 = vmatprep.subr.mxu0 0.0
    %4286 = vmatpush1.msra.mxu0 0.0
    %4287 = vmatprep.subr.mxu0 0.0
    %4288 = vmatpush1.msra.mxu0 0.0
    %4289 = vmatprep.subr.mxu0 0.0
    %4290 = vmatpush1.msra.mxu0 0.0
    %4291 = vmatprep.subr.mxu0 0.0
    %4292 = vmatpush1.msra.mxu0 0.0
    %4293 = vmatprep.subr.mxu0 0.0
    %4294 = vmatpush1.msra.mxu0 0.0
    %4295 = vmatprep.subr.mxu0 0.0
    %4296 = vmatpush1.msra.mxu0 0.0
    %4297 = vmatprep.subr.mxu0 0.0
    %4298 = vmatpush1.msra.mxu0 0.0
    %4299 = vmatprep.subr.mxu0 0.0
    %4300 = vmatpush1.msra.mxu0 0.0
    %4301 = vmatprep.subr.mxu0 0.0
    %4302 = vmatpush1.msra.mxu0 0.0
    %4303 = vmatprep.subr.mxu0 0.0
    %4304 = vmatpush1.msra.mxu0 0.0
    %4305 = vmatprep.subr.mxu0 0.0
    %4306 = vmatpush1.msra.mxu0 0.0
    %4307 = vmatprep.subr.mxu0 0.0
    %4308 = vmatpush1.msra.mxu0 0.0
    %4309 = vmatprep.subr.mxu0 0.0
    %4310 = vmatpush1.msra.mxu0 %v3562
    %4311 = vmatprep.subr.mxu0 0.0
    %4312 = vmatpush1.msra.mxu0 %v3561
    %4313 = vmatprep.subr.mxu0 0.0
    %4314 = vmatpush1.msra.mxu0 %v3560
    %4315 = vmatprep.subr.mxu0 0.0
    %4316 = vmatpush1.msra.mxu0 %v3559
    %4317 = vmatprep.subr.mxu0 0.0
    %4318 = vmatpush2.msra.mxu0 0.0
    %4319 = vmatprep.subr.mxu0 0.0
    %4320 = vmatpush2.msra.mxu0 0.0
    %4321 = vmatprep.subr.mxu0 0.0
    %4322 = vmatpush2.msra.mxu0 0.0
    %4323 = vmatprep.subr.mxu0 0.0
    %4324 = vmatpush2.msra.mxu0 0.0
    %4325 = vmatprep.subr.mxu0 0.0
    %4326 = vmatpush2.msra.mxu0 0.0
    %4327 = vmatprep.subr.mxu0 0.0
    %4328 = vmatpush2.msra.mxu0 0.0
    %4329 = vmatprep.subr.mxu0 0.0
    %4330 = vmatpush2.msra.mxu0 0.0
    %4331 = vmatprep.subr.mxu0 0.0
    %4332 = vmatpush2.msra.mxu0 0.0
    %4333 = vmatprep.subr.mxu0 0.0
    %4334 = vmatpush2.msra.mxu0 0.0
    %4335 = vmatprep.subr.mxu0 0.0
    %4336 = vmatpush2.msra.mxu0 0.0
    %4337 = vmatprep.subr.mxu0 0.0
    %4338 = vmatpush2.msra.mxu0 0.0
    %4339 = vmatprep.subr.mxu0 0.0
    %4340 = vmatpush2.msra.mxu0 0.0
    %4341 = vmatprep.subr.mxu0 0.0
    %4342 = vmatpush2.msra.mxu0 0.0
    %4343 = vmatprep.subr.mxu0 0.0
    %4344 = vmatpush2.msra.mxu0 0.0
    %4345 = vmatprep.subr.mxu0 0.0
    %4346 = vmatpush2.msra.mxu0 0.0
    %4347 = vmatprep.subr.mxu0 0.0
    %4348 = vmatpush2.msra.mxu0 0.0
    %4349 = vmatprep.mubr.f32.mxu0 0.0
    %4350 = vmatmul.mubr.f32.gmra.mxu0 %v2254
    %v4351 = vpop.f32.mrf.mxu0
    %v4352 = vadd.f32 %v2236, %v4351
    %v4353 = vpop.f32.mrf.mxu0
    %4354 = vmatprep.mubr.f32.mxu0 0.0
    %4355 = vmatmul.mubr.f32.gmra.mxu0 %v2257
    %v4356 = vpop.f32.mrf.mxu0
    %v4357 = vadd.f32 %v2241, %v4356
    %v4358 = vpop.f32.mrf.mxu0
    %4359 = vmatprep.mubr.f32.mxu0 0.0
    %4360 = vmatmul.mubr.f32.gmra.mxu0 %v2260
    %v4361 = vpop.f32.mrf.mxu0
    %v4362 = vadd.f32 %v2246, %v4361
    %v4363 = vpop.f32.mrf.mxu0
    %4364 = vmatprep.mubr.f32.mxu0 0.0
    %4365 = vmatmul.mubr.f32.gmra.mxu0 %v2263
    %v4366 = vpop.f32.mrf.mxu0
    %v4367 = vadd.f32 %v2251, %v4366
    %v4368 = vpop.f32.mrf.mxu0
    %4369 = vdwg.mxu0
    %4370 = vmatprep.subr.mxu0 0.0
    %4371 = vmatpush1.msra.mxu0 0.0
    %4372 = vmatprep.subr.mxu0 0.0
    %4373 = vmatpush1.msra.mxu0 0.0
    %4374 = vmatprep.subr.mxu0 0.0
    %4375 = vmatpush1.msra.mxu0 0.0
    %4376 = vmatprep.subr.mxu0 0.0
    %4377 = vmatpush1.msra.mxu0 0.0
    %4378 = vmatprep.subr.mxu0 0.0
    %4379 = vmatpush1.msra.mxu0 0.0
    %4380 = vmatprep.subr.mxu0 0.0
    %4381 = vmatpush1.msra.mxu0 0.0
    %4382 = vmatprep.subr.mxu0 0.0
    %4383 = vmatpush1.msra.mxu0 0.0
    %4384 = vmatprep.subr.mxu0 0.0
    %4385 = vmatpush1.msra.mxu0 0.0
    %4386 = vmatprep.subr.mxu0 0.0
    %4387 = vmatpush1.msra.mxu0 0.0
    %4388 = vmatprep.subr.mxu0 0.0
    %4389 = vmatpush1.msra.mxu0 0.0
    %4390 = vmatprep.subr.mxu0 0.0
    %4391 = vmatpush1.msra.mxu0 0.0
    %4392 = vmatprep.subr.mxu0 0.0
    %4393 = vmatpush1.msra.mxu0 0.0
    %4394 = vmatprep.subr.mxu0 0.0
    %4395 = vmatpush1.msra.mxu0 %v3566
    %4396 = vmatprep.subr.mxu0 0.0
    %4397 = vmatpush1.msra.mxu0 %v3565
    %4398 = vmatprep.subr.mxu0 0.0
    %4399 = vmatpush1.msra.mxu0 %v3564
    %4400 = vmatprep.subr.mxu0 0.0
    %4401 = vmatpush1.msra.mxu0 %v3563
    %4402 = vmatprep.subr.mxu0 0.0
    %4403 = vmatpush2.msra.mxu0 0.0
    %4404 = vmatprep.subr.mxu0 0.0
    %4405 = vmatpush2.msra.mxu0 0.0
    %4406 = vmatprep.subr.mxu0 0.0
    %4407 = vmatpush2.msra.mxu0 0.0
    %4408 = vmatprep.subr.mxu0 0.0
    %4409 = vmatpush2.msra.mxu0 0.0
    %4410 = vmatprep.subr.mxu0 0.0
    %4411 = vmatpush2.msra.mxu0 0.0
    %4412 = vmatprep.subr.mxu0 0.0
    %4413 = vmatpush2.msra.mxu0 0.0
    %4414 = vmatprep.subr.mxu0 0.0
    %4415 = vmatpush2.msra.mxu0 0.0
    %4416 = vmatprep.subr.mxu0 0.0
    %4417 = vmatpush2.msra.mxu0 0.0
    %4418 = vmatprep.subr.mxu0 0.0
    %4419 = vmatpush2.msra.mxu0 0.0
    %4420 = vmatprep.subr.mxu0 0.0
    %4421 = vmatpush2.msra.mxu0 0.0
    %4422 = vmatprep.subr.mxu0 0.0
    %4423 = vmatpush2.msra.mxu0 0.0
    %4424 = vmatprep.subr.mxu0 0.0
    %4425 = vmatpush2.msra.mxu0 0.0
    %4426 = vmatprep.subr.mxu0 0.0
    %4427 = vmatpush2.msra.mxu0 0.0
    %4428 = vmatprep.subr.mxu0 0.0
    %4429 = vmatpush2.msra.mxu0 0.0
    %4430 = vmatprep.subr.mxu0 0.0
    %4431 = vmatpush2.msra.mxu0 0.0
    %4432 = vmatprep.subr.mxu0 0.0
    %4433 = vmatpush2.msra.mxu0 0.0
    %4434 = vmatprep.mubr.f32.mxu0 0.0
    %4435 = vmatmul.mubr.f32.gmra.mxu0 %v2254
    %v4436 = vpop.f32.mrf.mxu0
    %v4437 = vadd.f32 %v2236, %v4436
    %v4438 = vpop.f32.mrf.mxu0
    %4439 = vmatprep.mubr.f32.mxu0 0.0
    %4440 = vmatmul.mubr.f32.gmra.mxu0 %v2257
    %v4441 = vpop.f32.mrf.mxu0
    %v4442 = vadd.f32 %v2241, %v4441
    %v4443 = vpop.f32.mrf.mxu0
    %4444 = vmatprep.mubr.f32.mxu0 0.0
    %4445 = vmatmul.mubr.f32.gmra.mxu0 %v2260
    %v4446 = vpop.f32.mrf.mxu0
    %v4447 = vadd.f32 %v2246, %v4446
    %v4448 = vpop.f32.mrf.mxu0
    %4449 = vmatprep.mubr.f32.mxu0 0.0
    %4450 = vmatmul.mubr.f32.gmra.mxu0 %v2263
    %v4451 = vpop.f32.mrf.mxu0
    %v4452 = vadd.f32 %v2251, %v4451
    %v4453 = vpop.f32.mrf.mxu0
    %4454 = vdwg.mxu0
    %v4455 = vmul.f32 %v4182, 0.2
    %v4456 = vmul.f32 %v4187, 0.2
    %v4457 = vmul.f32 %v4192, 0.2
    %v4458 = vmul.f32 %v4197, 0.2
    %v4459 = vmul.f32 %v4267, 0.2
    %v4460 = vmul.f32 %v4272, 0.2
    %v4461 = vmul.f32 %v4277, 0.2
    %v4462 = vmul.f32 %v4282, 0.2
    %v4463 = vmul.f32 %v4352, 0.2
    %v4464 = vmul.f32 %v4357, 0.2
    %v4465 = vmul.f32 %v4362, 0.2
    %v4466 = vmul.f32 %v4367, 0.2
    %v4467 = vmul.f32 %v4437, 0.2
    %v4468 = vmul.f32 %v4442, 0.2
    %v4469 = vmul.f32 %v4447, 0.2
    %v4470 = vmul.f32 %v4452, 0.2
    %v4471 = vmax.f32 %v4182, %v4455
    %v4472 = vmax.f32 %v4187, %v4456
    %v4473 = vmax.f32 %v4192, %v4457
    %v4474 = vmax.f32 %v4197, %v4458
    %v4475 = vmax.f32 %v4267, %v4459
    %v4476 = vmax.f32 %v4272, %v4460
    %v4477 = vmax.f32 %v4277, %v4461
    %v4478 = vmax.f32 %v4282, %v4462
    %v4479 = vmax.f32 %v4352, %v4463
    %v4480 = vmax.f32 %v4357, %v4464
    %v4481 = vmax.f32 %v4362, %v4465
    %v4482 = vmax.f32 %v4367, %v4466
    %v4483 = vmax.f32 %v4437, %v4467
    %v4484 = vmax.f32 %v4442, %v4468
    %v4485 = vmax.f32 %v4447, %v4469
    %v4486 = vmax.f32 %v4452, %v4470
    %v4487 = vadd.f32 %v166, %v1785
    %v4488 = vadd.f32 %v167, %v1786
    %v4489 = vadd.f32 %v168, %v1787
    %v4490 = vadd.f32 %v169, %v1788
    %v4491 = vadd.f32 %v170, %v1789
    %v4492 = vadd.f32 %v171, %v1790
    %v4493 = vadd.f32 %v172, %v1791
    %v4494 = vadd.f32 %v173, %v1792
    %v4495 = vadd.f32 %v174, %v1793
    %v4496 = vadd.f32 %v175, %v1794
    %v4497 = vadd.f32 %v176, %v1795
    %v4498 = vadd.f32 %v177, %v1796
    %v4499 = vadd.f32 %v178, %v1797
    %v4500 = vadd.f32 %v179, %v1798
    %v4501 = vadd.f32 %v180, %v1799
    %v4502 = vadd.f32 %v181, %v1800
    %v4503 = vmul.f32 %v4099, %v4487
    %v4504 = vmul.f32 %v4100, %v4488
    %v4505 = vmul.f32 %v4101, %v4489
    %v4506 = vmul.f32 %v4102, %v4490
    %v4507 = vmul.f32 %v4103, %v4491
    %v4508 = vmul.f32 %v4104, %v4492
    %v4509 = vmul.f32 %v4105, %v4493
    %v4510 = vmul.f32 %v4106, %v4494
    %v4511 = vmul.f32 %v4107, %v4495
    %v4512 = vmul.f32 %v4108, %v4496
    %v4513 = vmul.f32 %v4109, %v4497
    %v4514 = vmul.f32 %v4110, %v4498
    %v4515 = vmul.f32 %v4111, %v4499
    %v4516 = vmul.f32 %v4112, %v4500
    %v4517 = vmul.f32 %v4113, %v4501
    %v4518 = vmul.f32 %v4114, %v4502
    %v4519 = vmul.f32 %v4503, %v4471
    %v4520 = vmul.f32 %v4504, %v4472
    %v4521 = vmul.f32 %v4505, %v4473
    %v4522 = vmul.f32 %v4506, %v4474
    %v4523 = vmul.f32 %v4507, %v4475
    %v4524 = vmul.f32 %v4508, %v4476
    %v4525 = vmul.f32 %v4509, %v4477
    %v4526 = vmul.f32 %v4510, %v4478
    %v4527 = vmul.f32 %v4511, %v4479
    %v4528 = vmul.f32 %v4512, %v4480
    %v4529 = vmul.f32 %v4513, %v4481
    %v4530 = vmul.f32 %v4514, %v4482
    %v4531 = vmul.f32 %v4515, %v4483
    %v4532 = vmul.f32 %v4516, %v4484
    %v4533 = vmul.f32 %v4517, %v4485
    %v4534 = vmul.f32 %v4518, %v4486
    %v4535 = vsub.f32 0.0, %v4519
    %v4536 = vsub.f32 0.0, %v4520
    %v4537 = vsub.f32 0.0, %v4521
    %v4538 = vsub.f32 0.0, %v4522
    %v4539 = vsub.f32 0.0, %v4523
    %v4540 = vsub.f32 0.0, %v4524
    %v4541 = vsub.f32 0.0, %v4525
    %v4542 = vsub.f32 0.0, %v4526
    %v4543 = vsub.f32 0.0, %v4527
    %v4544 = vsub.f32 0.0, %v4528
    %v4545 = vsub.f32 0.0, %v4529
    %v4546 = vsub.f32 0.0, %v4530
    %v4547 = vsub.f32 0.0, %v4531
    %v4548 = vsub.f32 0.0, %v4532
    %v4549 = vsub.f32 0.0, %v4533
    %v4550 = vsub.f32 0.0, %v4534
    %v4551 = vmul.f32 %v4535, 1.442695
    %v4552 = vpow.pop %v4551
    %v4553 = vmul.f32 %v4536, 1.442695
    %v4554 = vpow.pop %v4553
    %v4555 = vmul.f32 %v4537, 1.442695
    %v4556 = vpow.pop %v4555
    %v4557 = vmul.f32 %v4538, 1.442695
    %v4558 = vpow.pop %v4557
    %v4559 = vmul.f32 %v4539, 1.442695
    %v4560 = vpow.pop %v4559
    %v4561 = vmul.f32 %v4540, 1.442695
    %v4562 = vpow.pop %v4561
    %v4563 = vmul.f32 %v4541, 1.442695
    %v4564 = vpow.pop %v4563
    %v4565 = vmul.f32 %v4542, 1.442695
    %v4566 = vpow.pop %v4565
    %v4567 = vmul.f32 %v4543, 1.442695
    %v4568 = vpow.pop %v4567
    %v4569 = vmul.f32 %v4544, 1.442695
    %v4570 = vpow.pop %v4569
    %v4571 = vmul.f32 %v4545, 1.442695
    %v4572 = vpow.pop %v4571
    %v4573 = vmul.f32 %v4546, 1.442695
    %v4574 = vpow.pop %v4573
    %v4575 = vmul.f32 %v4547, 1.442695
    %v4576 = vpow.pop %v4575
    %v4577 = vmul.f32 %v4548, 1.442695
    %v4578 = vpow.pop %v4577
    %v4579 = vmul.f32 %v4549, 1.442695
    %v4580 = vpow.pop %v4579
    %v4581 = vmul.f32 %v4550, 1.442695
    %v4582 = vpow.pop %v4581
    %v4583 = vadd.f32 %v4552, 1.0
    %v4584 = vadd.f32 %v4554, 1.0
    %v4585 = vadd.f32 %v4556, 1.0
    %v4586 = vadd.f32 %v4558, 1.0
    %v4587 = vadd.f32 %v4560, 1.0
    %v4588 = vadd.f32 %v4562, 1.0
    %v4589 = vadd.f32 %v4564, 1.0
    %v4590 = vadd.f32 %v4566, 1.0
    %v4591 = vadd.f32 %v4568, 1.0
    %v4592 = vadd.f32 %v4570, 1.0
    %v4593 = vadd.f32 %v4572, 1.0
    %v4594 = vadd.f32 %v4574, 1.0
    %v4595 = vadd.f32 %v4576, 1.0
    %v4596 = vadd.f32 %v4578, 1.0
    %v4597 = vadd.f32 %v4580, 1.0
    %v4598 = vadd.f32 %v4582, 1.0
    %v4599 = vrcp.pop %v4583
    %v4600 = vrcp.pop %v4584
    %v4601 = vrcp.pop %v4585
    %v4602 = vrcp.pop %v4586
    %v4603 = vrcp.pop %v4587
    %v4604 = vrcp.pop %v4588
    %v4605 = vrcp.pop %v4589
    %v4606 = vrcp.pop %v4590
    %v4607 = vrcp.pop %v4591
    %v4608 = vrcp.pop %v4592
    %v4609 = vrcp.pop %v4593
    %v4610 = vrcp.pop %v4594
    %v4611 = vrcp.pop %v4595
    %v4612 = vrcp.pop %v4596
    %v4613 = vrcp.pop %v4597
    %v4614 = vrcp.pop %v4598
    %4615 = vst.msk [vmem:[#allocation16] sm:$0xff] %vm194, %v4599
    %4616 = vst.msk [vmem:[#allocation16 + $0x8] sm:$0xff] %vm194, %v4600
    %4617 = vst.msk [vmem:[#allocation16 + $0x10] sm:$0xff] %vm194, %v4601
    %4618 = vst.msk [vmem:[#allocation16 + $0x18] sm:$0xff] %vm194, %v4602
    %4619 = vst.msk [vmem:[#allocation16 + $0x20] sm:$0xff] %vm194, %v4603
    %4620 = vst.msk [vmem:[#allocation16 + $0x28] sm:$0xff] %vm194, %v4604
    %4621 = vst.msk [vmem:[#allocation16 + $0x30] sm:$0xff] %vm194, %v4605
    %4622 = vst.msk [vmem:[#allocation16 + $0x38] sm:$0xff] %vm194, %v4606
    %4623 = vst.msk [vmem:[#allocation16 + $0x40] sm:$0xff] %vm194, %v4607
    %4624 = vst.msk [vmem:[#allocation16 + $0x48] sm:$0xff] %vm194, %v4608
    %4625 = vst.msk [vmem:[#allocation16 + $0x50] sm:$0xff] %vm194, %v4609
    %4626 = vst.msk [vmem:[#allocation16 + $0x58] sm:$0xff] %vm194, %v4610
    %4627 = vst.msk [vmem:[#allocation16 + $0x60] sm:$0xff] %vm194, %v4611
    %4628 = vst.msk [vmem:[#allocation16 + $0x68] sm:$0xff] %vm194, %v4612
    %4629 = vst.msk [vmem:[#allocation16 + $0x70] sm:$0xff] %vm194, %v4613
    %4630 = vst.msk [vmem:[#allocation16 + $0x78] sm:$0xff] %vm194, %v4614
    // Predicated region
    $region102: #{memory_graph_forward.1} parent=1 // pred_check
      _
    $region103: #{memory_graph_forward.1} parent=1 // pred_check_branch
      %4632 = sbr.rel (0) target = $region105
    $region104: #{memory_graph_forward.1} parent=1 // pred_region
      %s4634 = ssub.s32 2048, 2048
      %4635 = vsyncadd [#allocation4], %s4634
      %s4636 = sshll.u32 [#allocation16], 4
      %s4637 = int_to_ptr.vmem [resolvable:$true] %s4636
      %4642 = dma.vmem_to_hbm [thread:$0]  %s4637, 2048, %s17, [#allocation4], 128, 128, 8
    $region105: #{memory_graph_forward.1} parent=1 // pred_fallthru
      _
    // Predicated region
    $region106: #{memory_graph_forward.1} parent=1 // pred_check
      _
    $region107: #{memory_graph_forward.1} parent=1 // pred_check_branch
      %4644 = sbr.rel (0) target = $region109
    $region108: #{memory_graph_forward.1} parent=1 // pred_region
      %4645 = dma.done [#allocation4], 2048
    $region109: #{memory_graph_forward.1} parent=1 // pred_fallthru
      _
    %4646 = vsyncpa [#allocation3], 1
    %4647 = vsyncpa [#allocation6], 1
    %4648 = vsyncpa [#allocation9], 1
    %4649 = vsyncpa [#allocation12], 1
    %4650 = vsyncpa [#allocation15], 1
    %4651 = vsyncpa [#allocation4], 1

</llo_original>
